<compile_context>
chip_gen: v7x
topology: tpu7x:2x2x1
jax: 0.10.0
libtpu: 0.0.40
codegen_flags: <defaults>
</compile_context>

<pallas_src>
import functools

import jax
import jax.numpy as jnp
from jax import lax
from jax.experimental import pallas as pl
from jax.experimental.pallas import tpu as pltpu

EPS = 1e-5  # PyTorch BatchNorm2d default eps


# ------------------------------- kernel ----------------------------------------------

def _row_chunks(total_rows, chunk_rows):
    """Static (start, size) chunks covering [0, total_rows)."""
    out = []
    r = 0
    while r < total_rows:
        out.append((r, min(chunk_rows, total_rows - r)))
        r += chunk_rows
    return out


def _double_conv_kernel(x_ref, w1_ref, b1_ref, w2_ref, b2_ref, o_ref,
                        xp_ref, h1p_ref, *, TH, H, W, chunk_rows):
    """One (image, row-tile) step of DoubleConv.

    x_ref  : (1, H, W, Cin)       bf16   full image (resident across row tiles)
    w1_ref : (3, 3*Cin, Cmid)     bf16   conv1 taps merged over kw, BN1 scale folded in
    b1_ref : (1, Cmid)            f32    folded BN1 bias
    w2_ref : (3, 3*Cmid, Cout)    bf16   conv2 taps merged over kw, BN2 scale folded in
    b2_ref : (1, Cout)            f32    folded BN2 bias
    o_ref  : (1, Cout, TH*W)      bf16   lane-dense NCHW-flat output block
    xp_ref : (H+4, W+2, Cin)      bf16   zero-padded input scratch (2 rows / 1 col pad)
    h1p_ref: (TH+2, W+2, Cmid)    bf16   zero-padded conv1 activations for this tile
    """
    t = pl.program_id(1)
    n_tiles = pl.num_programs(1)
    Cin = x_ref.shape[3]
    Cmid = w1_ref.shape[2]
    Cout = w2_ref.shape[2]

    # ---- once per image: stage the padded input (borders only + interior copy) -------
    @pl.when(t == 0)
    def _():
        zrow = jnp.zeros((2, W + 2, Cin), xp_ref.dtype)
        xp_ref[0:2, :, :] = zrow
        xp_ref[H + 2:H + 4, :, :] = zrow
        zcol = jnp.zeros((H + 4, 1, Cin), xp_ref.dtype)
        xp_ref[:, 0:1, :] = zcol
        xp_ref[:, W + 1:W + 2, :] = zcol
        xp_ref[2:H + 2, 1:W + 1, :] = x_ref[0]
        # Border columns of the conv1-activation scratch stay zero for the whole image;
        # zero them once here instead of every row tile.
        zc1 = jnp.zeros((TH + 2, 1, Cmid), h1p_ref.dtype)
        h1p_ref[:, 0:1, :] = zc1
        h1p_ref[:, W + 1:W + 2, :] = zc1

    row0 = t * TH  # leading-dim offset into xp for this tile

    # Hoist small VMEM loads out of the chunk loops.
    w1 = [w1_ref[kh] for kh in range(3)]
    w2 = [w2_ref[kh] for kh in range(3)]
    b1 = b1_ref[...]
    b2 = b2_ref[...]

    # ---- conv1 (3x3, pad 1) + folded BN bias + ReLU -----------------------------------
    # Computes TH+2 rows (TH output rows + a 1-row halo each side) so conv2 needs no
    # cross-tile communication.  Each chunk does 3 matmuls with K=3*Cin.
    rows1 = TH + 2
    for r0, rc in _row_chunks(rows1, chunk_rows):
        acc = None
        for kh in range(3):
            xs = xp_ref[pl.ds(row0 + r0 + kh, rc), :, :]              # (rc, W+2, Cin)
            lhs = jnp.concatenate(
                [xs[:, 0:W, :], xs[:, 1:W + 1, :], xs[:, 2:W + 2, :]],
                axis=-1).reshape(rc * W, 3 * Cin)                      # im2col over kw
            p = jnp.dot(lhs, w1[kh], preferred_element_type=jnp.float32)
            acc = p if acc is None else acc + p
        h = jnp.maximum(acc + b1, 0.0).reshape(rc, W, Cmid)
        h1p_ref[r0:r0 + rc, 1:W + 1, :] = h.astype(h1p_ref.dtype)

    # Halo rows falling outside the image must be *zero padding* for conv2 (not conv of
    # zero-padded input, which is nonzero after bias+ReLU).  Only boundary tiles pay.
    @pl.when(t == 0)
    def _():
        h1p_ref[0:1, 1:W + 1, :] = jnp.zeros((1, W, Cmid), h1p_ref.dtype)

    @pl.when(t == n_tiles - 1)
    def _():
        h1p_ref[TH + 1:TH + 2, 1:W + 1, :] = jnp.zeros((1, W, Cmid), h1p_ref.dtype)

    # ---- conv2 (3x3, pad 1) + folded BN bias + ReLU -----------------------------------
    for r0, rc in _row_chunks(TH, chunk_rows):
        acc = None
        for kh in range(3):
            hs = h1p_ref[r0 + kh:r0 + kh + rc, :, :]                   # (rc, W+2, Cmid)
            lhs = jnp.concatenate(
                [hs[:, 0:W, :], hs[:, 1:W + 1, :], hs[:, 2:W + 2, :]],
                axis=-1).reshape(rc * W, 3 * Cmid)
            p = jnp.dot(lhs, w2[kh], preferred_element_type=jnp.float32)
            acc = p if acc is None else acc + p
        y = jnp.maximum(acc + b2, 0.0)                                 # (rc*W, Cout) f32
        # Lane-dense NCHW-flat bf16 store (rc*W is a multiple of 128 for full chunks).
        o_ref[:, :, r0 * W:(r0 + rc) * W] = (
            jnp.transpose(y).astype(o_ref.dtype).reshape(1, Cout, rc * W))


# ------------------------------ tiling heuristics -------------------------------------

def _vmem_budget_bytes():
    try:
        cap = pltpu.get_tpu_info().vmem_capacity_bytes
    except Exception:
        cap = 64 * 1024 * 1024  # conservative default = v7x per-core physical VMEM
    return int(cap * 3 // 4)    # leave headroom for compiler internals / spills


def _estimate_vmem(H, W, TH, Cin, Cmid, Cout):
    """Rough per-step VMEM footprint (lane padding to 128 included)."""
    b = 2  # bf16
    cin_p = max(Cin, 128)
    cmid_p = max(Cmid, 128)
    cout_p = max(Cout, 128)
    x_block = 2 * H * W * cin_p * b                    # double-buffered full-image block
    o_block = 2 * max(Cout, 16) * TH * W * b           # double-buffered NCHW-flat output
    xp = (H + 4) * (W + 2) * cin_p * b                 # padded-input scratch
    h1p = (TH + 2) * (W + 2) * cmid_p * b              # padded conv1 tile
    w = 9 * Cin * cmid_p * b + 9 * Cmid * cout_p * b   # weights (double-buffered-ish)
    slack = 2 << 20                                    # compute temporaries
    return x_block + o_block + xp + h1p + 2 * w + slack


def _pick_row_tile(H, W, Cin, Cmid, Cout, budget):
    """Largest TH dividing H that keeps the output block lane-dense and fits VMEM."""
    for th in range(H, 0, -1):
        if H % th:
            continue
        if (th * W) % 128 != 0 and th != H:
            continue
        if _estimate_vmem(H, W, th, Cin, Cmid, Cout) <= budget:
            return th
    # Nothing fits the budget estimate: fall back to the smallest valid divisor.
    for th in range(1, H + 1):
        if H % th == 0 and ((th * W) % 128 == 0 or th == H):
            return th
    return H


# --------------------------------- wrappers -------------------------------------------

def double_conv_pallas(x_nhwc, w1_k, b1_k, w2_k, b2_k, *, row_tile=None, m_target=256):
    """DoubleConv forward on an NHWC bf16 input. Returns (N, Cout, H*W) bf16 (NCHW-flat)."""
    N, H, W, Cin = x_nhwc.shape
    assert w1_k.shape == (3, 3 * Cin, w1_k.shape[2])
    Cmid = w1_k.shape[2]
    assert w2_k.shape[1] == 3 * Cmid
    Cout = w2_k.shape[2]

    budget = _vmem_budget_bytes()
    TH = row_tile if row_tile is not None else _pick_row_tile(H, W, Cin, Cmid, Cout, budget)
    assert H % TH == 0, "row tile must divide H"

    chunk_rows = max(1, m_target // W)  # ~m_target matmul rows per chunk keeps acc vreg-resident

    kernel = functools.partial(_double_conv_kernel, TH=TH, H=H, W=W, chunk_rows=chunk_rows)

    out = pl.pallas_call(
        kernel,
        out_shape=jax.ShapeDtypeStruct((N, Cout, H * W), jnp.bfloat16),
        grid_spec=pltpu.PrefetchScalarGridSpec(
            num_scalar_prefetch=0,
            grid=(N, H // TH),
            in_specs=[
                # Full image per batch; constant block index across row tiles keeps it
                # resident instead of re-DMAing per tile.
                pl.BlockSpec((1, H, W, Cin), lambda n, t: (n, 0, 0, 0)),
                pl.BlockSpec((3, 3 * Cin, Cmid), lambda n, t: (0, 0, 0)),
                pl.BlockSpec((1, Cmid), lambda n, t: (0, 0)),
                pl.BlockSpec((3, 3 * Cmid, Cout), lambda n, t: (0, 0, 0)),
                pl.BlockSpec((1, Cout), lambda n, t: (0, 0)),
            ],
            out_specs=pl.BlockSpec((1, Cout, TH * W), lambda n, t: (n, 0, t)),
            scratch_shapes=[
                pltpu.VMEM((H + 4, W + 2, Cin), jnp.bfloat16),     # zero-padded input
                pltpu.VMEM((TH + 2, W + 2, Cmid), jnp.bfloat16),   # zero-padded conv1 tile
            ],
        ),
        compiler_params=pltpu.CompilerParams(
            # Row-tile axis must stay "arbitrary": it carries the padded-input scratch.
            # Batch axis is parallel so a 2-TC chip keeps both cores busy for N >= 2.
            dimension_semantics=("parallel", "arbitrary"),
            vmem_limit_bytes=budget,
        ),
    )(x_nhwc, w1_k, b1_k, w2_k, b2_k)

    return out


def double_conv_pallas_nchw(x_nchw, w1_k, b1_k, w2_k, b2_k, **kw):
    """PyTorch-layout convenience wrapper (NCHW f32 in / NCHW bf16 out).

    TODO(synk): in a full UNet keep activations NHWC/bf16 end-to-end so this one extra
    HBM layout pass only happens at the framework boundary, not per layer.
    """
    N, Cin, H, W = x_nchw.shape
    Cout = w2_k.shape[2]
    x = jnp.transpose(x_nchw, (0, 2, 3, 1)).astype(jnp.bfloat16)
    out = double_conv_pallas(x, w1_k, b1_k, w2_k, b2_k, **kw)
    return out.reshape(N, Cout, H, W)


# --------------------- parameter init (deterministic, synthetic) ----------------------

def init_torch_params(key, cin, cmid, cout):
    ks = jax.random.split(key, 10)
    w1 = 0.1 * jax.random.normal(ks[0], (cmid, cin, 3, 3), jnp.float32)   # OIHW
    w2 = 0.1 * jax.random.normal(ks[1], (cout, cmid, 3, 3), jnp.float32)  # OIHW

    def bn(k0, k1, k2, k3, c):
        g = 1.0 + 0.1 * jax.random.normal(k0, (c,), jnp.float32)
        b = 0.05 * jax.random.normal(k1, (c,), jnp.float32)
        m = 0.1 * jax.random.normal(k2, (c,), jnp.float32)
        v = 0.5 + jax.random.uniform(k3, (c,), jnp.float32)
        return g, b, m, v

    bn1 = bn(ks[2], ks[3], ks[4], ks[5], cmid)
    bn2 = bn(ks[6], ks[7], ks[8], ks[9], cout)
    return w1, bn1, w2, bn2


def fold_for_kernel(params):
    """Fold eval-mode BN into conv weights; emit (3, 3*I, O) bf16 taps + f32 bias."""
    w1, (g1, be1, m1, v1), w2, (g2, be2, m2, v2) = params

    def fold(w, g, b, m, v):
        s = g / jnp.sqrt(v + EPS)
        wf = w * s[:, None, None, None]                 # BN scale folded into conv weight
        bf = b - m * s                                  # remaining per-channel bias
        # OIHW -> (kh, kw, I, O) -> (kh, kw*I, O); K rows ordered kw-major, channel-minor,
        # matching the in-kernel concat([kw=0, kw=1, kw=2], axis=-1) im2col layout.
        wk = jnp.transpose(wf, (2, 3, 1, 0)).reshape(3, 3 * w.shape[1], w.shape[0])
        return wk.astype(jnp.bfloat16), bf.reshape(1, -1).astype(jnp.float32)

    w1_k, b1_k = fold(w1, g1, be1, m1, v1)
    w2_k, b2_k = fold(w2, g2, be2, m2, v2)
    return w1_k, b1_k, w2_k, b2_k


# ---------------------------- pure-JAX references --------------------------------------

def reference_f32(x, params):
    """Exact PyTorch (eval-mode) DoubleConv semantics in f32."""
    w1, (g1, be1, m1, v1), w2, (g2, be2, m2, v2) = params

    def bn(y, g, b, m, v):
        s = g / jnp.sqrt(v + EPS)
        return y * s[None, :, None, None] + (b - m * s)[None, :, None, None]

    h = lax.conv_general_dilated(x, w1, (1, 1), ((1, 1), (1, 1)),
                                 dimension_numbers=("NCHW", "OIHW", "NCHW"))
    h = jnp.maximum(bn(h, g1, be1, m1, v1), 0.0)
    h = lax.conv_general_dilated(h, w2, (1, 1), ((1, 1), (1, 1)),
                                 dimension_numbers=("NCHW", "OIHW", "NCHW"))
    return jnp.maximum(bn(h, g2, be2, m2, v2), 0.0)


def reference_bf16(x, w1_k, b1_k, w2_k, b2_k):
    """Mirrors the kernel numerics (bf16 operands, f32 accumulation) with lax convs."""
    N, Cin, H, W = x.shape
    Cmid = w1_k.shape[2]
    Cout = w2_k.shape[2]
    xb = jnp.transpose(x, (0, 2, 3, 1)).astype(jnp.bfloat16).astype(jnp.float32)
    w1 = w1_k.astype(jnp.float32).reshape(3, 3, Cin, Cmid)   # HWIO
    w2 = w2_k.astype(jnp.float32).reshape(3, 3, Cmid, Cout)  # HWIO
    h = lax.conv_general_dilated(xb, w1, (1, 1), ((1, 1), (1, 1)),
                                 dimension_numbers=("NHWC", "HWIO", "NHWC"),
                                 precision=lax.Precision.HIGHEST)
    h = jnp.maximum(h + b1_k.reshape(1, 1, 1, Cmid), 0.0)
    h = h.astype(jnp.bfloat16).astype(jnp.float32)
    y = lax.conv_general_dilated(h, w2, (1, 1), ((1, 1), (1, 1)),
                                 dimension_numbers=("NHWC", "HWIO", "NHWC"),
                                 precision=lax.Precision.HIGHEST)
    y = jnp.maximum(y + b2_k.reshape(1, 1, 1, Cout), 0.0)
    return jnp.transpose(y, (0, 3, 1, 2))


if __name__ == "__main__":
    # Small shapes consistent with DoubleConv(in_channels=4, out_channels=8).
    N, Cin, H, W = 2, 4, 16, 16
    Cout = 8
    Cmid = Cout  # DoubleConv default: mid_channels = out_channels

    key = jax.random.PRNGKey(0)
    kx, kp = jax.random.split(key)
    x = jax.random.normal(kx, (N, Cin, H, W), jnp.float32)   # NCHW like PyTorch

    params = init_torch_params(kp, Cin, Cmid, Cout)
    w1_k, b1_k, w2_k, b2_k = fold_for_kernel(params)

    out = double_conv_pallas_nchw(x, w1_k, b1_k, w2_k, b2_k)
    out = jax.block_until_ready(out)
    assert out.shape == (N, Cout, H, W)
    out_f32 = out.astype(jnp.float32)

    ref_bf = jax.block_until_ready(reference_bf16(x, w1_k, b1_k, w2_k, b2_k))
    ref_bf_q = ref_bf.astype(jnp.bfloat16).astype(jnp.float32)   # kernel also emits bf16
    ref_f32 = jax.block_until_ready(reference_f32(x, params))

    err_bf = float(jnp.max(jnp.abs(out_f32 - ref_bf_q)))   # kernel structure vs bf16-exact ref
    err_f32 = float(jnp.max(jnp.abs(out_f32 - ref_f32)))   # deviation from pure-f32 semantics
    assert err_bf < 1e-1, f"mismatch vs bf16-exact reference: {err_bf}"
    assert err_f32 < 3e-1, f"mismatch vs f32 reference: {err_f32}"
    print("KERNEL_OK")
</pallas_src>

<mosaic_0001>
module attributes {stable_mosaic.version = 11 : i64} {
  func.func @_double_conv_kernel(%arg0: i32, %arg1: i32, %arg2: memref<1x16x16x4xbf16, #tpu.memory_space<vmem>>, %arg3: memref<3x12x8xbf16, #tpu.memory_space<vmem>>, %arg4: memref<1x8xf32, #tpu.memory_space<vmem>>, %arg5: memref<3x24x8xbf16, #tpu.memory_space<vmem>>, %arg6: memref<1x8xf32, #tpu.memory_space<vmem>>, %arg7: memref<1x8x256xbf16, #tpu.memory_space<vmem>>, %arg8: memref<20x18x4xbf16, #tpu.memory_space<vmem>>, %arg9: memref<18x18x8xbf16, #tpu.memory_space<vmem>>) attributes {dimension_semantics = [#tpu.dimension_semantics<parallel>, #tpu.dimension_semantics<arbitrary>], iteration_bounds = array<i64: 2, 1>, scalar_prefetch = 0 : i64, scratch_operands = 2 : i64, tpu.core_type = #tpu.core_type<tc>, window_params = [{transform_indices = @transform_0, window_bounds = array<i64: 1, 16, 16, 4>}, {pipeline_mode = #tpu.pipeline_mode<synchronous>, transform_indices = @transform_1, window_bounds = array<i64: 3, 12, 8>}, {pipeline_mode = #tpu.pipeline_mode<synchronous>, transform_indices = @transform_2, window_bounds = array<i64: 1, 8>}, {pipeline_mode = #tpu.pipeline_mode<synchronous>, transform_indices = @transform_3, window_bounds = array<i64: 3, 24, 8>}, {pipeline_mode = #tpu.pipeline_mode<synchronous>, transform_indices = @transform_4, window_bounds = array<i64: 1, 8>}, {transform_indices = @transform_5, window_bounds = array<i64: 1, 8, 256>}]} {
    %c0_i32 = arith.constant 0 : i32
    %0 = arith.cmpi eq, %arg1, %c0_i32 : i32
    %1 = arith.extui %0 : i1 to i32
    %c0_i32_0 = arith.constant 0 : i32
    %2 = arith.cmpi ne, %1, %c0_i32_0 : i32
    scf.if %2 {
      %cst_74 = arith.constant 0.000000e+00 : bf16
      %133 = vector.broadcast %cst_74 : bf16 to vector<2x18x4xbf16>
      %c0_75 = arith.constant 0 : index
      %c0_76 = arith.constant 0 : index
      %c0_77 = arith.constant 0 : index
      %134 = vector.load %arg8[%c0_75, %c0_76, %c0_77] : memref<20x18x4xbf16, #tpu.memory_space<vmem>>, vector<2x18x4xbf16>
      tpu.vector_store %arg8[%c0_75, %c0_76, %c0_77], %133 {strides = array<i32>} : memref<20x18x4xbf16, #tpu.memory_space<vmem>>, vector<2x18x4xbf16>,
      %c18 = arith.constant 18 : index
      %c0_78 = arith.constant 0 : index
      %c0_79 = arith.constant 0 : index
      %135 = vector.load %arg8[%c18, %c0_78, %c0_79] : memref<20x18x4xbf16, #tpu.memory_space<vmem>>, vector<2x18x4xbf16>
      tpu.vector_store %arg8[%c18, %c0_78, %c0_79], %133 {strides = array<i32>} : memref<20x18x4xbf16, #tpu.memory_space<vmem>>, vector<2x18x4xbf16>,
      %cst_80 = arith.constant 0.000000e+00 : bf16
      %136 = vector.broadcast %cst_80 : bf16 to vector<20x1x4xbf16>
      %c0_81 = arith.constant 0 : index
      %c0_82 = arith.constant 0 : index
      %c0_83 = arith.constant 0 : index
      %137 = vector.load %arg8[%c0_81, %c0_82, %c0_83] : memref<20x18x4xbf16, #tpu.memory_space<vmem>>, vector<20x1x4xbf16>
      tpu.vector_store %arg8[%c0_81, %c0_82, %c0_83], %136 {strides = array<i32>} : memref<20x18x4xbf16, #tpu.memory_space<vmem>>, vector<20x1x4xbf16>,
      %c0_84 = arith.constant 0 : index
      %c17 = arith.constant 17 : index
      %c0_85 = arith.constant 0 : index
      %138 = vector.load %arg8[%c0_84, %c17, %c0_85] : memref<20x18x4xbf16, #tpu.memory_space<vmem>>, vector<20x1x4xbf16>
      tpu.vector_store %arg8[%c0_84, %c17, %c0_85], %136 {strides = array<i32>} : memref<20x18x4xbf16, #tpu.memory_space<vmem>>, vector<20x1x4xbf16>,
      %c0_86 = arith.constant 0 : index
      %c0_87 = arith.constant 0 : index
      %c0_88 = arith.constant 0 : index
      %c0_89 = arith.constant 0 : index
      %139 = vector.load %arg2[%c0_86, %c0_87, %c0_88, %c0_89] : memref<1x16x16x4xbf16, #tpu.memory_space<vmem>>, vector<1x16x16x4xbf16>
      %140 = vector.shape_cast %139 : vector<1x16x16x4xbf16> to vector<16x16x4xbf16>
      %c2_90 = arith.constant 2 : index
      %c1_91 = arith.constant 1 : index
      %c0_92 = arith.constant 0 : index
      %141 = vector.load %arg8[%c2_90, %c1_91, %c0_92] : memref<20x18x4xbf16, #tpu.memory_space<vmem>>, vector<16x16x4xbf16>
      tpu.vector_store %arg8[%c2_90, %c1_91, %c0_92], %140 {strides = array<i32>} : memref<20x18x4xbf16, #tpu.memory_space<vmem>>, vector<16x16x4xbf16>,
      %cst_93 = arith.constant 0.000000e+00 : bf16
      %142 = vector.broadcast %cst_93 : bf16 to vector<18x1x8xbf16>
      %c0_94 = arith.constant 0 : index
      %c0_95 = arith.constant 0 : index
      %c0_96 = arith.constant 0 : index
      %143 = vector.load %arg9[%c0_94, %c0_95, %c0_96] : memref<18x18x8xbf16, #tpu.memory_space<vmem>>, vector<18x1x8xbf16>
      tpu.vector_store %arg9[%c0_94, %c0_95, %c0_96], %142 {strides = array<i32>} : memref<18x18x8xbf16, #tpu.memory_space<vmem>>, vector<18x1x8xbf16>,
      %c0_97 = arith.constant 0 : index
      %c17_98 = arith.constant 17 : index
      %c0_99 = arith.constant 0 : index
      %144 = vector.load %arg9[%c0_97, %c17_98, %c0_99] : memref<18x18x8xbf16, #tpu.memory_space<vmem>>, vector<18x1x8xbf16>
      tpu.vector_store %arg9[%c0_97, %c17_98, %c0_99], %142 {strides = array<i32>} : memref<18x18x8xbf16, #tpu.memory_space<vmem>>, vector<18x1x8xbf16>,
    } else {
    }
    %c16_i32 = arith.constant 16 : i32
    %3 = arith.muli %arg1, %c16_i32 : i32
    %c0 = arith.constant 0 : index
    %c0_1 = arith.constant 0 : index
    %c0_2 = arith.constant 0 : index
    %4 = vector.load %arg3[%c0, %c0_1, %c0_2] : memref<3x12x8xbf16, #tpu.memory_space<vmem>>, vector<1x12x8xbf16>
    %5 = vector.shape_cast %4 : vector<1x12x8xbf16> to vector<12x8xbf16>
    %c1 = arith.constant 1 : index
    %c0_3 = arith.constant 0 : index
    %c0_4 = arith.constant 0 : index
    %6 = vector.load %arg3[%c1, %c0_3, %c0_4] : memref<3x12x8xbf16, #tpu.memory_space<vmem>>, vector<1x12x8xbf16>
    %7 = vector.shape_cast %6 : vector<1x12x8xbf16> to vector<12x8xbf16>
    %c2 = arith.constant 2 : index
    %c0_5 = arith.constant 0 : index
    %c0_6 = arith.constant 0 : index
    %8 = vector.load %arg3[%c2, %c0_5, %c0_6] : memref<3x12x8xbf16, #tpu.memory_space<vmem>>, vector<1x12x8xbf16>
    %9 = vector.shape_cast %8 : vector<1x12x8xbf16> to vector<12x8xbf16>
    %c0_7 = arith.constant 0 : index
    %c0_8 = arith.constant 0 : index
    %c0_9 = arith.constant 0 : index
    %10 = vector.load %arg5[%c0_7, %c0_8, %c0_9] : memref<3x24x8xbf16, #tpu.memory_space<vmem>>, vector<1x24x8xbf16>
    %11 = vector.shape_cast %10 : vector<1x24x8xbf16> to vector<24x8xbf16>
    %c1_10 = arith.constant 1 : index
    %c0_11 = arith.constant 0 : index
    %c0_12 = arith.constant 0 : index
    %12 = vector.load %arg5[%c1_10, %c0_11, %c0_12] : memref<3x24x8xbf16, #tpu.memory_space<vmem>>, vector<1x24x8xbf16>
    %13 = vector.shape_cast %12 : vector<1x24x8xbf16> to vector<24x8xbf16>
    %c2_13 = arith.constant 2 : index
    %c0_14 = arith.constant 0 : index
    %c0_15 = arith.constant 0 : index
    %14 = vector.load %arg5[%c2_13, %c0_14, %c0_15] : memref<3x24x8xbf16, #tpu.memory_space<vmem>>, vector<1x24x8xbf16>
    %15 = vector.shape_cast %14 : vector<1x24x8xbf16> to vector<24x8xbf16>
    %c0_16 = arith.constant 0 : index
    %c0_17 = arith.constant 0 : index
    %16 = vector.load %arg4[%c0_16, %c0_17] : memref<1x8xf32, #tpu.memory_space<vmem>>, vector<1x8xf32>
    %c0_18 = arith.constant 0 : index
    %c0_19 = arith.constant 0 : index
    %17 = vector.load %arg6[%c0_18, %c0_19] : memref<1x8xf32, #tpu.memory_space<vmem>>, vector<1x8xf32>
    %c0_i32_20 = arith.constant 0 : i32
    %18 = arith.addi %3, %c0_i32_20 : i32
    %c0_i32_21 = arith.constant 0 : i32
    %19 = arith.addi %18, %c0_i32_21 : i32
    %20 = arith.index_cast %19 : i32 to index
    %c0_22 = arith.constant 0 : index
    %c0_23 = arith.constant 0 : index
    %21 = vector.load %arg8[%20, %c0_22, %c0_23] : memref<20x18x4xbf16, #tpu.memory_space<vmem>>, vector<16x18x4xbf16>
    %22 = vector.extract_strided_slice %21 {offsets = [0, 0, 0], sizes = [16, 16, 4], strides = [1, 1, 1]} : vector<16x18x4xbf16> to vector<16x16x4xbf16>
    %23 = vector.extract_strided_slice %21 {offsets = [0, 1, 0], sizes = [16, 16, 4], strides = [1, 1, 1]} : vector<16x18x4xbf16> to vector<16x16x4xbf16>
    %24 = vector.extract_strided_slice %21 {offsets = [0, 2, 0], sizes = [16, 16, 4], strides = [1, 1, 1]} : vector<16x18x4xbf16> to vector<16x16x4xbf16>
    %25 = tpu.concatenate %22, %23, %24 in 2 : vector<16x16x4xbf16>, vector<16x16x4xbf16>, vector<16x16x4xbf16> -> vector<16x16x12xbf16>
    %26 = vector.shape_cast %25 : vector<16x16x12xbf16> to vector<256x12xbf16>
    %cst = arith.constant dense<0.000000e+00> : vector<256x8xf32>
    %27 = tpu.matmul %26, %5, %cst {dimension_numbers = #tpu.dot_dimension_numbers<[1], [0], [0], [1], [0, 0, 1, 1], [], []>} : vector<256x12xbf16>, vector<12x8xbf16>, vector<256x8xf32> -> vector<256x8xf32>
    %c0_i32_24 = arith.constant 0 : i32
    %28 = arith.addi %3, %c0_i32_24 : i32
    %c1_i32 = arith.constant 1 : i32
    %29 = arith.addi %28, %c1_i32 : i32
    %30 = arith.index_cast %29 : i32 to index
    %c0_25 = arith.constant 0 : index
    %c0_26 = arith.constant 0 : index
    %31 = vector.load %arg8[%30, %c0_25, %c0_26] : memref<20x18x4xbf16, #tpu.memory_space<vmem>>, vector<16x18x4xbf16>
    %32 = vector.extract_strided_slice %31 {offsets = [0, 0, 0], sizes = [16, 16, 4], strides = [1, 1, 1]} : vector<16x18x4xbf16> to vector<16x16x4xbf16>
    %33 = vector.extract_strided_slice %31 {offsets = [0, 1, 0], sizes = [16, 16, 4], strides = [1, 1, 1]} : vector<16x18x4xbf16> to vector<16x16x4xbf16>
    %34 = vector.extract_strided_slice %31 {offsets = [0, 2, 0], sizes = [16, 16, 4], strides = [1, 1, 1]} : vector<16x18x4xbf16> to vector<16x16x4xbf16>
    %35 = tpu.concatenate %32, %33, %34 in 2 : vector<16x16x4xbf16>, vector<16x16x4xbf16>, vector<16x16x4xbf16> -> vector<16x16x12xbf16>
    %36 = vector.shape_cast %35 : vector<16x16x12xbf16> to vector<256x12xbf16>
    %cst_27 = arith.constant dense<0.000000e+00> : vector<256x8xf32>
    %37 = tpu.matmul %36, %7, %cst_27 {dimension_numbers = #tpu.dot_dimension_numbers<[1], [0], [0], [1], [0, 0, 1, 1], [], []>} : vector<256x12xbf16>, vector<12x8xbf16>, vector<256x8xf32> -> vector<256x8xf32>
    %38 = arith.addf %27, %37 : vector<256x8xf32>
    %c0_i32_28 = arith.constant 0 : i32
    %39 = arith.addi %3, %c0_i32_28 : i32
    %c2_i32 = arith.constant 2 : i32
    %40 = arith.addi %39, %c2_i32 : i32
    %41 = arith.index_cast %40 : i32 to index
    %c0_29 = arith.constant 0 : index
    %c0_30 = arith.constant 0 : index
    %42 = vector.load %arg8[%41, %c0_29, %c0_30] : memref<20x18x4xbf16, #tpu.memory_space<vmem>>, vector<16x18x4xbf16>
    %43 = vector.extract_strided_slice %42 {offsets = [0, 0, 0], sizes = [16, 16, 4], strides = [1, 1, 1]} : vector<16x18x4xbf16> to vector<16x16x4xbf16>
    %44 = vector.extract_strided_slice %42 {offsets = [0, 1, 0], sizes = [16, 16, 4], strides = [1, 1, 1]} : vector<16x18x4xbf16> to vector<16x16x4xbf16>
    %45 = vector.extract_strided_slice %42 {offsets = [0, 2, 0], sizes = [16, 16, 4], strides = [1, 1, 1]} : vector<16x18x4xbf16> to vector<16x16x4xbf16>
    %46 = tpu.concatenate %43, %44, %45 in 2 : vector<16x16x4xbf16>, vector<16x16x4xbf16>, vector<16x16x4xbf16> -> vector<16x16x12xbf16>
    %47 = vector.shape_cast %46 : vector<16x16x12xbf16> to vector<256x12xbf16>
    %cst_31 = arith.constant dense<0.000000e+00> : vector<256x8xf32>
    %48 = tpu.matmul %47, %9, %cst_31 {dimension_numbers = #tpu.dot_dimension_numbers<[1], [0], [0], [1], [0, 0, 1, 1], [], []>} : vector<256x12xbf16>, vector<12x8xbf16>, vector<256x8xf32> -> vector<256x8xf32>
    %49 = arith.addf %38, %48 : vector<256x8xf32>
    %50 = vector.broadcast %16 : vector<1x8xf32> to vector<256x8xf32>
    %51 = arith.addf %49, %50 : vector<256x8xf32>
    %cst_32 = arith.constant 0.000000e+00 : f32
    %52 = vector.broadcast %cst_32 : f32 to vector<256x8xf32>
    %53 = arith.maximumf %51, %52 : vector<256x8xf32>
    %54 = vector.shape_cast %53 : vector<256x8xf32> to vector<16x16x8xf32>
    %55 = arith.truncf %54 : vector<16x16x8xf32> to vector<16x16x8xbf16>
    %c0_33 = arith.constant 0 : index
    %c1_34 = arith.constant 1 : index
    %c0_35 = arith.constant 0 : index
    %56 = vector.load %arg9[%c0_33, %c1_34, %c0_35] : memref<18x18x8xbf16, #tpu.memory_space<vmem>>, vector<16x16x8xbf16>
    tpu.vector_store %arg9[%c0_33, %c1_34, %c0_35], %55 {strides = array<i32>} : memref<18x18x8xbf16, #tpu.memory_space<vmem>>, vector<16x16x8xbf16>,
    %c16_i32_36 = arith.constant 16 : i32
    %57 = arith.addi %3, %c16_i32_36 : i32
    %c0_i32_37 = arith.constant 0 : i32
    %58 = arith.addi %57, %c0_i32_37 : i32
    %59 = arith.index_cast %58 : i32 to index
    %c0_38 = arith.constant 0 : index
    %c0_39 = arith.constant 0 : index
    %60 = vector.load %arg8[%59, %c0_38, %c0_39] : memref<20x18x4xbf16, #tpu.memory_space<vmem>>, vector<2x18x4xbf16>
    %61 = vector.extract_strided_slice %60 {offsets = [0, 0, 0], sizes = [2, 16, 4], strides = [1, 1, 1]} : vector<2x18x4xbf16> to vector<2x16x4xbf16>
    %62 = vector.extract_strided_slice %60 {offsets = [0, 1, 0], sizes = [2, 16, 4], strides = [1, 1, 1]} : vector<2x18x4xbf16> to vector<2x16x4xbf16>
    %63 = vector.extract_strided_slice %60 {offsets = [0, 2, 0], sizes = [2, 16, 4], strides = [1, 1, 1]} : vector<2x18x4xbf16> to vector<2x16x4xbf16>
    %64 = tpu.concatenate %61, %62, %63 in 2 : vector<2x16x4xbf16>, vector<2x16x4xbf16>, vector<2x16x4xbf16> -> vector<2x16x12xbf16>
    %65 = vector.shape_cast %64 : vector<2x16x12xbf16> to vector<32x12xbf16>
    %cst_40 = arith.constant dense<0.000000e+00> : vector<32x8xf32>
    %66 = tpu.matmul %65, %5, %cst_40 {dimension_numbers = #tpu.dot_dimension_numbers<[1], [0], [0], [1], [0, 0, 1, 1], [], []>} : vector<32x12xbf16>, vector<12x8xbf16>, vector<32x8xf32> -> vector<32x8xf32>
    %c16_i32_41 = arith.constant 16 : i32
    %67 = arith.addi %3, %c16_i32_41 : i32
    %c1_i32_42 = arith.constant 1 : i32
    %68 = arith.addi %67, %c1_i32_42 : i32
    %69 = arith.index_cast %68 : i32 to index
    %c0_43 = arith.constant 0 : index
    %c0_44 = arith.constant 0 : index
    %70 = vector.load %arg8[%69, %c0_43, %c0_44] : memref<20x18x4xbf16, #tpu.memory_space<vmem>>, vector<2x18x4xbf16>
    %71 = vector.extract_strided_slice %70 {offsets = [0, 0, 0], sizes = [2, 16, 4], strides = [1, 1, 1]} : vector<2x18x4xbf16> to vector<2x16x4xbf16>
    %72 = vector.extract_strided_slice %70 {offsets = [0, 1, 0], sizes = [2, 16, 4], strides = [1, 1, 1]} : vector<2x18x4xbf16> to vector<2x16x4xbf16>
    %73 = vector.extract_strided_slice %70 {offsets = [0, 2, 0], sizes = [2, 16, 4], strides = [1, 1, 1]} : vector<2x18x4xbf16> to vector<2x16x4xbf16>
    %74 = tpu.concatenate %71, %72, %73 in 2 : vector<2x16x4xbf16>, vector<2x16x4xbf16>, vector<2x16x4xbf16> -> vector<2x16x12xbf16>
    %75 = vector.shape_cast %74 : vector<2x16x12xbf16> to vector<32x12xbf16>
    %cst_45 = arith.constant dense<0.000000e+00> : vector<32x8xf32>
    %76 = tpu.matmul %75, %7, %cst_45 {dimension_numbers = #tpu.dot_dimension_numbers<[1], [0], [0], [1], [0, 0, 1, 1], [], []>} : vector<32x12xbf16>, vector<12x8xbf16>, vector<32x8xf32> -> vector<32x8xf32>
    %77 = arith.addf %66, %76 : vector<32x8xf32>
    %c16_i32_46 = arith.constant 16 : i32
    %78 = arith.addi %3, %c16_i32_46 : i32
    %c2_i32_47 = arith.constant 2 : i32
    %79 = arith.addi %78, %c2_i32_47 : i32
    %80 = arith.index_cast %79 : i32 to index
    %c0_48 = arith.constant 0 : index
    %c0_49 = arith.constant 0 : index
    %81 = vector.load %arg8[%80, %c0_48, %c0_49] : memref<20x18x4xbf16, #tpu.memory_space<vmem>>, vector<2x18x4xbf16>
    %82 = vector.extract_strided_slice %81 {offsets = [0, 0, 0], sizes = [2, 16, 4], strides = [1, 1, 1]} : vector<2x18x4xbf16> to vector<2x16x4xbf16>
    %83 = vector.extract_strided_slice %81 {offsets = [0, 1, 0], sizes = [2, 16, 4], strides = [1, 1, 1]} : vector<2x18x4xbf16> to vector<2x16x4xbf16>
    %84 = vector.extract_strided_slice %81 {offsets = [0, 2, 0], sizes = [2, 16, 4], strides = [1, 1, 1]} : vector<2x18x4xbf16> to vector<2x16x4xbf16>
    %85 = tpu.concatenate %82, %83, %84 in 2 : vector<2x16x4xbf16>, vector<2x16x4xbf16>, vector<2x16x4xbf16> -> vector<2x16x12xbf16>
    %86 = vector.shape_cast %85 : vector<2x16x12xbf16> to vector<32x12xbf16>
    %cst_50 = arith.constant dense<0.000000e+00> : vector<32x8xf32>
    %87 = tpu.matmul %86, %9, %cst_50 {dimension_numbers = #tpu.dot_dimension_numbers<[1], [0], [0], [1], [0, 0, 1, 1], [], []>} : vector<32x12xbf16>, vector<12x8xbf16>, vector<32x8xf32> -> vector<32x8xf32>
    %88 = arith.addf %77, %87 : vector<32x8xf32>
    %89 = vector.broadcast %16 : vector<1x8xf32> to vector<32x8xf32>
    %90 = arith.addf %88, %89 : vector<32x8xf32>
    %cst_51 = arith.constant 0.000000e+00 : f32
    %91 = vector.broadcast %cst_51 : f32 to vector<32x8xf32>
    %92 = arith.maximumf %90, %91 : vector<32x8xf32>
    %93 = vector.shape_cast %92 : vector<32x8xf32> to vector<2x16x8xf32>
    %94 = arith.truncf %93 : vector<2x16x8xf32> to vector<2x16x8xbf16>
    %c16 = arith.constant 16 : index
    %c1_52 = arith.constant 1 : index
    %c0_53 = arith.constant 0 : index
    %95 = vector.load %arg9[%c16, %c1_52, %c0_53] : memref<18x18x8xbf16, #tpu.memory_space<vmem>>, vector<2x16x8xbf16>
    tpu.vector_store %arg9[%c16, %c1_52, %c0_53], %94 {strides = array<i32>} : memref<18x18x8xbf16, #tpu.memory_space<vmem>>, vector<2x16x8xbf16>,
    %c0_i32_54 = arith.constant 0 : i32
    %96 = arith.cmpi eq, %arg1, %c0_i32_54 : i32
    %97 = arith.extui %96 : i1 to i32
    %c0_i32_55 = arith.constant 0 : i32
    %98 = arith.cmpi ne, %97, %c0_i32_55 : i32
    scf.if %98 {
      %cst_74 = arith.constant 0.000000e+00 : bf16
      %133 = vector.broadcast %cst_74 : bf16 to vector<1x16x8xbf16>
      %c0_75 = arith.constant 0 : index
      %c1_76 = arith.constant 1 : index
      %c0_77 = arith.constant 0 : index
      %134 = vector.load %arg9[%c0_75, %c1_76, %c0_77] : memref<18x18x8xbf16, #tpu.memory_space<vmem>>, vector<1x16x8xbf16>
      tpu.vector_store %arg9[%c0_75, %c1_76, %c0_77], %133 {strides = array<i32>} : memref<18x18x8xbf16, #tpu.memory_space<vmem>>, vector<1x16x8xbf16>,
    } else {
    }
    %c0_i32_56 = arith.constant 0 : i32
    %99 = arith.cmpi eq, %arg1, %c0_i32_56 : i32
    %100 = arith.extui %99 : i1 to i32
    %c0_i32_57 = arith.constant 0 : i32
    %101 = arith.cmpi ne, %100, %c0_i32_57 : i32
    scf.if %101 {
      %cst_74 = arith.constant 0.000000e+00 : bf16
      %133 = vector.broadcast %cst_74 : bf16 to vector<1x16x8xbf16>
      %c17 = arith.constant 17 : index
      %c1_75 = arith.constant 1 : index
      %c0_76 = arith.constant 0 : index
      %134 = vector.load %arg9[%c17, %c1_75, %c0_76] : memref<18x18x8xbf16, #tpu.memory_space<vmem>>, vector<1x16x8xbf16>
      tpu.vector_store %arg9[%c17, %c1_75, %c0_76], %133 {strides = array<i32>} : memref<18x18x8xbf16, #tpu.memory_space<vmem>>, vector<1x16x8xbf16>,
    } else {
    }
    %c0_58 = arith.constant 0 : index
    %c0_59 = arith.constant 0 : index
    %c0_60 = arith.constant 0 : index
    %102 = vector.load %arg9[%c0_58, %c0_59, %c0_60] : memref<18x18x8xbf16, #tpu.memory_space<vmem>>, vector<16x18x8xbf16>
    %103 = vector.extract_strided_slice %102 {offsets = [0, 0, 0], sizes = [16, 16, 8], strides = [1, 1, 1]} : vector<16x18x8xbf16> to vector<16x16x8xbf16>
    %104 = vector.extract_strided_slice %102 {offsets = [0, 1, 0], sizes = [16, 16, 8], strides = [1, 1, 1]} : vector<16x18x8xbf16> to vector<16x16x8xbf16>
    %105 = vector.extract_strided_slice %102 {offsets = [0, 2, 0], sizes = [16, 16, 8], strides = [1, 1, 1]} : vector<16x18x8xbf16> to vector<16x16x8xbf16>
    %106 = tpu.concatenate %103, %104, %105 in 2 : vector<16x16x8xbf16>, vector<16x16x8xbf16>, vector<16x16x8xbf16> -> vector<16x16x24xbf16>
    %107 = vector.shape_cast %106 : vector<16x16x24xbf16> to vector<256x24xbf16>
    %cst_61 = arith.constant dense<0.000000e+00> : vector<256x8xf32>
    %108 = tpu.matmul %107, %11, %cst_61 {dimension_numbers = #tpu.dot_dimension_numbers<[1], [0], [0], [1], [0, 0, 1, 1], [], []>} : vector<256x24xbf16>, vector<24x8xbf16>, vector<256x8xf32> -> vector<256x8xf32>
    %c1_62 = arith.constant 1 : index
    %c0_63 = arith.constant 0 : index
    %c0_64 = arith.constant 0 : index
    %109 = vector.load %arg9[%c1_62, %c0_63, %c0_64] : memref<18x18x8xbf16, #tpu.memory_space<vmem>>, vector<16x18x8xbf16>
    %110 = vector.extract_strided_slice %109 {offsets = [0, 0, 0], sizes = [16, 16, 8], strides = [1, 1, 1]} : vector<16x18x8xbf16> to vector<16x16x8xbf16>
    %111 = vector.extract_strided_slice %109 {offsets = [0, 1, 0], sizes = [16, 16, 8], strides = [1, 1, 1]} : vector<16x18x8xbf16> to vector<16x16x8xbf16>
    %112 = vector.extract_strided_slice %109 {offsets = [0, 2, 0], sizes = [16, 16, 8], strides = [1, 1, 1]} : vector<16x18x8xbf16> to vector<16x16x8xbf16>
    %113 = tpu.concatenate %110, %111, %112 in 2 : vector<16x16x8xbf16>, vector<16x16x8xbf16>, vector<16x16x8xbf16> -> vector<16x16x24xbf16>
    %114 = vector.shape_cast %113 : vector<16x16x24xbf16> to vector<256x24xbf16>
    %cst_65 = arith.constant dense<0.000000e+00> : vector<256x8xf32>
    %115 = tpu.matmul %114, %13, %cst_65 {dimension_numbers = #tpu.dot_dimension_numbers<[1], [0], [0], [1], [0, 0, 1, 1], [], []>} : vector<256x24xbf16>, vector<24x8xbf16>, vector<256x8xf32> -> vector<256x8xf32>
    %116 = arith.addf %108, %115 : vector<256x8xf32>
    %c2_66 = arith.constant 2 : index
    %c0_67 = arith.constant 0 : index
    %c0_68 = arith.constant 0 : index
    %117 = vector.load %arg9[%c2_66, %c0_67, %c0_68] : memref<18x18x8xbf16, #tpu.memory_space<vmem>>, vector<16x18x8xbf16>
    %118 = vector.extract_strided_slice %117 {offsets = [0, 0, 0], sizes = [16, 16, 8], strides = [1, 1, 1]} : vector<16x18x8xbf16> to vector<16x16x8xbf16>
    %119 = vector.extract_strided_slice %117 {offsets = [0, 1, 0], sizes = [16, 16, 8], strides = [1, 1, 1]} : vector<16x18x8xbf16> to vector<16x16x8xbf16>
    %120 = vector.extract_strided_slice %117 {offsets = [0, 2, 0], sizes = [16, 16, 8], strides = [1, 1, 1]} : vector<16x18x8xbf16> to vector<16x16x8xbf16>
    %121 = tpu.concatenate %118, %119, %120 in 2 : vector<16x16x8xbf16>, vector<16x16x8xbf16>, vector<16x16x8xbf16> -> vector<16x16x24xbf16>
    %122 = vector.shape_cast %121 : vector<16x16x24xbf16> to vector<256x24xbf16>
    %cst_69 = arith.constant dense<0.000000e+00> : vector<256x8xf32>
    %123 = tpu.matmul %122, %15, %cst_69 {dimension_numbers = #tpu.dot_dimension_numbers<[1], [0], [0], [1], [0, 0, 1, 1], [], []>} : vector<256x24xbf16>, vector<24x8xbf16>, vector<256x8xf32> -> vector<256x8xf32>
    %124 = arith.addf %116, %123 : vector<256x8xf32>
    %125 = vector.broadcast %17 : vector<1x8xf32> to vector<256x8xf32>
    %126 = arith.addf %124, %125 : vector<256x8xf32>
    %cst_70 = arith.constant 0.000000e+00 : f32
    %127 = vector.broadcast %cst_70 : f32 to vector<256x8xf32>
    %128 = arith.maximumf %126, %127 : vector<256x8xf32>
    %129 = tpu.transpose %128, [1, 0] : vector<256x8xf32> -> vector<8x256xf32>
    %130 = arith.truncf %129 : vector<8x256xf32> to vector<8x256xbf16>
    %131 = vector.shape_cast %130 : vector<8x256xbf16> to vector<1x8x256xbf16>
    %c0_71 = arith.constant 0 : index
    %c0_72 = arith.constant 0 : index
    %c0_73 = arith.constant 0 : index
    %132 = vector.load %arg7[%c0_71, %c0_72, %c0_73] : memref<1x8x256xbf16, #tpu.memory_space<vmem>>, vector<1x8x256xbf16>
    tpu.vector_store %arg7[%c0_71, %c0_72, %c0_73], %131 {strides = array<i32>} : memref<1x8x256xbf16, #tpu.memory_space<vmem>>, vector<1x8x256xbf16>,
    return
  }
  func.func @transform_0(%arg0: i32, %arg1: i32) -> (i32, i32, i32, i32) {
    %c0_i32 = arith.constant 0 : i32
    %c0_i32_0 = arith.constant 0 : i32
    %c0_i32_1 = arith.constant 0 : i32
    %c0_i32_2 = arith.constant 0 : i32
    return %arg0, %c0_i32, %c0_i32_0, %c0_i32_1 : i32, i32, i32, i32
  }
  func.func @transform_1(%arg0: i32, %arg1: i32) -> (i32, i32, i32) {
    %c0_i32 = arith.constant 0 : i32
    %c0_i32_0 = arith.constant 0 : i32
    %c0_i32_1 = arith.constant 0 : i32
    %c0_i32_2 = arith.constant 0 : i32
    return %c0_i32, %c0_i32_0, %c0_i32_1 : i32, i32, i32
  }
  func.func @transform_2(%arg0: i32, %arg1: i32) -> (i32, i32) {
    %c0_i32 = arith.constant 0 : i32
    %c0_i32_0 = arith.constant 0 : i32
    %c0_i32_1 = arith.constant 0 : i32
    return %c0_i32, %c0_i32_0 : i32, i32
  }
  func.func @transform_3(%arg0: i32, %arg1: i32) -> (i32, i32, i32) {
    %c0_i32 = arith.constant 0 : i32
    %c0_i32_0 = arith.constant 0 : i32
    %c0_i32_1 = arith.constant 0 : i32
    %c0_i32_2 = arith.constant 0 : i32
    return %c0_i32, %c0_i32_0, %c0_i32_1 : i32, i32, i32
  }
  func.func @transform_4(%arg0: i32, %arg1: i32) -> (i32, i32) {
    %c0_i32 = arith.constant 0 : i32
    %c0_i32_0 = arith.constant 0 : i32
    %c0_i32_1 = arith.constant 0 : i32
    return %c0_i32, %c0_i32_0 : i32, i32
  }
  func.func @transform_5(%arg0: i32, %arg1: i32) -> (i32, i32, i32) {
    %c0_i32 = arith.constant 0 : i32
    %c0_i32_0 = arith.constant 0 : i32
    return %arg0, %c0_i32, %arg1 : i32, i32, i32
  }
}

</mosaic_0001>

<llo_original>
// kernel: tpu_custom_call.1
$region0: #{tpu_custom_call.1}
  #allocation0 [shape = 'u32[]', space=smem, size = 0x4, offset = 0x4, fixed_abs, tag = 'smem constant byte address 0x4 - core index']
  #allocation1 [shape = 'u32[144,128]{1,0:T(1,128)}', space=vmem, size = 0x12000, scoped, tag = 'internal scratch']
  #allocation2 [shape = 'bf16[20,18,4]{2,1,0:T(8,128)(2,1)}', space=vmem, size = 0x1e000, scoped, tag = 'scratch operand']
  #allocation3 [shape = 'bf16[18,18,8]{2,1,0:T(8,128)(2,1)}', space=vmem, size = 0x1b000, scoped, tag = 'scratch operand']
  %s0 = inlined_call_operand.vmem [shape: bf16[2,16,16,4], index: 0, kind: input, shape index: {}]
  %s1 = inlined_call_operand.vmem [shape: bf16[3,12,8], index: 1, kind: input, shape index: {}]
  %s2 = inlined_call_operand.vmem [shape: f32[1,8], index: 2, kind: input, shape index: {}]
  %s3 = inlined_call_operand.vmem [shape: bf16[3,24,8], index: 3, kind: input, shape index: {}]
  %s4 = inlined_call_operand.vmem [shape: f32[1,8], index: 4, kind: input, shape index: {}]
  %s5 = inlined_call_operand.hbm [shape: bf16[2,8,256], index: 5, kind: output, shape index: {}]
  %s6 = sld [smem:[#allocation0]]
  $region61: #{tpu_custom_call.1} parent=0
    _
  %s8 = ssub.s32 1, %s6
  %s9 = scalar_select 0, %s8, %s6
  $region1: #{tpu_custom_call.1} parent=0
    #allocation4 [shape = 'u8[8192]{0}', space=vmem, size = 0x2000, scoped, tag = 'output window, operand 0']
    #allocation5 [shape = 's32[2]{0}', space=sflag, size = 0x8, scoped, tag = 'scoped memory for tpu_custom_call.1']
    %10 = vsyncpa [#allocation5], 0
    %s11 = scalar_lea.sflag [#allocation5], 1
    %12 = vsyncpa %s11, 0
    loop: start=0, step=1, limit=4
    $region2: #{tpu_custom_call.1} parent=1 // loop_pre_header
      _
    $region3: #{tpu_custom_call.1} parent=1 // loop_header
      %s14 = sphi 0, %s18
      %p15 = scmp.ge.s32.totalorder %s14, 4
      %s21 = sphi 0, %s33
      %s22 = sphi 0, %s29
      %s23 = sphi 0, %s21
      %s24 = sphi 0, %s22
      %s25 = sphi 0, %s23
      %s26 = sphi 0, %s24
      %s36 = sphi 0, %s38
      %s39 = sphi 0, %s36
      %s40 = sphi 0, %s39
      %s56 = sphi 0, %s40
      %s60 = sphi 0, %s60
      %s62 = sphi 0, %s60
      %s63 = sphi 0, %s62
      %s77 = sphi 0, %s63
      %s81 = sphi 0, %s81
      %s83 = sphi 0, %s81
      %s84 = sphi 0, %s83
      %s98 = sphi 0, %s84
      %s102 = sphi 0, %s102
      %s104 = sphi 0, %s102
      %s105 = sphi 0, %s104
      %s119 = sphi 0, %s105
      %s123 = sphi 0, %s123
      %s125 = sphi 0, %s123
      %s126 = sphi 0, %s125
      %s140 = sphi 0, %s126
      %s148 = sphi 0, %s150
      %s151 = sphi 0, %s148
      %s152 = sphi 0, %s151
      %s168 = sphi 0, %s152
    $region4: #{tpu_custom_call.1} parent=1 // loop_header_branch
      %17 = sbr.rel (%p15) target = $region8
    $region5: #{tpu_custom_call.1} parent=1 // loop_body
      %s19 = ssub.s32 %s14, 1
      %s20 = ssub.s32 %s14, 2
      %s27 = sadd.s32 1, %s22
      %p28 = scmp.ge.s32.totalorder %s27, 1
      %s29 = scalar_select %p28, 0, %s27
      %s30 = sadd.s32 1, %s21
      %s31 = scalar_select %p28, %s30, %s21
      %p32 = scmp.ge.s32.totalorder %s31, 2
      %s33 = scalar_select %p32, 0, %s31
      %s34 = ssub.s32 %s21, %s33
      %p35 = scmp.eq.s32.totalorder %s34, 0
      %s37 = sadd.s32 %s36, 1
      %s38 = scalar_select %p35, %s36, %s37
      %p41 = pneg %p35
      %p42 = scmp.eq.s32.totalorder %s14, 1
      %p43 = por %p41, %p42
      %p44 = scmp.ne.s32.totalorder %s36, %s39
      %p45 = scmp.eq.s32.totalorder %s14, 0
      %p46 = por %p44, %p45
      %p47 = scmp.ne.s32.totalorder %s36, %s39
      %p48 = scmp.eq.s32.totalorder %s19, 1
      %p49 = por %p47, %p48
      %p50 = scmp.ne.s32.totalorder %s39, %s40
      %p51 = scmp.eq.s32.totalorder %s19, 0
      %p52 = por %p50, %p51
      %p53 = scmp.ne.s32.totalorder %s39, %s40
      %p54 = scmp.eq.s32.totalorder %s20, 1
      %p55 = por %p53, %p54
      %p57 = scmp.ne.s32.totalorder %s40, %s56
      %p58 = scmp.eq.s32.totalorder %s20, 0
      %p59 = por %p57, %p58
      %s61 = sadd.s32 %s60, 1
      %p64 = scmp.eq.s32.totalorder %s14, 1
      %p65 = scmp.ne.s32.totalorder %s60, %s62
      %p66 = scmp.eq.s32.totalorder %s14, 0
      %p67 = por %p65, %p66
      %p68 = scmp.ne.s32.totalorder %s60, %s62
      %p69 = scmp.eq.s32.totalorder %s19, 1
      %p70 = por %p68, %p69
      %p71 = scmp.ne.s32.totalorder %s62, %s63
      %p72 = scmp.eq.s32.totalorder %s19, 0
      %p73 = por %p71, %p72
      %p74 = scmp.ne.s32.totalorder %s62, %s63
      %p75 = scmp.eq.s32.totalorder %s20, 1
      %p76 = por %p74, %p75
      %p78 = scmp.ne.s32.totalorder %s63, %s77
      %p79 = scmp.eq.s32.totalorder %s20, 0
      %p80 = por %p78, %p79
      %s82 = sadd.s32 %s81, 1
      %p85 = scmp.eq.s32.totalorder %s14, 1
      %p86 = scmp.ne.s32.totalorder %s81, %s83
      %p87 = scmp.eq.s32.totalorder %s14, 0
      %p88 = por %p86, %p87
      %p89 = scmp.ne.s32.totalorder %s81, %s83
      %p90 = scmp.eq.s32.totalorder %s19, 1
      %p91 = por %p89, %p90
      %p92 = scmp.ne.s32.totalorder %s83, %s84
      %p93 = scmp.eq.s32.totalorder %s19, 0
      %p94 = por %p92, %p93
      %p95 = scmp.ne.s32.totalorder %s83, %s84
      %p96 = scmp.eq.s32.totalorder %s20, 1
      %p97 = por %p95, %p96
      %p99 = scmp.ne.s32.totalorder %s84, %s98
      %p100 = scmp.eq.s32.totalorder %s20, 0
      %p101 = por %p99, %p100
      %s103 = sadd.s32 %s102, 1
      %p106 = scmp.eq.s32.totalorder %s14, 1
      %p107 = scmp.ne.s32.totalorder %s102, %s104
      %p108 = scmp.eq.s32.totalorder %s14, 0
      %p109 = por %p107, %p108
      %p110 = scmp.ne.s32.totalorder %s102, %s104
      %p111 = scmp.eq.s32.totalorder %s19, 1
      %p112 = por %p110, %p111
      %p113 = scmp.ne.s32.totalorder %s104, %s105
      %p114 = scmp.eq.s32.totalorder %s19, 0
      %p115 = por %p113, %p114
      %p116 = scmp.ne.s32.totalorder %s104, %s105
      %p117 = scmp.eq.s32.totalorder %s20, 1
      %p118 = por %p116, %p117
      %p120 = scmp.ne.s32.totalorder %s105, %s119
      %p121 = scmp.eq.s32.totalorder %s20, 0
      %p122 = por %p120, %p121
      %s124 = sadd.s32 %s123, 1
      %p127 = scmp.eq.s32.totalorder %s14, 1
      %p128 = scmp.ne.s32.totalorder %s123, %s125
      %p129 = scmp.eq.s32.totalorder %s14, 0
      %p130 = por %p128, %p129
      %p131 = scmp.ne.s32.totalorder %s123, %s125
      %p132 = scmp.eq.s32.totalorder %s19, 1
      %p133 = por %p131, %p132
      %p134 = scmp.ne.s32.totalorder %s125, %s126
      %p135 = scmp.eq.s32.totalorder %s19, 0
      %p136 = por %p134, %p135
      %p137 = scmp.ne.s32.totalorder %s125, %s126
      %p138 = scmp.eq.s32.totalorder %s20, 1
      %p139 = por %p137, %p138
      %p141 = scmp.ne.s32.totalorder %s126, %s140
      %p142 = scmp.eq.s32.totalorder %s20, 0
      %p143 = por %p141, %p142
      %s144 = ssub.s32 %s21, %s33
      %s145 = ssub.s32 %s22, %s29
      %s146 = sor.u32 %s144, %s145
      %p147 = scmp.eq.s32.totalorder %s146, 0
      %s149 = sadd.s32 %s148, 1
      %s150 = scalar_select %p147, %s148, %s149
      %p153 = pneg %p147
      %p154 = scmp.eq.s32.totalorder %s14, 1
      %p155 = por %p153, %p154
      %p156 = scmp.ne.s32.totalorder %s148, %s151
      %p157 = scmp.eq.s32.totalorder %s14, 0
      %p158 = por %p156, %p157
      %p159 = scmp.ne.s32.totalorder %s148, %s151
      %p160 = scmp.eq.s32.totalorder %s19, 1
      %p161 = por %p159, %p160
      %p162 = scmp.ne.s32.totalorder %s151, %s152
      %p163 = scmp.eq.s32.totalorder %s19, 0
      %p164 = por %p162, %p163
      %p165 = scmp.ne.s32.totalorder %s151, %s152
      %p166 = scmp.eq.s32.totalorder %s20, 1
      %p167 = por %p165, %p166
      %p169 = scmp.ne.s32.totalorder %s152, %s168
      %p170 = scmp.eq.s32.totalorder %s20, 0
      %p171 = por %p169, %p170
      %p172 = scmp.le.s32.totalorder 1, %s14
      %p173 = scmp.lt.s32.totalorder %s14, 3
      %p174 = pnand %p172, %p173
      %p175 = pneg %p174
      // Predicated region
      $region9: #{tpu_custom_call.1} parent=5 // pred_check
        _
      $region10: #{tpu_custom_call.1} parent=5 // pred_check_branch
        %177 = sbr.rel (%p174) target = $region12
      $region11: #{tpu_custom_call.1} parent=5 // pred_region
        %s178 = ssub.s32 %s14, 1
        // Predicated region
        $region13: #{tpu_custom_call.1} parent=11 // pred_check
          %p179 = pneg %p73
        $region14: #{tpu_custom_call.1} parent=11 // pred_check_branch
          %181 = sbr.rel (%p179) target = $region16
        $region15: #{tpu_custom_call.1} parent=11 // pred_region
          _
        $region16: #{tpu_custom_call.1} parent=11 // pred_fallthru
          _
        // Predicated region
        $region17: #{tpu_custom_call.1} parent=11 // pred_check
          %p182 = pneg %p94
        $region18: #{tpu_custom_call.1} parent=11 // pred_check_branch
          %184 = sbr.rel (%p182) target = $region20
        $region19: #{tpu_custom_call.1} parent=11 // pred_region
          _
        $region20: #{tpu_custom_call.1} parent=11 // pred_fallthru
          _
        // Predicated region
        $region21: #{tpu_custom_call.1} parent=11 // pred_check
          %p185 = pneg %p115
        $region22: #{tpu_custom_call.1} parent=11 // pred_check_branch
          %187 = sbr.rel (%p185) target = $region24
        $region23: #{tpu_custom_call.1} parent=11 // pred_region
          _
        $region24: #{tpu_custom_call.1} parent=11 // pred_fallthru
          _
        // Predicated region
        $region25: #{tpu_custom_call.1} parent=11 // pred_check
          %p188 = pneg %p136
        $region26: #{tpu_custom_call.1} parent=11 // pred_check_branch
          %190 = sbr.rel (%p188) target = $region28
        $region27: #{tpu_custom_call.1} parent=11 // pred_region
          _
        $region28: #{tpu_custom_call.1} parent=11 // pred_fallthru
          _
      $region12: #{tpu_custom_call.1} parent=5 // pred_fallthru
        _
      %p191 = scmp.lt.s32.totalorder %s14, 2
      // Predicated region
      $region29: #{tpu_custom_call.1} parent=5 // pred_check
        %p192 = pneg %p191
      $region30: #{tpu_custom_call.1} parent=5 // pred_check_branch
        %194 = sbr.rel (%p192) target = $region32
      $region31: #{tpu_custom_call.1} parent=5 // pred_region
        // Predicated region
        $region33: #{tpu_custom_call.1} parent=31 // pred_check
          %p195 = pneg %p46
        $region34: #{tpu_custom_call.1} parent=31 // pred_check_branch
          %197 = sbr.rel (%p195) target = $region36
        $region35: #{tpu_custom_call.1} parent=31 // pred_region
          %p198 = scmp.lt.s32.totalorder %s21, 1
          %s199 = scalar_select %p198, %s21, 1
          %s200 = smul.addr %s199, 32
          %s201 = smul.addr %s200, 4
          %s202 = scalar_lea.vmem %s0, %s201
        $region36: #{tpu_custom_call.1} parent=31 // pred_fallthru
          _
      $region32: #{tpu_custom_call.1} parent=5 // pred_fallthru
        _
      %p203 = scmp.le.s32.totalorder 1, %s14
      %p204 = scmp.lt.s32.totalorder %s14, 3
      %p205 = pnand %p203, %p204
      %p206 = pneg %p205
      // Predicated region
      $region37: #{tpu_custom_call.1} parent=5 // pred_check
        _
      $region38: #{tpu_custom_call.1} parent=5 // pred_check_branch
        %208 = sbr.rel (%p205) target = $region40
      $region39: #{tpu_custom_call.1} parent=5 // pred_region
        %s209 = ssub.s32 %s14, 1
        %p210 = scmp.lt.s32.totalorder %s23, 1
        %s211 = scalar_select %p210, %s23, 1
        %s212 = smul.addr %s211, 32
        %s213 = smul.addr %s212, 4
        %s214 = scalar_lea.vmem %s0, %s213
        %p215 = pneg %p52
        %p216 = pneg %p49
        %p217 = pneg %p73
        %p218 = pneg %p70
        %p219 = pneg %p94
        %p220 = pneg %p91
        %p221 = pneg %p115
        %p222 = pneg %p112
        %p223 = pneg %p136
        %p224 = pneg %p133
        %p225 = pneg %p164
        %p226 = pneg %p161
        %s227 = sand.u32 %s151, 1
        %s228 = scalar_lea.sflag [#allocation5], %s227
        %s229 = sand.u32 %s151, 1
        %s230 = smul.addr %s229, 8
        %s231 = scalar_lea.vmem [#allocation4], %s230
        %p232 = scmp.lt.s32.totalorder %s23, 1
        %s233 = scalar_select %p232, %s23, 1
        %s234 = smul.addr %s233, 32
        %s235 = smul.addr %s234, 4
        %s236 = scalar_lea.vmem %s0, %s235
        %s237 = smul.u32 2, %s24
        %p239 = scmp.eq.s32.totalorder %s24, 0
        // Predicated region
        $region41: #{tpu_custom_call.1} parent=39 // pred_check
          %p240 = pneg %p239
        $region42: #{tpu_custom_call.1} parent=39 // pred_check_branch
          %242 = sbr.rel (%p240) target = $region44
        $region43: #{tpu_custom_call.1} parent=39 // pred_region
          %vm243 = vcmask 27648
          %244 = vst.msk [vmem:[#allocation2] sm:$0xf] %vm243, 0
          %245 = vst.msk [vmem:[#allocation2 + $0x4] sm:$0xf] %vm243, 0
          %vm246 = vcmask 24576
          %247 = vst.msk [vmem:[#allocation2 + $0x8] sm:$0x1] %vm246, 0
          %248 = vst.msk [vmem:[#allocation2 + $0xc] sm:$0xf] %vm243, 0
          %249 = vst.msk [vmem:[#allocation2 + $0x10] sm:$0xf] %vm243, 0
          %250 = vst.msk [vmem:[#allocation2 + $0x14] sm:$0x1] %vm246, 0
          %s251 = scalar_lea.vmem [#allocation2], 216
          %252 = vst.msk [vmem:[%s251] sm:$0xf] %vm243, 0
          %253 = vst.msk [vmem:[%s251 + $0x4] sm:$0xf] %vm243, 0
          %254 = vst.msk [vmem:[%s251 + $0x8] sm:$0x1] %vm246, 0
          %255 = vst.msk [vmem:[%s251 + $0xc] sm:$0xf] %vm243, 0
          %256 = vst.msk [vmem:[%s251 + $0x10] sm:$0xf] %vm243, 0
          %257 = vst.msk [vmem:[%s251 + $0x14] sm:$0x1] %vm246, 0
          %vm258 = vcmask 24576
          %vm259 = vsmask.f32 256
          %vm260 = vmand %vm258, %vm259
          %v261 = vld [vmem:[#allocation2] sm:$0x1]
          %v262 = vsel %vm260, 0, %v261
          %263 = vst [vmem:[#allocation2] sm:$0x1] %v262
          %v264 = vld [vmem:[#allocation2 + $0xc] sm:$0x1]
          %v265 = vsel %vm260, 0, %v264
          %266 = vst [vmem:[#allocation2 + $0xc] sm:$0x1] %v265
          %v267 = vld [vmem:[#allocation2 + $0x18] sm:$0x1]
          %v268 = vsel %vm260, 0, %v267
          %269 = vst [vmem:[#allocation2 + $0x18] sm:$0x1] %v268
          %v270 = vld [vmem:[#allocation2 + $0x24] sm:$0x1]
          %v271 = vsel %vm260, 0, %v270
          %272 = vst [vmem:[#allocation2 + $0x24] sm:$0x1] %v271
          %v273 = vld [vmem:[#allocation2 + $0x30] sm:$0x1]
          %v274 = vsel %vm260, 0, %v273
          %275 = vst [vmem:[#allocation2 + $0x30] sm:$0x1] %v274
          %v276 = vld [vmem:[#allocation2 + $0x3c] sm:$0x1]
          %v277 = vsel %vm260, 0, %v276
          %278 = vst [vmem:[#allocation2 + $0x3c] sm:$0x1] %v277
          %v279 = vld [vmem:[#allocation2 + $0x48] sm:$0x1]
          %v280 = vsel %vm260, 0, %v279
          %281 = vst [vmem:[#allocation2 + $0x48] sm:$0x1] %v280
          %v282 = vld [vmem:[#allocation2 + $0x54] sm:$0x1]
          %v283 = vsel %vm260, 0, %v282
          %284 = vst [vmem:[#allocation2 + $0x54] sm:$0x1] %v283
          %v285 = vld [vmem:[#allocation2 + $0x60] sm:$0x1]
          %v286 = vsel %vm260, 0, %v285
          %287 = vst [vmem:[#allocation2 + $0x60] sm:$0x1] %v286
          %v288 = vld [vmem:[#allocation2 + $0x6c] sm:$0x1]
          %v289 = vsel %vm260, 0, %v288
          %290 = vst [vmem:[#allocation2 + $0x6c] sm:$0x1] %v289
          %v291 = vld [vmem:[#allocation2 + $0x78] sm:$0x1]
          %v292 = vsel %vm260, 0, %v291
          %293 = vst [vmem:[#allocation2 + $0x78] sm:$0x1] %v292
          %v294 = vld [vmem:[#allocation2 + $0x84] sm:$0x1]
          %v295 = vsel %vm260, 0, %v294
          %296 = vst [vmem:[#allocation2 + $0x84] sm:$0x1] %v295
          %v297 = vld [vmem:[#allocation2 + $0x90] sm:$0x1]
          %v298 = vsel %vm260, 0, %v297
          %299 = vst [vmem:[#allocation2 + $0x90] sm:$0x1] %v298
          %v300 = vld [vmem:[#allocation2 + $0x9c] sm:$0x1]
          %v301 = vsel %vm260, 0, %v300
          %302 = vst [vmem:[#allocation2 + $0x9c] sm:$0x1] %v301
          %v303 = vld [vmem:[#allocation2 + $0xa8] sm:$0x1]
          %v304 = vsel %vm260, 0, %v303
          %305 = vst [vmem:[#allocation2 + $0xa8] sm:$0x1] %v304
          %v306 = vld [vmem:[#allocation2 + $0xb4] sm:$0x1]
          %v307 = vsel %vm260, 0, %v306
          %308 = vst [vmem:[#allocation2 + $0xb4] sm:$0x1] %v307
          %v309 = vld [vmem:[#allocation2 + $0xc0] sm:$0x1]
          %v310 = vsel %vm260, 0, %v309
          %311 = vst [vmem:[#allocation2 + $0xc0] sm:$0x1] %v310
          %v312 = vld [vmem:[#allocation2 + $0xcc] sm:$0x1]
          %v313 = vsel %vm260, 0, %v312
          %314 = vst [vmem:[#allocation2 + $0xcc] sm:$0x1] %v313
          %v315 = vld [vmem:[#allocation2 + $0xd8] sm:$0x1]
          %v316 = vsel %vm260, 0, %v315
          %317 = vst [vmem:[#allocation2 + $0xd8] sm:$0x1] %v316
          %v318 = vld [vmem:[#allocation2 + $0xe4] sm:$0x1]
          %v319 = vsel %vm260, 0, %v318
          %320 = vst [vmem:[#allocation2 + $0xe4] sm:$0x1] %v319
          %vm321 = vsmask.f32 7938
          %vm322 = vmand %vm258, %vm321
          %v323 = vld [vmem:[#allocation2 + $0x8] sm:$0x1]
          %v324 = vsel %vm322, 0, %v323
          %325 = vst [vmem:[#allocation2 + $0x8] sm:$0x1] %v324
          %v326 = vld [vmem:[#allocation2 + $0x14] sm:$0x1]
          %v327 = vsel %vm322, 0, %v326
          %328 = vst [vmem:[#allocation2 + $0x14] sm:$0x1] %v327
          %v329 = vld [vmem:[#allocation2 + $0x20] sm:$0x1]
          %v330 = vsel %vm322, 0, %v329
          %331 = vst [vmem:[#allocation2 + $0x20] sm:$0x1] %v330
          %v332 = vld [vmem:[#allocation2 + $0x2c] sm:$0x1]
          %v333 = vsel %vm322, 0, %v332
          %334 = vst [vmem:[#allocation2 + $0x2c] sm:$0x1] %v333
          %v335 = vld [vmem:[#allocation2 + $0x38] sm:$0x1]
          %v336 = vsel %vm322, 0, %v335
          %337 = vst [vmem:[#allocation2 + $0x38] sm:$0x1] %v336
          %v338 = vld [vmem:[#allocation2 + $0x44] sm:$0x1]
          %v339 = vsel %vm322, 0, %v338
          %340 = vst [vmem:[#allocation2 + $0x44] sm:$0x1] %v339
          %v341 = vld [vmem:[#allocation2 + $0x50] sm:$0x1]
          %v342 = vsel %vm322, 0, %v341
          %343 = vst [vmem:[#allocation2 + $0x50] sm:$0x1] %v342
          %v344 = vld [vmem:[#allocation2 + $0x5c] sm:$0x1]
          %v345 = vsel %vm322, 0, %v344
          %346 = vst [vmem:[#allocation2 + $0x5c] sm:$0x1] %v345
          %v347 = vld [vmem:[#allocation2 + $0x68] sm:$0x1]
          %v348 = vsel %vm322, 0, %v347
          %349 = vst [vmem:[#allocation2 + $0x68] sm:$0x1] %v348
          %v350 = vld [vmem:[#allocation2 + $0x74] sm:$0x1]
          %v351 = vsel %vm322, 0, %v350
          %352 = vst [vmem:[#allocation2 + $0x74] sm:$0x1] %v351
          %v353 = vld [vmem:[#allocation2 + $0x80] sm:$0x1]
          %v354 = vsel %vm322, 0, %v353
          %355 = vst [vmem:[#allocation2 + $0x80] sm:$0x1] %v354
          %v356 = vld [vmem:[#allocation2 + $0x8c] sm:$0x1]
          %v357 = vsel %vm322, 0, %v356
          %358 = vst [vmem:[#allocation2 + $0x8c] sm:$0x1] %v357
          %v359 = vld [vmem:[#allocation2 + $0x98] sm:$0x1]
          %v360 = vsel %vm322, 0, %v359
          %361 = vst [vmem:[#allocation2 + $0x98] sm:$0x1] %v360
          %v362 = vld [vmem:[#allocation2 + $0xa4] sm:$0x1]
          %v363 = vsel %vm322, 0, %v362
          %364 = vst [vmem:[#allocation2 + $0xa4] sm:$0x1] %v363
          %v365 = vld [vmem:[#allocation2 + $0xb0] sm:$0x1]
          %v366 = vsel %vm322, 0, %v365
          %367 = vst [vmem:[#allocation2 + $0xb0] sm:$0x1] %v366
          %v368 = vld [vmem:[#allocation2 + $0xbc] sm:$0x1]
          %v369 = vsel %vm322, 0, %v368
          %370 = vst [vmem:[#allocation2 + $0xbc] sm:$0x1] %v369
          %v371 = vld [vmem:[#allocation2 + $0xc8] sm:$0x1]
          %v372 = vsel %vm322, 0, %v371
          %373 = vst [vmem:[#allocation2 + $0xc8] sm:$0x1] %v372
          %v374 = vld [vmem:[#allocation2 + $0xd4] sm:$0x1]
          %v375 = vsel %vm322, 0, %v374
          %376 = vst [vmem:[#allocation2 + $0xd4] sm:$0x1] %v375
          %v377 = vld [vmem:[#allocation2 + $0xe0] sm:$0x1]
          %v378 = vsel %vm322, 0, %v377
          %379 = vst [vmem:[#allocation2 + $0xe0] sm:$0x1] %v378
          %v380 = vld [vmem:[#allocation2 + $0xec] sm:$0x1]
          %v381 = vsel %vm322, 0, %v380
          %382 = vst [vmem:[#allocation2 + $0xec] sm:$0x1] %v381
          %v383 = vld [vmem:[%s236] sm:$0xf]
          %v384 = vld [vmem:[%s236 + $0x4] sm:$0xf]
          %v385 = vld [vmem:[%s236 + $0x8] sm:$0xf]
          %v386 = vld [vmem:[%s236 + $0xc] sm:$0xf]
          %v387 = vld [vmem:[%s236 + $0x10] sm:$0xf]
          %v388 = vld [vmem:[%s236 + $0x14] sm:$0xf]
          %v389 = vld [vmem:[%s236 + $0x18] sm:$0xf]
          %v390 = vld [vmem:[%s236 + $0x1c] sm:$0xf]
          %v391 = vld [vmem:[%s236 + $0x20] sm:$0xf]
          %v392 = vld [vmem:[%s236 + $0x24] sm:$0xf]
          %v393 = vld [vmem:[%s236 + $0x28] sm:$0xf]
          %v394 = vld [vmem:[%s236 + $0x2c] sm:$0xf]
          %v395 = vld [vmem:[%s236 + $0x30] sm:$0xf]
          %v396 = vld [vmem:[%s236 + $0x34] sm:$0xf]
          %v397 = vld [vmem:[%s236 + $0x38] sm:$0xf]
          %v398 = vld [vmem:[%s236 + $0x3c] sm:$0xf]
          %v399 = vld [vmem:[%s236 + $0x40] sm:$0xf]
          %v400 = vld [vmem:[%s236 + $0x44] sm:$0xf]
          %v401 = vld [vmem:[%s236 + $0x48] sm:$0xf]
          %v402 = vld [vmem:[%s236 + $0x4c] sm:$0xf]
          %v403 = vld [vmem:[%s236 + $0x50] sm:$0xf]
          %v404 = vld [vmem:[%s236 + $0x54] sm:$0xf]
          %v405 = vld [vmem:[%s236 + $0x58] sm:$0xf]
          %v406 = vld [vmem:[%s236 + $0x5c] sm:$0xf]
          %v407 = vld [vmem:[%s236 + $0x60] sm:$0xf]
          %v408 = vld [vmem:[%s236 + $0x64] sm:$0xf]
          %v409 = vld [vmem:[%s236 + $0x68] sm:$0xf]
          %v410 = vld [vmem:[%s236 + $0x6c] sm:$0xf]
          %v411 = vld [vmem:[%s236 + $0x70] sm:$0xf]
          %v412 = vld [vmem:[%s236 + $0x74] sm:$0xf]
          %v413 = vld [vmem:[%s236 + $0x78] sm:$0xf]
          %v414 = vld [vmem:[%s236 + $0x7c] sm:$0xf]
          %vm415 = vsmask.f32 4368
          %vm416 = vmor %vm259, %vm415
          %v418 = vshrl.u32 %v383, 16
          %v420 = vrot.slane %v418, 7
          %v421 = vshll.u32 %v383, 16
          %v423 = vor.u32 %v420, %v421
          %v424 = vrot.slane %v420, 4
          %v426 = vshrl.u32 %v384, 16
          %v428 = vrot.slane %v426, 7
          %v429 = vshll.u32 %v384, 16
          %v431 = vor.u32 %v428, %v429
          %v432 = vsel %vm416, %v424, %v431
          %v433 = vrot.slane %v428, 4
          %v435 = vshrl.u32 %v385, 16
          %v437 = vrot.slane %v435, 7
          %v438 = vshll.u32 %v385, 16
          %v440 = vor.u32 %v437, %v438
          %v441 = vrot.slane %v437, 4
          %v443 = vshrl.u32 %v386, 16
          %v445 = vrot.slane %v443, 7
          %v446 = vshll.u32 %v386, 16
          %v448 = vor.u32 %v445, %v446
          %v449 = vsel %vm416, %v441, %v448
          %v450 = vrot.slane %v445, 4
          %v452 = vshrl.u32 %v387, 16
          %v454 = vrot.slane %v452, 7
          %v455 = vshll.u32 %v387, 16
          %v457 = vor.u32 %v454, %v455
          %v458 = vrot.slane %v454, 4
          %v460 = vshrl.u32 %v388, 16
          %v462 = vrot.slane %v460, 7
          %v463 = vshll.u32 %v388, 16
          %v465 = vor.u32 %v462, %v463
          %v466 = vsel %vm416, %v458, %v465
          %v467 = vrot.slane %v462, 4
          %v469 = vshrl.u32 %v389, 16
          %v471 = vrot.slane %v469, 7
          %v472 = vshll.u32 %v389, 16
          %v474 = vor.u32 %v471, %v472
          %v475 = vrot.slane %v471, 4
          %v477 = vshrl.u32 %v390, 16
          %v479 = vrot.slane %v477, 7
          %v480 = vshll.u32 %v390, 16
          %v482 = vor.u32 %v479, %v480
          %v483 = vsel %vm416, %v475, %v482
          %v484 = vrot.slane %v479, 4
          %v486 = vshrl.u32 %v391, 16
          %v488 = vrot.slane %v486, 7
          %v489 = vshll.u32 %v391, 16
          %v491 = vor.u32 %v488, %v489
          %v492 = vrot.slane %v488, 4
          %v494 = vshrl.u32 %v392, 16
          %v496 = vrot.slane %v494, 7
          %v497 = vshll.u32 %v392, 16
          %v499 = vor.u32 %v496, %v497
          %v500 = vsel %vm416, %v492, %v499
          %v501 = vrot.slane %v496, 4
          %v503 = vshrl.u32 %v393, 16
          %v505 = vrot.slane %v503, 7
          %v506 = vshll.u32 %v393, 16
          %v508 = vor.u32 %v505, %v506
          %v509 = vrot.slane %v505, 4
          %v511 = vshrl.u32 %v394, 16
          %v513 = vrot.slane %v511, 7
          %v514 = vshll.u32 %v394, 16
          %v516 = vor.u32 %v513, %v514
          %v517 = vsel %vm416, %v509, %v516
          %v518 = vrot.slane %v513, 4
          %v520 = vshrl.u32 %v395, 16
          %v522 = vrot.slane %v520, 7
          %v523 = vshll.u32 %v395, 16
          %v525 = vor.u32 %v522, %v523
          %v526 = vrot.slane %v522, 4
          %v528 = vshrl.u32 %v396, 16
          %v530 = vrot.slane %v528, 7
          %v531 = vshll.u32 %v396, 16
          %v533 = vor.u32 %v530, %v531
          %v534 = vsel %vm416, %v526, %v533
          %v535 = vrot.slane %v530, 4
          %v537 = vshrl.u32 %v397, 16
          %v539 = vrot.slane %v537, 7
          %v540 = vshll.u32 %v397, 16
          %v542 = vor.u32 %v539, %v540
          %v543 = vrot.slane %v539, 4
          %v545 = vshrl.u32 %v398, 16
          %v547 = vrot.slane %v545, 7
          %v548 = vshll.u32 %v398, 16
          %v550 = vor.u32 %v547, %v548
          %v551 = vsel %vm416, %v543, %v550
          %v552 = vrot.slane %v547, 4
          %v554 = vshrl.u32 %v399, 16
          %v556 = vrot.slane %v554, 7
          %v557 = vshll.u32 %v399, 16
          %v559 = vor.u32 %v556, %v557
          %v560 = vrot.slane %v556, 4
          %v562 = vshrl.u32 %v400, 16
          %v564 = vrot.slane %v562, 7
          %v565 = vshll.u32 %v400, 16
          %v567 = vor.u32 %v564, %v565
          %v568 = vsel %vm416, %v560, %v567
          %v569 = vrot.slane %v564, 4
          %v571 = vshrl.u32 %v401, 16
          %v573 = vrot.slane %v571, 7
          %v574 = vshll.u32 %v401, 16
          %v576 = vor.u32 %v573, %v574
          %v577 = vrot.slane %v573, 4
          %v579 = vshrl.u32 %v402, 16
          %v581 = vrot.slane %v579, 7
          %v582 = vshll.u32 %v402, 16
          %v584 = vor.u32 %v581, %v582
          %v585 = vsel %vm416, %v577, %v584
          %v586 = vrot.slane %v581, 4
          %v588 = vshrl.u32 %v403, 16
          %v590 = vrot.slane %v588, 7
          %v591 = vshll.u32 %v403, 16
          %v593 = vor.u32 %v590, %v591
          %v594 = vrot.slane %v590, 4
          %v596 = vshrl.u32 %v404, 16
          %v598 = vrot.slane %v596, 7
          %v599 = vshll.u32 %v404, 16
          %v601 = vor.u32 %v598, %v599
          %v602 = vsel %vm416, %v594, %v601
          %v603 = vrot.slane %v598, 4
          %v605 = vshrl.u32 %v405, 16
          %v607 = vrot.slane %v605, 7
          %v608 = vshll.u32 %v405, 16
          %v610 = vor.u32 %v607, %v608
          %v611 = vrot.slane %v607, 4
          %v613 = vshrl.u32 %v406, 16
          %v615 = vrot.slane %v613, 7
          %v616 = vshll.u32 %v406, 16
          %v618 = vor.u32 %v615, %v616
          %v619 = vsel %vm416, %v611, %v618
          %v620 = vrot.slane %v615, 4
          %v622 = vshrl.u32 %v407, 16
          %v624 = vrot.slane %v622, 7
          %v625 = vshll.u32 %v407, 16
          %v627 = vor.u32 %v624, %v625
          %v628 = vrot.slane %v624, 4
          %v630 = vshrl.u32 %v408, 16
          %v632 = vrot.slane %v630, 7
          %v633 = vshll.u32 %v408, 16
          %v635 = vor.u32 %v632, %v633
          %v636 = vsel %vm416, %v628, %v635
          %v637 = vrot.slane %v632, 4
          %v639 = vshrl.u32 %v409, 16
          %v641 = vrot.slane %v639, 7
          %v642 = vshll.u32 %v409, 16
          %v644 = vor.u32 %v641, %v642
          %v645 = vrot.slane %v641, 4
          %v647 = vshrl.u32 %v410, 16
          %v649 = vrot.slane %v647, 7
          %v650 = vshll.u32 %v410, 16
          %v652 = vor.u32 %v649, %v650
          %v653 = vsel %vm416, %v645, %v652
          %v654 = vrot.slane %v649, 4
          %v656 = vshrl.u32 %v411, 16
          %v658 = vrot.slane %v656, 7
          %v659 = vshll.u32 %v411, 16
          %v661 = vor.u32 %v658, %v659
          %v662 = vrot.slane %v658, 4
          %v664 = vshrl.u32 %v412, 16
          %v666 = vrot.slane %v664, 7
          %v667 = vshll.u32 %v412, 16
          %v669 = vor.u32 %v666, %v667
          %v670 = vsel %vm416, %v662, %v669
          %v671 = vrot.slane %v666, 4
          %v673 = vshrl.u32 %v413, 16
          %v675 = vrot.slane %v673, 7
          %v676 = vshll.u32 %v413, 16
          %v678 = vor.u32 %v675, %v676
          %v679 = vrot.slane %v675, 4
          %v681 = vshrl.u32 %v414, 16
          %v683 = vrot.slane %v681, 7
          %v684 = vshll.u32 %v414, 16
          %v686 = vor.u32 %v683, %v684
          %v687 = vsel %vm416, %v679, %v686
          %v688 = vrot.slane %v683, 4
          %s737 = scalar_lea.vmem [#allocation2], 24
          %vm738 = vcmask 27648
          %vm739 = vmand %vm738, %vm321
          %v740 = vld [vmem:[%s737] sm:$0xf]
          %v741 = vsel %vm739, %v423, %v740
          %742 = vst [vmem:[%s737] sm:$0xf] %v741
          %743 = vst.msk [vmem:[%s737 + $0x4] sm:$0xf] %vm243, %v432
          %v744 = vld [vmem:[%s737 + $0x8] sm:$0x1]
          %v745 = vsel %vm260, %v433, %v744
          %746 = vst [vmem:[%s737 + $0x8] sm:$0x1] %v745
          %v747 = vld [vmem:[%s737 + $0xc] sm:$0xf]
          %v748 = vsel %vm739, %v440, %v747
          %749 = vst [vmem:[%s737 + $0xc] sm:$0xf] %v748
          %750 = vst.msk [vmem:[%s737 + $0x10] sm:$0xf] %vm243, %v449
          %v751 = vld [vmem:[%s737 + $0x14] sm:$0x1]
          %v752 = vsel %vm260, %v450, %v751
          %753 = vst [vmem:[%s737 + $0x14] sm:$0x1] %v752
          %v754 = vld [vmem:[%s737 + $0x18] sm:$0xf]
          %v755 = vsel %vm739, %v457, %v754
          %756 = vst [vmem:[%s737 + $0x18] sm:$0xf] %v755
          %757 = vst.msk [vmem:[%s737 + $0x1c] sm:$0xf] %vm243, %v466
          %v758 = vld [vmem:[%s737 + $0x20] sm:$0x1]
          %v759 = vsel %vm260, %v467, %v758
          %760 = vst [vmem:[%s737 + $0x20] sm:$0x1] %v759
          %v761 = vld [vmem:[%s737 + $0x24] sm:$0xf]
          %v762 = vsel %vm739, %v474, %v761
          %763 = vst [vmem:[%s737 + $0x24] sm:$0xf] %v762
          %764 = vst.msk [vmem:[%s737 + $0x28] sm:$0xf] %vm243, %v483
          %v765 = vld [vmem:[%s737 + $0x2c] sm:$0x1]
          %v766 = vsel %vm260, %v484, %v765
          %767 = vst [vmem:[%s737 + $0x2c] sm:$0x1] %v766
          %v768 = vld [vmem:[%s737 + $0x30] sm:$0xf]
          %v769 = vsel %vm739, %v491, %v768
          %770 = vst [vmem:[%s737 + $0x30] sm:$0xf] %v769
          %771 = vst.msk [vmem:[%s737 + $0x34] sm:$0xf] %vm243, %v500
          %v772 = vld [vmem:[%s737 + $0x38] sm:$0x1]
          %v773 = vsel %vm260, %v501, %v772
          %774 = vst [vmem:[%s737 + $0x38] sm:$0x1] %v773
          %v775 = vld [vmem:[%s737 + $0x3c] sm:$0xf]
          %v776 = vsel %vm739, %v508, %v775
          %777 = vst [vmem:[%s737 + $0x3c] sm:$0xf] %v776
          %778 = vst.msk [vmem:[%s737 + $0x40] sm:$0xf] %vm243, %v517
          %v779 = vld [vmem:[%s737 + $0x44] sm:$0x1]
          %v780 = vsel %vm260, %v518, %v779
          %781 = vst [vmem:[%s737 + $0x44] sm:$0x1] %v780
          %v782 = vld [vmem:[%s737 + $0x48] sm:$0xf]
          %v783 = vsel %vm739, %v525, %v782
          %784 = vst [vmem:[%s737 + $0x48] sm:$0xf] %v783
          %785 = vst.msk [vmem:[%s737 + $0x4c] sm:$0xf] %vm243, %v534
          %v786 = vld [vmem:[%s737 + $0x50] sm:$0x1]
          %v787 = vsel %vm260, %v535, %v786
          %788 = vst [vmem:[%s737 + $0x50] sm:$0x1] %v787
          %v789 = vld [vmem:[%s737 + $0x54] sm:$0xf]
          %v790 = vsel %vm739, %v542, %v789
          %791 = vst [vmem:[%s737 + $0x54] sm:$0xf] %v790
          %792 = vst.msk [vmem:[%s737 + $0x58] sm:$0xf] %vm243, %v551
          %v793 = vld [vmem:[%s737 + $0x5c] sm:$0x1]
          %v794 = vsel %vm260, %v552, %v793
          %795 = vst [vmem:[%s737 + $0x5c] sm:$0x1] %v794
          %v796 = vld [vmem:[%s737 + $0x60] sm:$0xf]
          %v797 = vsel %vm739, %v559, %v796
          %798 = vst [vmem:[%s737 + $0x60] sm:$0xf] %v797
          %799 = vst.msk [vmem:[%s737 + $0x64] sm:$0xf] %vm243, %v568
          %v800 = vld [vmem:[%s737 + $0x68] sm:$0x1]
          %v801 = vsel %vm260, %v569, %v800
          %802 = vst [vmem:[%s737 + $0x68] sm:$0x1] %v801
          %v803 = vld [vmem:[%s737 + $0x6c] sm:$0xf]
          %v804 = vsel %vm739, %v576, %v803
          %805 = vst [vmem:[%s737 + $0x6c] sm:$0xf] %v804
          %806 = vst.msk [vmem:[%s737 + $0x70] sm:$0xf] %vm243, %v585
          %v807 = vld [vmem:[%s737 + $0x74] sm:$0x1]
          %v808 = vsel %vm260, %v586, %v807
          %809 = vst [vmem:[%s737 + $0x74] sm:$0x1] %v808
          %v810 = vld [vmem:[%s737 + $0x78] sm:$0xf]
          %v811 = vsel %vm739, %v593, %v810
          %812 = vst [vmem:[%s737 + $0x78] sm:$0xf] %v811
          %813 = vst.msk [vmem:[%s737 + $0x7c] sm:$0xf] %vm243, %v602
          %v814 = vld [vmem:[%s737 + $0x80] sm:$0x1]
          %v815 = vsel %vm260, %v603, %v814
          %816 = vst [vmem:[%s737 + $0x80] sm:$0x1] %v815
          %v817 = vld [vmem:[%s737 + $0x84] sm:$0xf]
          %v818 = vsel %vm739, %v610, %v817
          %819 = vst [vmem:[%s737 + $0x84] sm:$0xf] %v818
          %820 = vst.msk [vmem:[%s737 + $0x88] sm:$0xf] %vm243, %v619
          %v821 = vld [vmem:[%s737 + $0x8c] sm:$0x1]
          %v822 = vsel %vm260, %v620, %v821
          %823 = vst [vmem:[%s737 + $0x8c] sm:$0x1] %v822
          %v824 = vld [vmem:[%s737 + $0x90] sm:$0xf]
          %v825 = vsel %vm739, %v627, %v824
          %826 = vst [vmem:[%s737 + $0x90] sm:$0xf] %v825
          %827 = vst.msk [vmem:[%s737 + $0x94] sm:$0xf] %vm243, %v636
          %v828 = vld [vmem:[%s737 + $0x98] sm:$0x1]
          %v829 = vsel %vm260, %v637, %v828
          %830 = vst [vmem:[%s737 + $0x98] sm:$0x1] %v829
          %v831 = vld [vmem:[%s737 + $0x9c] sm:$0xf]
          %v832 = vsel %vm739, %v644, %v831
          %833 = vst [vmem:[%s737 + $0x9c] sm:$0xf] %v832
          %834 = vst.msk [vmem:[%s737 + $0xa0] sm:$0xf] %vm243, %v653
          %v835 = vld [vmem:[%s737 + $0xa4] sm:$0x1]
          %v836 = vsel %vm260, %v654, %v835
          %837 = vst [vmem:[%s737 + $0xa4] sm:$0x1] %v836
          %v838 = vld [vmem:[%s737 + $0xa8] sm:$0xf]
          %v839 = vsel %vm739, %v661, %v838
          %840 = vst [vmem:[%s737 + $0xa8] sm:$0xf] %v839
          %841 = vst.msk [vmem:[%s737 + $0xac] sm:$0xf] %vm243, %v670
          %v842 = vld [vmem:[%s737 + $0xb0] sm:$0x1]
          %v843 = vsel %vm260, %v671, %v842
          %844 = vst [vmem:[%s737 + $0xb0] sm:$0x1] %v843
          %v845 = vld [vmem:[%s737 + $0xb4] sm:$0xf]
          %v846 = vsel %vm739, %v678, %v845
          %847 = vst [vmem:[%s737 + $0xb4] sm:$0xf] %v846
          %848 = vst.msk [vmem:[%s737 + $0xb8] sm:$0xf] %vm243, %v687
          %v849 = vld [vmem:[%s737 + $0xbc] sm:$0x1]
          %v850 = vsel %vm260, %v688, %v849
          %851 = vst [vmem:[%s737 + $0xbc] sm:$0x1] %v850
          %vm852 = vcmask 57344
          %vm853 = vmand %vm852, %vm259
          %v854 = vld [vmem:[#allocation3] sm:$0x1]
          %v855 = vsel %vm853, 0, %v854
          %856 = vst [vmem:[#allocation3] sm:$0x1] %v855
          %v857 = vld [vmem:[#allocation3 + $0xc] sm:$0x1]
          %v858 = vsel %vm853, 0, %v857
          %859 = vst [vmem:[#allocation3 + $0xc] sm:$0x1] %v858
          %v860 = vld [vmem:[#allocation3 + $0x18] sm:$0x1]
          %v861 = vsel %vm853, 0, %v860
          %862 = vst [vmem:[#allocation3 + $0x18] sm:$0x1] %v861
          %v863 = vld [vmem:[#allocation3 + $0x24] sm:$0x1]
          %v864 = vsel %vm853, 0, %v863
          %865 = vst [vmem:[#allocation3 + $0x24] sm:$0x1] %v864
          %v866 = vld [vmem:[#allocation3 + $0x30] sm:$0x1]
          %v867 = vsel %vm853, 0, %v866
          %868 = vst [vmem:[#allocation3 + $0x30] sm:$0x1] %v867
          %v869 = vld [vmem:[#allocation3 + $0x3c] sm:$0x1]
          %v870 = vsel %vm853, 0, %v869
          %871 = vst [vmem:[#allocation3 + $0x3c] sm:$0x1] %v870
          %v872 = vld [vmem:[#allocation3 + $0x48] sm:$0x1]
          %v873 = vsel %vm853, 0, %v872
          %874 = vst [vmem:[#allocation3 + $0x48] sm:$0x1] %v873
          %v875 = vld [vmem:[#allocation3 + $0x54] sm:$0x1]
          %v876 = vsel %vm853, 0, %v875
          %877 = vst [vmem:[#allocation3 + $0x54] sm:$0x1] %v876
          %v878 = vld [vmem:[#allocation3 + $0x60] sm:$0x1]
          %v879 = vsel %vm853, 0, %v878
          %880 = vst [vmem:[#allocation3 + $0x60] sm:$0x1] %v879
          %v881 = vld [vmem:[#allocation3 + $0x6c] sm:$0x1]
          %v882 = vsel %vm853, 0, %v881
          %883 = vst [vmem:[#allocation3 + $0x6c] sm:$0x1] %v882
          %v884 = vld [vmem:[#allocation3 + $0x78] sm:$0x1]
          %v885 = vsel %vm853, 0, %v884
          %886 = vst [vmem:[#allocation3 + $0x78] sm:$0x1] %v885
          %v887 = vld [vmem:[#allocation3 + $0x84] sm:$0x1]
          %v888 = vsel %vm853, 0, %v887
          %889 = vst [vmem:[#allocation3 + $0x84] sm:$0x1] %v888
          %v890 = vld [vmem:[#allocation3 + $0x90] sm:$0x1]
          %v891 = vsel %vm853, 0, %v890
          %892 = vst [vmem:[#allocation3 + $0x90] sm:$0x1] %v891
          %v893 = vld [vmem:[#allocation3 + $0x9c] sm:$0x1]
          %v894 = vsel %vm853, 0, %v893
          %895 = vst [vmem:[#allocation3 + $0x9c] sm:$0x1] %v894
          %v896 = vld [vmem:[#allocation3 + $0xa8] sm:$0x1]
          %v897 = vsel %vm853, 0, %v896
          %898 = vst [vmem:[#allocation3 + $0xa8] sm:$0x1] %v897
          %v899 = vld [vmem:[#allocation3 + $0xb4] sm:$0x1]
          %v900 = vsel %vm853, 0, %v899
          %901 = vst [vmem:[#allocation3 + $0xb4] sm:$0x1] %v900
          %v902 = vld [vmem:[#allocation3 + $0xc0] sm:$0x1]
          %v903 = vsel %vm853, 0, %v902
          %904 = vst [vmem:[#allocation3 + $0xc0] sm:$0x1] %v903
          %v905 = vld [vmem:[#allocation3 + $0xcc] sm:$0x1]
          %v906 = vsel %vm853, 0, %v905
          %907 = vst [vmem:[#allocation3 + $0xcc] sm:$0x1] %v906
          %vm908 = vmand %vm852, %vm321
          %v909 = vld [vmem:[#allocation3 + $0x8] sm:$0x1]
          %v910 = vsel %vm908, 0, %v909
          %911 = vst [vmem:[#allocation3 + $0x8] sm:$0x1] %v910
          %v912 = vld [vmem:[#allocation3 + $0x14] sm:$0x1]
          %v913 = vsel %vm908, 0, %v912
          %914 = vst [vmem:[#allocation3 + $0x14] sm:$0x1] %v913
          %v915 = vld [vmem:[#allocation3 + $0x20] sm:$0x1]
          %v916 = vsel %vm908, 0, %v915
          %917 = vst [vmem:[#allocation3 + $0x20] sm:$0x1] %v916
          %v918 = vld [vmem:[#allocation3 + $0x2c] sm:$0x1]
          %v919 = vsel %vm908, 0, %v918
          %920 = vst [vmem:[#allocation3 + $0x2c] sm:$0x1] %v919
          %v921 = vld [vmem:[#allocation3 + $0x38] sm:$0x1]
          %v922 = vsel %vm908, 0, %v921
          %923 = vst [vmem:[#allocation3 + $0x38] sm:$0x1] %v922
          %v924 = vld [vmem:[#allocation3 + $0x44] sm:$0x1]
          %v925 = vsel %vm908, 0, %v924
          %926 = vst [vmem:[#allocation3 + $0x44] sm:$0x1] %v925
          %v927 = vld [vmem:[#allocation3 + $0x50] sm:$0x1]
          %v928 = vsel %vm908, 0, %v927
          %929 = vst [vmem:[#allocation3 + $0x50] sm:$0x1] %v928
          %v930 = vld [vmem:[#allocation3 + $0x5c] sm:$0x1]
          %v931 = vsel %vm908, 0, %v930
          %932 = vst [vmem:[#allocation3 + $0x5c] sm:$0x1] %v931
          %v933 = vld [vmem:[#allocation3 + $0x68] sm:$0x1]
          %v934 = vsel %vm908, 0, %v933
          %935 = vst [vmem:[#allocation3 + $0x68] sm:$0x1] %v934
          %v936 = vld [vmem:[#allocation3 + $0x74] sm:$0x1]
          %v937 = vsel %vm908, 0, %v936
          %938 = vst [vmem:[#allocation3 + $0x74] sm:$0x1] %v937
          %v939 = vld [vmem:[#allocation3 + $0x80] sm:$0x1]
          %v940 = vsel %vm908, 0, %v939
          %941 = vst [vmem:[#allocation3 + $0x80] sm:$0x1] %v940
          %v942 = vld [vmem:[#allocation3 + $0x8c] sm:$0x1]
          %v943 = vsel %vm908, 0, %v942
          %944 = vst [vmem:[#allocation3 + $0x8c] sm:$0x1] %v943
          %v945 = vld [vmem:[#allocation3 + $0x98] sm:$0x1]
          %v946 = vsel %vm908, 0, %v945
          %947 = vst [vmem:[#allocation3 + $0x98] sm:$0x1] %v946
          %v948 = vld [vmem:[#allocation3 + $0xa4] sm:$0x1]
          %v949 = vsel %vm908, 0, %v948
          %950 = vst [vmem:[#allocation3 + $0xa4] sm:$0x1] %v949
          %v951 = vld [vmem:[#allocation3 + $0xb0] sm:$0x1]
          %v952 = vsel %vm908, 0, %v951
          %953 = vst [vmem:[#allocation3 + $0xb0] sm:$0x1] %v952
          %v954 = vld [vmem:[#allocation3 + $0xbc] sm:$0x1]
          %v955 = vsel %vm908, 0, %v954
          %956 = vst [vmem:[#allocation3 + $0xbc] sm:$0x1] %v955
          %v957 = vld [vmem:[#allocation3 + $0xc8] sm:$0x1]
          %v958 = vsel %vm908, 0, %v957
          %959 = vst [vmem:[#allocation3 + $0xc8] sm:$0x1] %v958
          %v960 = vld [vmem:[#allocation3 + $0xd4] sm:$0x1]
          %v961 = vsel %vm908, 0, %v960
          %962 = vst [vmem:[#allocation3 + $0xd4] sm:$0x1] %v961
        $region44: #{tpu_custom_call.1} parent=39 // pred_fallthru
          _
        %s963 = smul.u32 %s24, 16
        %v964 = vld [vmem:[%s1] sm:$0xf]
        %v965 = vld [vmem:[%s1 + $0x4] sm:$0x3]
        %s966 = scalar_lea.vmem %s1, 8
        %v967 = vld [vmem:[%s966] sm:$0xf]
        %v968 = vld [vmem:[%s966 + $0x4] sm:$0x3]
        %s969 = scalar_lea.vmem %s1, 16
        %v970 = vld [vmem:[%s969] sm:$0xf]
        %v971 = vld [vmem:[%s969 + $0x4] sm:$0x3]
        %v972 = vld [vmem:[%s3] sm:$0xf]
        %v973 = vld [vmem:[%s3 + $0x4] sm:$0xf]
        %v974 = vld [vmem:[%s3 + $0x8] sm:$0xf]
        %s975 = scalar_lea.vmem %s3, 12
        %v976 = vld [vmem:[%s975] sm:$0xf]
        %v977 = vld [vmem:[%s975 + $0x4] sm:$0xf]
        %v978 = vld [vmem:[%s975 + $0x8] sm:$0xf]
        %s979 = scalar_lea.vmem %s3, 24
        %v980 = vld [vmem:[%s979] sm:$0xf]
        %v981 = vld [vmem:[%s979 + $0x4] sm:$0xf]
        %v982 = vld [vmem:[%s979 + $0x8] sm:$0xf]
        %v983 = vld [vmem:[%s2] sm:$0x1]
        %v984 = vld [vmem:[%s4] sm:$0x1]
        %s985 = smul.u32 %s963, 3
        %s986 = smul.addr %s985, 4
        %s987 = scalar_lea.vmem [#allocation2], %s986
        %v988 = vld [vmem:[%s987] sm:$0xf]
        %v989 = vld [vmem:[%s987 + $0x4] sm:$0xf]
        %v990 = vld [vmem:[%s987 + $0x8] sm:$0x1]
        %v991 = vld [vmem:[%s987 + $0xc] sm:$0xf]
        %v992 = vld [vmem:[%s987 + $0x10] sm:$0xf]
        %v993 = vld [vmem:[%s987 + $0x14] sm:$0x1]
        %v994 = vld [vmem:[%s987 + $0x18] sm:$0xf]
        %v995 = vld [vmem:[%s987 + $0x1c] sm:$0xf]
        %v996 = vld [vmem:[%s987 + $0x20] sm:$0x1]
        %v997 = vld [vmem:[%s987 + $0x24] sm:$0xf]
        %v998 = vld [vmem:[%s987 + $0x28] sm:$0xf]
        %v999 = vld [vmem:[%s987 + $0x2c] sm:$0x1]
        %v1000 = vld [vmem:[%s987 + $0x30] sm:$0xf]
        %v1001 = vld [vmem:[%s987 + $0x34] sm:$0xf]
        %v1002 = vld [vmem:[%s987 + $0x38] sm:$0x1]
        %v1003 = vld [vmem:[%s987 + $0x3c] sm:$0xf]
        %v1004 = vld [vmem:[%s987 + $0x40] sm:$0xf]
        %v1005 = vld [vmem:[%s987 + $0x44] sm:$0x1]
        %v1006 = vld [vmem:[%s987 + $0x48] sm:$0xf]
        %v1007 = vld [vmem:[%s987 + $0x4c] sm:$0xf]
        %v1008 = vld [vmem:[%s987 + $0x50] sm:$0x1]
        %v1009 = vld [vmem:[%s987 + $0x54] sm:$0xf]
        %v1010 = vld [vmem:[%s987 + $0x58] sm:$0xf]
        %v1011 = vld [vmem:[%s987 + $0x5c] sm:$0x1]
        %v1012 = vld [vmem:[%s987 + $0x60] sm:$0xf]
        %v1013 = vld [vmem:[%s987 + $0x64] sm:$0xf]
        %v1014 = vld [vmem:[%s987 + $0x68] sm:$0x1]
        %v1015 = vld [vmem:[%s987 + $0x6c] sm:$0xf]
        %v1016 = vld [vmem:[%s987 + $0x70] sm:$0xf]
        %v1017 = vld [vmem:[%s987 + $0x74] sm:$0x1]
        %v1018 = vld [vmem:[%s987 + $0x78] sm:$0xf]
        %v1019 = vld [vmem:[%s987 + $0x7c] sm:$0xf]
        %v1020 = vld [vmem:[%s987 + $0x80] sm:$0x1]
        %v1021 = vld [vmem:[%s987 + $0x84] sm:$0xf]
        %v1022 = vld [vmem:[%s987 + $0x88] sm:$0xf]
        %v1023 = vld [vmem:[%s987 + $0x8c] sm:$0x1]
        %v1024 = vld [vmem:[%s987 + $0x90] sm:$0xf]
        %v1025 = vld [vmem:[%s987 + $0x94] sm:$0xf]
        %v1026 = vld [vmem:[%s987 + $0x98] sm:$0x1]
        %v1027 = vld [vmem:[%s987 + $0x9c] sm:$0xf]
        %v1028 = vld [vmem:[%s987 + $0xa0] sm:$0xf]
        %v1029 = vld [vmem:[%s987 + $0xa4] sm:$0x1]
        %v1030 = vld [vmem:[%s987 + $0xa8] sm:$0xf]
        %v1031 = vld [vmem:[%s987 + $0xac] sm:$0xf]
        %v1032 = vld [vmem:[%s987 + $0xb0] sm:$0x1]
        %v1033 = vld [vmem:[%s987 + $0xb4] sm:$0xf]
        %v1034 = vld [vmem:[%s987 + $0xb8] sm:$0xf]
        %v1035 = vld [vmem:[%s987 + $0xbc] sm:$0x1]
        %v1068 = vunpack.c.l.b16 %v988
        %v1069 = vunpack.c.l.b16 %v989
        %v1070 = vunpack.c.l.b16 %v991
        %v1071 = vunpack.c.l.b16 %v992
        %v1072 = vunpack.c.l.b16 %v994
        %v1073 = vunpack.c.l.b16 %v995
        %v1074 = vunpack.c.l.b16 %v997
        %v1075 = vunpack.c.l.b16 %v998
        %v1076 = vunpack.c.l.b16 %v1000
        %v1077 = vunpack.c.l.b16 %v1001
        %v1078 = vunpack.c.l.b16 %v1003
        %v1079 = vunpack.c.l.b16 %v1004
        %v1080 = vunpack.c.l.b16 %v1006
        %v1081 = vunpack.c.l.b16 %v1007
        %v1082 = vunpack.c.l.b16 %v1009
        %v1083 = vunpack.c.l.b16 %v1010
        %v1084 = vunpack.c.l.b16 %v1012
        %v1085 = vunpack.c.l.b16 %v1013
        %v1086 = vunpack.c.l.b16 %v1015
        %v1087 = vunpack.c.l.b16 %v1016
        %v1088 = vunpack.c.l.b16 %v1018
        %v1089 = vunpack.c.l.b16 %v1019
        %v1090 = vunpack.c.l.b16 %v1021
        %v1091 = vunpack.c.l.b16 %v1022
        %v1092 = vunpack.c.l.b16 %v1024
        %v1093 = vunpack.c.l.b16 %v1025
        %v1094 = vunpack.c.l.b16 %v1027
        %v1095 = vunpack.c.l.b16 %v1028
        %v1096 = vunpack.c.l.b16 %v1030
        %v1097 = vunpack.c.l.b16 %v1031
        %v1098 = vunpack.c.l.b16 %v1033
        %v1099 = vunpack.c.l.b16 %v1034
        %v1100 = vpack.c.b16 %v1069, %v1068
        %v1101 = vpack.c.b16 %v1071, %v1070
        %v1102 = vpack.c.b16 %v1073, %v1072
        %v1103 = vpack.c.b16 %v1075, %v1074
        %v1104 = vpack.c.b16 %v1077, %v1076
        %v1105 = vpack.c.b16 %v1079, %v1078
        %v1106 = vpack.c.b16 %v1081, %v1080
        %v1107 = vpack.c.b16 %v1083, %v1082
        %v1108 = vpack.c.b16 %v1085, %v1084
        %v1109 = vpack.c.b16 %v1087, %v1086
        %v1110 = vpack.c.b16 %v1089, %v1088
        %v1111 = vpack.c.b16 %v1091, %v1090
        %v1112 = vpack.c.b16 %v1093, %v1092
        %v1113 = vpack.c.b16 %v1095, %v1094
        %v1114 = vpack.c.b16 %v1097, %v1096
        %v1115 = vpack.c.b16 %v1099, %v1098
        %v1132 = vunpack.c.l.b16 %v990
        %v1133 = vunpack.c.l.b16 %v993
        %v1134 = vunpack.c.l.b16 %v996
        %v1135 = vunpack.c.l.b16 %v999
        %v1136 = vunpack.c.l.b16 %v1002
        %v1137 = vunpack.c.l.b16 %v1005
        %v1138 = vunpack.c.l.b16 %v1008
        %v1139 = vunpack.c.l.b16 %v1011
        %v1140 = vunpack.c.l.b16 %v1014
        %v1141 = vunpack.c.l.b16 %v1017
        %v1142 = vunpack.c.l.b16 %v1020
        %v1143 = vunpack.c.l.b16 %v1023
        %v1144 = vunpack.c.l.b16 %v1026
        %v1145 = vunpack.c.l.b16 %v1029
        %v1146 = vunpack.c.l.b16 %v1032
        %v1147 = vunpack.c.l.b16 %v1035
        %v1148 = vpack.c.b16 %v1132, %v1132
        %v1149 = vpack.c.b16 %v1133, %v1133
        %v1150 = vpack.c.b16 %v1134, %v1134
        %v1151 = vpack.c.b16 %v1135, %v1135
        %v1152 = vpack.c.b16 %v1136, %v1136
        %v1153 = vpack.c.b16 %v1137, %v1137
        %v1154 = vpack.c.b16 %v1138, %v1138
        %v1155 = vpack.c.b16 %v1139, %v1139
        %v1156 = vpack.c.b16 %v1140, %v1140
        %v1157 = vpack.c.b16 %v1141, %v1141
        %v1158 = vpack.c.b16 %v1142, %v1142
        %v1159 = vpack.c.b16 %v1143, %v1143
        %v1160 = vpack.c.b16 %v1144, %v1144
        %v1161 = vpack.c.b16 %v1145, %v1145
        %v1162 = vpack.c.b16 %v1146, %v1146
        %v1163 = vpack.c.b16 %v1147, %v1147
        %vm1164 = vsmask.f32 7424
        %v1166 = vshrl.u32 %v1100, 16
        %v1168 = vshll.u32 %v1100, 16
        %v1170 = vrot.slane %v1168, 1
        %v1171 = vor.u32 %v1166, %v1170
        %v1173 = vshll.u32 %v1148, 16
        %v1175 = vrot.slane %v1173, 1
        %v1176 = vsel %vm1164, %v1171, %v1175
        %v1178 = vshrl.u32 %v1101, 16
        %v1180 = vshll.u32 %v1101, 16
        %v1182 = vrot.slane %v1180, 1
        %v1183 = vor.u32 %v1178, %v1182
        %v1185 = vshll.u32 %v1149, 16
        %v1187 = vrot.slane %v1185, 1
        %v1188 = vsel %vm1164, %v1183, %v1187
        %v1190 = vshrl.u32 %v1102, 16
        %v1192 = vshll.u32 %v1102, 16
        %v1194 = vrot.slane %v1192, 1
        %v1195 = vor.u32 %v1190, %v1194
        %v1197 = vshll.u32 %v1150, 16
        %v1199 = vrot.slane %v1197, 1
        %v1200 = vsel %vm1164, %v1195, %v1199
        %v1202 = vshrl.u32 %v1103, 16
        %v1204 = vshll.u32 %v1103, 16
        %v1206 = vrot.slane %v1204, 1
        %v1207 = vor.u32 %v1202, %v1206
        %v1209 = vshll.u32 %v1151, 16
        %v1211 = vrot.slane %v1209, 1
        %v1212 = vsel %vm1164, %v1207, %v1211
        %v1214 = vshrl.u32 %v1104, 16
        %v1216 = vshll.u32 %v1104, 16
        %v1218 = vrot.slane %v1216, 1
        %v1219 = vor.u32 %v1214, %v1218
        %v1221 = vshll.u32 %v1152, 16
        %v1223 = vrot.slane %v1221, 1
        %v1224 = vsel %vm1164, %v1219, %v1223
        %v1226 = vshrl.u32 %v1105, 16
        %v1228 = vshll.u32 %v1105, 16
        %v1230 = vrot.slane %v1228, 1
        %v1231 = vor.u32 %v1226, %v1230
        %v1233 = vshll.u32 %v1153, 16
        %v1235 = vrot.slane %v1233, 1
        %v1236 = vsel %vm1164, %v1231, %v1235
        %v1238 = vshrl.u32 %v1106, 16
        %v1240 = vshll.u32 %v1106, 16
        %v1242 = vrot.slane %v1240, 1
        %v1243 = vor.u32 %v1238, %v1242
        %v1245 = vshll.u32 %v1154, 16
        %v1247 = vrot.slane %v1245, 1
        %v1248 = vsel %vm1164, %v1243, %v1247
        %v1250 = vshrl.u32 %v1107, 16
        %v1252 = vshll.u32 %v1107, 16
        %v1254 = vrot.slane %v1252, 1
        %v1255 = vor.u32 %v1250, %v1254
        %v1257 = vshll.u32 %v1155, 16
        %v1259 = vrot.slane %v1257, 1
        %v1260 = vsel %vm1164, %v1255, %v1259
        %v1262 = vshrl.u32 %v1108, 16
        %v1264 = vshll.u32 %v1108, 16
        %v1266 = vrot.slane %v1264, 1
        %v1267 = vor.u32 %v1262, %v1266
        %v1269 = vshll.u32 %v1156, 16
        %v1271 = vrot.slane %v1269, 1
        %v1272 = vsel %vm1164, %v1267, %v1271
        %v1274 = vshrl.u32 %v1109, 16
        %v1276 = vshll.u32 %v1109, 16
        %v1278 = vrot.slane %v1276, 1
        %v1279 = vor.u32 %v1274, %v1278
        %v1281 = vshll.u32 %v1157, 16
        %v1283 = vrot.slane %v1281, 1
        %v1284 = vsel %vm1164, %v1279, %v1283
        %v1286 = vshrl.u32 %v1110, 16
        %v1288 = vshll.u32 %v1110, 16
        %v1290 = vrot.slane %v1288, 1
        %v1291 = vor.u32 %v1286, %v1290
        %v1293 = vshll.u32 %v1158, 16
        %v1295 = vrot.slane %v1293, 1
        %v1296 = vsel %vm1164, %v1291, %v1295
        %v1298 = vshrl.u32 %v1111, 16
        %v1300 = vshll.u32 %v1111, 16
        %v1302 = vrot.slane %v1300, 1
        %v1303 = vor.u32 %v1298, %v1302
        %v1305 = vshll.u32 %v1159, 16
        %v1307 = vrot.slane %v1305, 1
        %v1308 = vsel %vm1164, %v1303, %v1307
        %v1310 = vshrl.u32 %v1112, 16
        %v1312 = vshll.u32 %v1112, 16
        %v1314 = vrot.slane %v1312, 1
        %v1315 = vor.u32 %v1310, %v1314
        %v1317 = vshll.u32 %v1160, 16
        %v1319 = vrot.slane %v1317, 1
        %v1320 = vsel %vm1164, %v1315, %v1319
        %v1322 = vshrl.u32 %v1113, 16
        %v1324 = vshll.u32 %v1113, 16
        %v1326 = vrot.slane %v1324, 1
        %v1327 = vor.u32 %v1322, %v1326
        %v1329 = vshll.u32 %v1161, 16
        %v1331 = vrot.slane %v1329, 1
        %v1332 = vsel %vm1164, %v1327, %v1331
        %v1334 = vshrl.u32 %v1114, 16
        %v1336 = vshll.u32 %v1114, 16
        %v1338 = vrot.slane %v1336, 1
        %v1339 = vor.u32 %v1334, %v1338
        %v1341 = vshll.u32 %v1162, 16
        %v1343 = vrot.slane %v1341, 1
        %v1344 = vsel %vm1164, %v1339, %v1343
        %v1346 = vshrl.u32 %v1115, 16
        %v1348 = vshll.u32 %v1115, 16
        %v1350 = vrot.slane %v1348, 1
        %v1351 = vor.u32 %v1346, %v1350
        %v1353 = vshll.u32 %v1163, 16
        %v1355 = vrot.slane %v1353, 1
        %v1356 = vsel %vm1164, %v1351, %v1355
        %1357 = vrot.lane.b32.xlu0 %v1176, 4
        %v1358 = vpop.permute.xlu0 %1357
        %1359 = vrot.lane.b32.xlu0 %v1188, 4
        %v1360 = vpop.permute.xlu0 %1359
        %1361 = vrot.lane.b32.xlu0 %v1200, 4
        %v1362 = vpop.permute.xlu0 %1361
        %1363 = vrot.lane.b32.xlu0 %v1212, 4
        %v1364 = vpop.permute.xlu0 %1363
        %1365 = vrot.lane.b32.xlu0 %v1224, 4
        %v1366 = vpop.permute.xlu0 %1365
        %1367 = vrot.lane.b32.xlu0 %v1236, 4
        %v1368 = vpop.permute.xlu0 %1367
        %1369 = vrot.lane.b32.xlu0 %v1248, 4
        %v1370 = vpop.permute.xlu0 %1369
        %1371 = vrot.lane.b32.xlu0 %v1260, 4
        %v1372 = vpop.permute.xlu0 %1371
        %1373 = vrot.lane.b32.xlu0 %v1272, 4
        %v1374 = vpop.permute.xlu0 %1373
        %1375 = vrot.lane.b32.xlu0 %v1284, 4
        %v1376 = vpop.permute.xlu0 %1375
        %1377 = vrot.lane.b32.xlu0 %v1296, 4
        %v1378 = vpop.permute.xlu0 %1377
        %1379 = vrot.lane.b32.xlu0 %v1308, 4
        %v1380 = vpop.permute.xlu0 %1379
        %1381 = vrot.lane.b32.xlu0 %v1320, 4
        %v1382 = vpop.permute.xlu0 %1381
        %1383 = vrot.lane.b32.xlu0 %v1332, 4
        %v1384 = vpop.permute.xlu0 %1383
        %1385 = vrot.lane.b32.xlu0 %v1344, 4
        %v1386 = vpop.permute.xlu0 %1385
        %1387 = vrot.lane.b32.xlu0 %v1356, 4
        %v1388 = vpop.permute.xlu0 %1387
        %vm1389 = vcmask 1046528
        %v1390 = vrot.slane %v1100, 1
        %v1391 = vrot.slane %v1148, 1
        %v1392 = vsel %vm1389, %v1390, %v1391
        %v1393 = vrot.slane %v1101, 1
        %v1394 = vrot.slane %v1149, 1
        %v1395 = vsel %vm1389, %v1393, %v1394
        %v1396 = vrot.slane %v1102, 1
        %v1397 = vrot.slane %v1150, 1
        %v1398 = vsel %vm1389, %v1396, %v1397
        %v1399 = vrot.slane %v1103, 1
        %v1400 = vrot.slane %v1151, 1
        %v1401 = vsel %vm1389, %v1399, %v1400
        %v1402 = vrot.slane %v1104, 1
        %v1403 = vrot.slane %v1152, 1
        %v1404 = vsel %vm1389, %v1402, %v1403
        %v1405 = vrot.slane %v1105, 1
        %v1406 = vrot.slane %v1153, 1
        %v1407 = vsel %vm1389, %v1405, %v1406
        %v1408 = vrot.slane %v1106, 1
        %v1409 = vrot.slane %v1154, 1
        %v1410 = vsel %vm1389, %v1408, %v1409
        %v1411 = vrot.slane %v1107, 1
        %v1412 = vrot.slane %v1155, 1
        %v1413 = vsel %vm1389, %v1411, %v1412
        %v1414 = vrot.slane %v1108, 1
        %v1415 = vrot.slane %v1156, 1
        %v1416 = vsel %vm1389, %v1414, %v1415
        %v1417 = vrot.slane %v1109, 1
        %v1418 = vrot.slane %v1157, 1
        %v1419 = vsel %vm1389, %v1417, %v1418
        %v1420 = vrot.slane %v1110, 1
        %v1421 = vrot.slane %v1158, 1
        %v1422 = vsel %vm1389, %v1420, %v1421
        %v1423 = vrot.slane %v1111, 1
        %v1424 = vrot.slane %v1159, 1
        %v1425 = vsel %vm1389, %v1423, %v1424
        %v1426 = vrot.slane %v1112, 1
        %v1427 = vrot.slane %v1160, 1
        %v1428 = vsel %vm1389, %v1426, %v1427
        %v1429 = vrot.slane %v1113, 1
        %v1430 = vrot.slane %v1161, 1
        %v1431 = vsel %vm1389, %v1429, %v1430
        %v1432 = vrot.slane %v1114, 1
        %v1433 = vrot.slane %v1162, 1
        %v1434 = vsel %vm1389, %v1432, %v1433
        %v1435 = vrot.slane %v1115, 1
        %v1436 = vrot.slane %v1163, 1
        %v1437 = vsel %vm1389, %v1435, %v1436
        %1438 = vrot.lane.b32.xlu0 %v1392, 8
        %v1439 = vpop.permute.xlu0 %1438
        %1440 = vrot.lane.b32.xlu0 %v1395, 8
        %v1441 = vpop.permute.xlu0 %1440
        %1442 = vrot.lane.b32.xlu0 %v1398, 8
        %v1443 = vpop.permute.xlu0 %1442
        %1444 = vrot.lane.b32.xlu0 %v1401, 8
        %v1445 = vpop.permute.xlu0 %1444
        %1446 = vrot.lane.b32.xlu0 %v1404, 8
        %v1447 = vpop.permute.xlu0 %1446
        %1448 = vrot.lane.b32.xlu0 %v1407, 8
        %v1449 = vpop.permute.xlu0 %1448
        %1450 = vrot.lane.b32.xlu0 %v1410, 8
        %v1451 = vpop.permute.xlu0 %1450
        %1452 = vrot.lane.b32.xlu0 %v1413, 8
        %v1453 = vpop.permute.xlu0 %1452
        %1454 = vrot.lane.b32.xlu0 %v1416, 8
        %v1455 = vpop.permute.xlu0 %1454
        %1456 = vrot.lane.b32.xlu0 %v1419, 8
        %v1457 = vpop.permute.xlu0 %1456
        %1458 = vrot.lane.b32.xlu0 %v1422, 8
        %v1459 = vpop.permute.xlu0 %1458
        %1460 = vrot.lane.b32.xlu0 %v1425, 8
        %v1461 = vpop.permute.xlu0 %1460
        %1462 = vrot.lane.b32.xlu0 %v1428, 8
        %v1463 = vpop.permute.xlu0 %1462
        %1464 = vrot.lane.b32.xlu0 %v1431, 8
        %v1465 = vpop.permute.xlu0 %1464
        %1466 = vrot.lane.b32.xlu0 %v1434, 8
        %v1467 = vpop.permute.xlu0 %1466
        %1468 = vrot.lane.b32.xlu0 %v1437, 8
        %v1469 = vpop.permute.xlu0 %1468
        %vm1470 = vcmask 31744
        %v1472 = vsel %vm1470, %v1100, %v1358
        %v1474 = vsel %vm1470, %v1101, %v1360
        %v1476 = vsel %vm1470, %v1102, %v1362
        %v1478 = vsel %vm1470, %v1103, %v1364
        %v1480 = vsel %vm1470, %v1104, %v1366
        %v1482 = vsel %vm1470, %v1105, %v1368
        %v1484 = vsel %vm1470, %v1106, %v1370
        %v1486 = vsel %vm1470, %v1107, %v1372
        %v1488 = vsel %vm1470, %v1108, %v1374
        %v1490 = vsel %vm1470, %v1109, %v1376
        %v1492 = vsel %vm1470, %v1110, %v1378
        %v1494 = vsel %vm1470, %v1111, %v1380
        %v1496 = vsel %vm1470, %v1112, %v1382
        %v1498 = vsel %vm1470, %v1113, %v1384
        %v1500 = vsel %vm1470, %v1114, %v1386
        %v1502 = vsel %vm1470, %v1115, %v1388
        %vm1503 = vcmask 64512
        %v1505 = vsel %vm1503, %v1472, %v1439
        %v1507 = vsel %vm1503, %v1474, %v1441
        %v1509 = vsel %vm1503, %v1476, %v1443
        %v1511 = vsel %vm1503, %v1478, %v1445
        %v1513 = vsel %vm1503, %v1480, %v1447
        %v1515 = vsel %vm1503, %v1482, %v1449
        %v1517 = vsel %vm1503, %v1484, %v1451
        %v1519 = vsel %vm1503, %v1486, %v1453
        %v1521 = vsel %vm1503, %v1488, %v1455
        %v1523 = vsel %vm1503, %v1490, %v1457
        %v1525 = vsel %vm1503, %v1492, %v1459
        %v1527 = vsel %vm1503, %v1494, %v1461
        %v1529 = vsel %vm1503, %v1496, %v1463
        %v1531 = vsel %vm1503, %v1498, %v1465
        %v1533 = vsel %vm1503, %v1500, %v1467
        %v1535 = vsel %vm1503, %v1502, %v1469
        %s1536 = sadd.s32 %s963, 1
        %s1537 = smul.u32 %s1536, 3
        %s1538 = smul.addr %s1537, 4
        %s1539 = scalar_lea.vmem [#allocation2], %s1538
        %v1540 = vld [vmem:[%s1539] sm:$0xf]
        %v1541 = vld [vmem:[%s1539 + $0x4] sm:$0xf]
        %v1542 = vld [vmem:[%s1539 + $0x8] sm:$0x1]
        %v1543 = vld [vmem:[%s1539 + $0xc] sm:$0xf]
        %v1544 = vld [vmem:[%s1539 + $0x10] sm:$0xf]
        %v1545 = vld [vmem:[%s1539 + $0x14] sm:$0x1]
        %v1546 = vld [vmem:[%s1539 + $0x18] sm:$0xf]
        %v1547 = vld [vmem:[%s1539 + $0x1c] sm:$0xf]
        %v1548 = vld [vmem:[%s1539 + $0x20] sm:$0x1]
        %v1549 = vld [vmem:[%s1539 + $0x24] sm:$0xf]
        %v1550 = vld [vmem:[%s1539 + $0x28] sm:$0xf]
        %v1551 = vld [vmem:[%s1539 + $0x2c] sm:$0x1]
        %v1552 = vld [vmem:[%s1539 + $0x30] sm:$0xf]
        %v1553 = vld [vmem:[%s1539 + $0x34] sm:$0xf]
        %v1554 = vld [vmem:[%s1539 + $0x38] sm:$0x1]
        %v1555 = vld [vmem:[%s1539 + $0x3c] sm:$0xf]
        %v1556 = vld [vmem:[%s1539 + $0x40] sm:$0xf]
        %v1557 = vld [vmem:[%s1539 + $0x44] sm:$0x1]
        %v1558 = vld [vmem:[%s1539 + $0x48] sm:$0xf]
        %v1559 = vld [vmem:[%s1539 + $0x4c] sm:$0xf]
        %v1560 = vld [vmem:[%s1539 + $0x50] sm:$0x1]
        %v1561 = vld [vmem:[%s1539 + $0x54] sm:$0xf]
        %v1562 = vld [vmem:[%s1539 + $0x58] sm:$0xf]
        %v1563 = vld [vmem:[%s1539 + $0x5c] sm:$0x1]
        %v1564 = vld [vmem:[%s1539 + $0x60] sm:$0xf]
        %v1565 = vld [vmem:[%s1539 + $0x64] sm:$0xf]
        %v1566 = vld [vmem:[%s1539 + $0x68] sm:$0x1]
        %v1567 = vld [vmem:[%s1539 + $0x6c] sm:$0xf]
        %v1568 = vld [vmem:[%s1539 + $0x70] sm:$0xf]
        %v1569 = vld [vmem:[%s1539 + $0x74] sm:$0x1]
        %v1570 = vld [vmem:[%s1539 + $0x78] sm:$0xf]
        %v1571 = vld [vmem:[%s1539 + $0x7c] sm:$0xf]
        %v1572 = vld [vmem:[%s1539 + $0x80] sm:$0x1]
        %v1573 = vld [vmem:[%s1539 + $0x84] sm:$0xf]
        %v1574 = vld [vmem:[%s1539 + $0x88] sm:$0xf]
        %v1575 = vld [vmem:[%s1539 + $0x8c] sm:$0x1]
        %v1576 = vld [vmem:[%s1539 + $0x90] sm:$0xf]
        %v1577 = vld [vmem:[%s1539 + $0x94] sm:$0xf]
        %v1578 = vld [vmem:[%s1539 + $0x98] sm:$0x1]
        %v1579 = vld [vmem:[%s1539 + $0x9c] sm:$0xf]
        %v1580 = vld [vmem:[%s1539 + $0xa0] sm:$0xf]
        %v1581 = vld [vmem:[%s1539 + $0xa4] sm:$0x1]
        %v1582 = vld [vmem:[%s1539 + $0xa8] sm:$0xf]
        %v1583 = vld [vmem:[%s1539 + $0xac] sm:$0xf]
        %v1584 = vld [vmem:[%s1539 + $0xb0] sm:$0x1]
        %v1585 = vld [vmem:[%s1539 + $0xb4] sm:$0xf]
        %v1586 = vld [vmem:[%s1539 + $0xb8] sm:$0xf]
        %v1587 = vld [vmem:[%s1539 + $0xbc] sm:$0x1]
        %v1620 = vunpack.c.l.b16 %v1540
        %v1621 = vunpack.c.l.b16 %v1541
        %v1622 = vunpack.c.l.b16 %v1543
        %v1623 = vunpack.c.l.b16 %v1544
        %v1624 = vunpack.c.l.b16 %v1546
        %v1625 = vunpack.c.l.b16 %v1547
        %v1626 = vunpack.c.l.b16 %v1549
        %v1627 = vunpack.c.l.b16 %v1550
        %v1628 = vunpack.c.l.b16 %v1552
        %v1629 = vunpack.c.l.b16 %v1553
        %v1630 = vunpack.c.l.b16 %v1555
        %v1631 = vunpack.c.l.b16 %v1556
        %v1632 = vunpack.c.l.b16 %v1558
        %v1633 = vunpack.c.l.b16 %v1559
        %v1634 = vunpack.c.l.b16 %v1561
        %v1635 = vunpack.c.l.b16 %v1562
        %v1636 = vunpack.c.l.b16 %v1564
        %v1637 = vunpack.c.l.b16 %v1565
        %v1638 = vunpack.c.l.b16 %v1567
        %v1639 = vunpack.c.l.b16 %v1568
        %v1640 = vunpack.c.l.b16 %v1570
        %v1641 = vunpack.c.l.b16 %v1571
        %v1642 = vunpack.c.l.b16 %v1573
        %v1643 = vunpack.c.l.b16 %v1574
        %v1644 = vunpack.c.l.b16 %v1576
        %v1645 = vunpack.c.l.b16 %v1577
        %v1646 = vunpack.c.l.b16 %v1579
        %v1647 = vunpack.c.l.b16 %v1580
        %v1648 = vunpack.c.l.b16 %v1582
        %v1649 = vunpack.c.l.b16 %v1583
        %v1650 = vunpack.c.l.b16 %v1585
        %v1651 = vunpack.c.l.b16 %v1586
        %v1652 = vpack.c.b16 %v1621, %v1620
        %v1653 = vpack.c.b16 %v1623, %v1622
        %v1654 = vpack.c.b16 %v1625, %v1624
        %v1655 = vpack.c.b16 %v1627, %v1626
        %v1656 = vpack.c.b16 %v1629, %v1628
        %v1657 = vpack.c.b16 %v1631, %v1630
        %v1658 = vpack.c.b16 %v1633, %v1632
        %v1659 = vpack.c.b16 %v1635, %v1634
        %v1660 = vpack.c.b16 %v1637, %v1636
        %v1661 = vpack.c.b16 %v1639, %v1638
        %v1662 = vpack.c.b16 %v1641, %v1640
        %v1663 = vpack.c.b16 %v1643, %v1642
        %v1664 = vpack.c.b16 %v1645, %v1644
        %v1665 = vpack.c.b16 %v1647, %v1646
        %v1666 = vpack.c.b16 %v1649, %v1648
        %v1667 = vpack.c.b16 %v1651, %v1650
        %v1684 = vunpack.c.l.b16 %v1542
        %v1685 = vunpack.c.l.b16 %v1545
        %v1686 = vunpack.c.l.b16 %v1548
        %v1687 = vunpack.c.l.b16 %v1551
        %v1688 = vunpack.c.l.b16 %v1554
        %v1689 = vunpack.c.l.b16 %v1557
        %v1690 = vunpack.c.l.b16 %v1560
        %v1691 = vunpack.c.l.b16 %v1563
        %v1692 = vunpack.c.l.b16 %v1566
        %v1693 = vunpack.c.l.b16 %v1569
        %v1694 = vunpack.c.l.b16 %v1572
        %v1695 = vunpack.c.l.b16 %v1575
        %v1696 = vunpack.c.l.b16 %v1578
        %v1697 = vunpack.c.l.b16 %v1581
        %v1698 = vunpack.c.l.b16 %v1584
        %v1699 = vunpack.c.l.b16 %v1587
        %v1700 = vpack.c.b16 %v1684, %v1684
        %v1701 = vpack.c.b16 %v1685, %v1685
        %v1702 = vpack.c.b16 %v1686, %v1686
        %v1703 = vpack.c.b16 %v1687, %v1687
        %v1704 = vpack.c.b16 %v1688, %v1688
        %v1705 = vpack.c.b16 %v1689, %v1689
        %v1706 = vpack.c.b16 %v1690, %v1690
        %v1707 = vpack.c.b16 %v1691, %v1691
        %v1708 = vpack.c.b16 %v1692, %v1692
        %v1709 = vpack.c.b16 %v1693, %v1693
        %v1710 = vpack.c.b16 %v1694, %v1694
        %v1711 = vpack.c.b16 %v1695, %v1695
        %v1712 = vpack.c.b16 %v1696, %v1696
        %v1713 = vpack.c.b16 %v1697, %v1697
        %v1714 = vpack.c.b16 %v1698, %v1698
        %v1715 = vpack.c.b16 %v1699, %v1699
        %v1717 = vshrl.u32 %v1652, 16
        %v1719 = vshll.u32 %v1652, 16
        %v1721 = vrot.slane %v1719, 1
        %v1722 = vor.u32 %v1717, %v1721
        %v1724 = vshll.u32 %v1700, 16
        %v1726 = vrot.slane %v1724, 1
        %v1727 = vsel %vm1164, %v1722, %v1726
        %v1729 = vshrl.u32 %v1653, 16
        %v1731 = vshll.u32 %v1653, 16
        %v1733 = vrot.slane %v1731, 1
        %v1734 = vor.u32 %v1729, %v1733
        %v1736 = vshll.u32 %v1701, 16
        %v1738 = vrot.slane %v1736, 1
        %v1739 = vsel %vm1164, %v1734, %v1738
        %v1741 = vshrl.u32 %v1654, 16
        %v1743 = vshll.u32 %v1654, 16
        %v1745 = vrot.slane %v1743, 1
        %v1746 = vor.u32 %v1741, %v1745
        %v1748 = vshll.u32 %v1702, 16
        %v1750 = vrot.slane %v1748, 1
        %v1751 = vsel %vm1164, %v1746, %v1750
        %v1753 = vshrl.u32 %v1655, 16
        %v1755 = vshll.u32 %v1655, 16
        %v1757 = vrot.slane %v1755, 1
        %v1758 = vor.u32 %v1753, %v1757
        %v1760 = vshll.u32 %v1703, 16
        %v1762 = vrot.slane %v1760, 1
        %v1763 = vsel %vm1164, %v1758, %v1762
        %v1765 = vshrl.u32 %v1656, 16
        %v1767 = vshll.u32 %v1656, 16
        %v1769 = vrot.slane %v1767, 1
        %v1770 = vor.u32 %v1765, %v1769
        %v1772 = vshll.u32 %v1704, 16
        %v1774 = vrot.slane %v1772, 1
        %v1775 = vsel %vm1164, %v1770, %v1774
        %v1777 = vshrl.u32 %v1657, 16
        %v1779 = vshll.u32 %v1657, 16
        %v1781 = vrot.slane %v1779, 1
        %v1782 = vor.u32 %v1777, %v1781
        %v1784 = vshll.u32 %v1705, 16
        %v1786 = vrot.slane %v1784, 1
        %v1787 = vsel %vm1164, %v1782, %v1786
        %v1789 = vshrl.u32 %v1658, 16
        %v1791 = vshll.u32 %v1658, 16
        %v1793 = vrot.slane %v1791, 1
        %v1794 = vor.u32 %v1789, %v1793
        %v1796 = vshll.u32 %v1706, 16
        %v1798 = vrot.slane %v1796, 1
        %v1799 = vsel %vm1164, %v1794, %v1798
        %v1801 = vshrl.u32 %v1659, 16
        %v1803 = vshll.u32 %v1659, 16
        %v1805 = vrot.slane %v1803, 1
        %v1806 = vor.u32 %v1801, %v1805
        %v1808 = vshll.u32 %v1707, 16
        %v1810 = vrot.slane %v1808, 1
        %v1811 = vsel %vm1164, %v1806, %v1810
        %v1813 = vshrl.u32 %v1660, 16
        %v1815 = vshll.u32 %v1660, 16
        %v1817 = vrot.slane %v1815, 1
        %v1818 = vor.u32 %v1813, %v1817
        %v1820 = vshll.u32 %v1708, 16
        %v1822 = vrot.slane %v1820, 1
        %v1823 = vsel %vm1164, %v1818, %v1822
        %v1825 = vshrl.u32 %v1661, 16
        %v1827 = vshll.u32 %v1661, 16
        %v1829 = vrot.slane %v1827, 1
        %v1830 = vor.u32 %v1825, %v1829
        %v1832 = vshll.u32 %v1709, 16
        %v1834 = vrot.slane %v1832, 1
        %v1835 = vsel %vm1164, %v1830, %v1834
        %v1837 = vshrl.u32 %v1662, 16
        %v1839 = vshll.u32 %v1662, 16
        %v1841 = vrot.slane %v1839, 1
        %v1842 = vor.u32 %v1837, %v1841
        %v1844 = vshll.u32 %v1710, 16
        %v1846 = vrot.slane %v1844, 1
        %v1847 = vsel %vm1164, %v1842, %v1846
        %v1849 = vshrl.u32 %v1663, 16
        %v1851 = vshll.u32 %v1663, 16
        %v1853 = vrot.slane %v1851, 1
        %v1854 = vor.u32 %v1849, %v1853
        %v1856 = vshll.u32 %v1711, 16
        %v1858 = vrot.slane %v1856, 1
        %v1859 = vsel %vm1164, %v1854, %v1858
        %v1861 = vshrl.u32 %v1664, 16
        %v1863 = vshll.u32 %v1664, 16
        %v1865 = vrot.slane %v1863, 1
        %v1866 = vor.u32 %v1861, %v1865
        %v1868 = vshll.u32 %v1712, 16
        %v1870 = vrot.slane %v1868, 1
        %v1871 = vsel %vm1164, %v1866, %v1870
        %v1873 = vshrl.u32 %v1665, 16
        %v1875 = vshll.u32 %v1665, 16
        %v1877 = vrot.slane %v1875, 1
        %v1878 = vor.u32 %v1873, %v1877
        %v1880 = vshll.u32 %v1713, 16
        %v1882 = vrot.slane %v1880, 1
        %v1883 = vsel %vm1164, %v1878, %v1882
        %v1885 = vshrl.u32 %v1666, 16
        %v1887 = vshll.u32 %v1666, 16
        %v1889 = vrot.slane %v1887, 1
        %v1890 = vor.u32 %v1885, %v1889
        %v1892 = vshll.u32 %v1714, 16
        %v1894 = vrot.slane %v1892, 1
        %v1895 = vsel %vm1164, %v1890, %v1894
        %v1897 = vshrl.u32 %v1667, 16
        %v1899 = vshll.u32 %v1667, 16
        %v1901 = vrot.slane %v1899, 1
        %v1902 = vor.u32 %v1897, %v1901
        %v1904 = vshll.u32 %v1715, 16
        %v1906 = vrot.slane %v1904, 1
        %v1907 = vsel %vm1164, %v1902, %v1906
        %1908 = vrot.lane.b32.xlu0 %v1727, 4
        %v1909 = vpop.permute.xlu0 %1908
        %1910 = vrot.lane.b32.xlu0 %v1739, 4
        %v1911 = vpop.permute.xlu0 %1910
        %1912 = vrot.lane.b32.xlu0 %v1751, 4
        %v1913 = vpop.permute.xlu0 %1912
        %1914 = vrot.lane.b32.xlu0 %v1763, 4
        %v1915 = vpop.permute.xlu0 %1914
        %1916 = vrot.lane.b32.xlu0 %v1775, 4
        %v1917 = vpop.permute.xlu0 %1916
        %1918 = vrot.lane.b32.xlu0 %v1787, 4
        %v1919 = vpop.permute.xlu0 %1918
        %1920 = vrot.lane.b32.xlu0 %v1799, 4
        %v1921 = vpop.permute.xlu0 %1920
        %1922 = vrot.lane.b32.xlu0 %v1811, 4
        %v1923 = vpop.permute.xlu0 %1922
        %1924 = vrot.lane.b32.xlu0 %v1823, 4
        %v1925 = vpop.permute.xlu0 %1924
        %1926 = vrot.lane.b32.xlu0 %v1835, 4
        %v1927 = vpop.permute.xlu0 %1926
        %1928 = vrot.lane.b32.xlu0 %v1847, 4
        %v1929 = vpop.permute.xlu0 %1928
        %1930 = vrot.lane.b32.xlu0 %v1859, 4
        %v1931 = vpop.permute.xlu0 %1930
        %1932 = vrot.lane.b32.xlu0 %v1871, 4
        %v1933 = vpop.permute.xlu0 %1932
        %1934 = vrot.lane.b32.xlu0 %v1883, 4
        %v1935 = vpop.permute.xlu0 %1934
        %1936 = vrot.lane.b32.xlu0 %v1895, 4
        %v1937 = vpop.permute.xlu0 %1936
        %1938 = vrot.lane.b32.xlu0 %v1907, 4
        %v1939 = vpop.permute.xlu0 %1938
        %v1940 = vrot.slane %v1652, 1
        %v1941 = vrot.slane %v1700, 1
        %v1942 = vsel %vm1389, %v1940, %v1941
        %v1943 = vrot.slane %v1653, 1
        %v1944 = vrot.slane %v1701, 1
        %v1945 = vsel %vm1389, %v1943, %v1944
        %v1946 = vrot.slane %v1654, 1
        %v1947 = vrot.slane %v1702, 1
        %v1948 = vsel %vm1389, %v1946, %v1947
        %v1949 = vrot.slane %v1655, 1
        %v1950 = vrot.slane %v1703, 1
        %v1951 = vsel %vm1389, %v1949, %v1950
        %v1952 = vrot.slane %v1656, 1
        %v1953 = vrot.slane %v1704, 1
        %v1954 = vsel %vm1389, %v1952, %v1953
        %v1955 = vrot.slane %v1657, 1
        %v1956 = vrot.slane %v1705, 1
        %v1957 = vsel %vm1389, %v1955, %v1956
        %v1958 = vrot.slane %v1658, 1
        %v1959 = vrot.slane %v1706, 1
        %v1960 = vsel %vm1389, %v1958, %v1959
        %v1961 = vrot.slane %v1659, 1
        %v1962 = vrot.slane %v1707, 1
        %v1963 = vsel %vm1389, %v1961, %v1962
        %v1964 = vrot.slane %v1660, 1
        %v1965 = vrot.slane %v1708, 1
        %v1966 = vsel %vm1389, %v1964, %v1965
        %v1967 = vrot.slane %v1661, 1
        %v1968 = vrot.slane %v1709, 1
        %v1969 = vsel %vm1389, %v1967, %v1968
        %v1970 = vrot.slane %v1662, 1
        %v1971 = vrot.slane %v1710, 1
        %v1972 = vsel %vm1389, %v1970, %v1971
        %v1973 = vrot.slane %v1663, 1
        %v1974 = vrot.slane %v1711, 1
        %v1975 = vsel %vm1389, %v1973, %v1974
        %v1976 = vrot.slane %v1664, 1
        %v1977 = vrot.slane %v1712, 1
        %v1978 = vsel %vm1389, %v1976, %v1977
        %v1979 = vrot.slane %v1665, 1
        %v1980 = vrot.slane %v1713, 1
        %v1981 = vsel %vm1389, %v1979, %v1980
        %v1982 = vrot.slane %v1666, 1
        %v1983 = vrot.slane %v1714, 1
        %v1984 = vsel %vm1389, %v1982, %v1983
        %v1985 = vrot.slane %v1667, 1
        %v1986 = vrot.slane %v1715, 1
        %v1987 = vsel %vm1389, %v1985, %v1986
        %1988 = vrot.lane.b32.xlu0 %v1942, 8
        %v1989 = vpop.permute.xlu0 %1988
        %1990 = vrot.lane.b32.xlu0 %v1945, 8
        %v1991 = vpop.permute.xlu0 %1990
        %1992 = vrot.lane.b32.xlu0 %v1948, 8
        %v1993 = vpop.permute.xlu0 %1992
        %1994 = vrot.lane.b32.xlu0 %v1951, 8
        %v1995 = vpop.permute.xlu0 %1994
        %1996 = vrot.lane.b32.xlu0 %v1954, 8
        %v1997 = vpop.permute.xlu0 %1996
        %1998 = vrot.lane.b32.xlu0 %v1957, 8
        %v1999 = vpop.permute.xlu0 %1998
        %2000 = vrot.lane.b32.xlu0 %v1960, 8
        %v2001 = vpop.permute.xlu0 %2000
        %2002 = vrot.lane.b32.xlu0 %v1963, 8
        %v2003 = vpop.permute.xlu0 %2002
        %2004 = vrot.lane.b32.xlu0 %v1966, 8
        %v2005 = vpop.permute.xlu0 %2004
        %2006 = vrot.lane.b32.xlu0 %v1969, 8
        %v2007 = vpop.permute.xlu0 %2006
        %2008 = vrot.lane.b32.xlu0 %v1972, 8
        %v2009 = vpop.permute.xlu0 %2008
        %2010 = vrot.lane.b32.xlu0 %v1975, 8
        %v2011 = vpop.permute.xlu0 %2010
        %2012 = vrot.lane.b32.xlu0 %v1978, 8
        %v2013 = vpop.permute.xlu0 %2012
        %2014 = vrot.lane.b32.xlu0 %v1981, 8
        %v2015 = vpop.permute.xlu0 %2014
        %2016 = vrot.lane.b32.xlu0 %v1984, 8
        %v2017 = vpop.permute.xlu0 %2016
        %2018 = vrot.lane.b32.xlu0 %v1987, 8
        %v2019 = vpop.permute.xlu0 %2018
        %v2021 = vsel %vm1470, %v1652, %v1909
        %v2023 = vsel %vm1470, %v1653, %v1911
        %v2025 = vsel %vm1470, %v1654, %v1913
        %v2027 = vsel %vm1470, %v1655, %v1915
        %v2029 = vsel %vm1470, %v1656, %v1917
        %v2031 = vsel %vm1470, %v1657, %v1919
        %v2033 = vsel %vm1470, %v1658, %v1921
        %v2035 = vsel %vm1470, %v1659, %v1923
        %v2037 = vsel %vm1470, %v1660, %v1925
        %v2039 = vsel %vm1470, %v1661, %v1927
        %v2041 = vsel %vm1470, %v1662, %v1929
        %v2043 = vsel %vm1470, %v1663, %v1931
        %v2045 = vsel %vm1470, %v1664, %v1933
        %v2047 = vsel %vm1470, %v1665, %v1935
        %v2049 = vsel %vm1470, %v1666, %v1937
        %v2051 = vsel %vm1470, %v1667, %v1939
        %v2053 = vsel %vm1503, %v2021, %v1989
        %v2055 = vsel %vm1503, %v2023, %v1991
        %v2057 = vsel %vm1503, %v2025, %v1993
        %v2059 = vsel %vm1503, %v2027, %v1995
        %v2061 = vsel %vm1503, %v2029, %v1997
        %v2063 = vsel %vm1503, %v2031, %v1999
        %v2065 = vsel %vm1503, %v2033, %v2001
        %v2067 = vsel %vm1503, %v2035, %v2003
        %v2069 = vsel %vm1503, %v2037, %v2005
        %v2071 = vsel %vm1503, %v2039, %v2007
        %v2073 = vsel %vm1503, %v2041, %v2009
        %v2075 = vsel %vm1503, %v2043, %v2011
        %v2077 = vsel %vm1503, %v2045, %v2013
        %v2079 = vsel %vm1503, %v2047, %v2015
        %v2081 = vsel %vm1503, %v2049, %v2017
        %v2083 = vsel %vm1503, %v2051, %v2019
        %v2086 = vunpack.c.l.b16 %v967
        %v2087 = vunpack.c.l.b16 %v968
        %v2088 = vpack.c.b16 %v2087, %v2086
        %vm2089 = vcmask 97280
        %v2090 = vsel %vm2089, %v2053, 0
        %v2092 = vsel %vm2089, %v2055, 0
        %v2094 = vsel %vm2089, %v2057, 0
        %v2096 = vsel %vm2089, %v2059, 0
        %v2098 = vsel %vm2089, %v2061, 0
        %v2100 = vsel %vm2089, %v2063, 0
        %v2102 = vsel %vm2089, %v2065, 0
        %v2104 = vsel %vm2089, %v2067, 0
        %v2106 = vsel %vm2089, %v2069, 0
        %v2108 = vsel %vm2089, %v2071, 0
        %v2110 = vsel %vm2089, %v2073, 0
        %v2112 = vsel %vm2089, %v2075, 0
        %v2114 = vsel %vm2089, %v2077, 0
        %v2116 = vsel %vm2089, %v2079, 0
        %v2118 = vsel %vm2089, %v2081, 0
        %v2120 = vsel %vm2089, %v2083, 0
        %vm2122 = vcmask 1045504
        %v2124 = vsel %vm2122, %v2088, 0
        %2126 = vmatprep.subr.bf16.mxu0 0
        %2127 = vmatpush1.bf16.msra.mxu0 %v2124
        %2128 = vmatprep.subr.bf16.mxu0 0
        %2129 = vmatpush1.bf16.msra.mxu0 0
        %2130 = vmatprep.subr.bf16.mxu0 0
        %2131 = vmatpush1.bf16.msra.mxu0 0
        %2132 = vmatprep.subr.bf16.mxu0 0
        %2133 = vmatpush1.bf16.msra.mxu0 0
        %2134 = vmatprep.subr.bf16.mxu0 0
        %2135 = vmatpush1.bf16.msra.mxu0 0
        %2136 = vmatprep.subr.bf16.mxu0 0
        %2137 = vmatpush1.bf16.msra.mxu0 0
        %2138 = vmatprep.subr.bf16.mxu0 0
        %2139 = vmatpush1.bf16.msra.mxu0 0
        %2140 = vmatprep.subr.bf16.mxu0 0
        %2141 = vmatpush1.bf16.msra.mxu0 0
        %2142 = vmatprep.subr.bf16.mxu0 0
        %2143 = vmatpush1.bf16.msra.mxu0 0
        %2144 = vmatprep.subr.bf16.mxu0 0
        %2145 = vmatpush1.bf16.msra.mxu0 0
        %2146 = vmatprep.subr.bf16.mxu0 0
        %2147 = vmatpush1.bf16.msra.mxu0 0
        %2148 = vmatprep.subr.bf16.mxu0 0
        %2149 = vmatpush1.bf16.msra.mxu0 0
        %2150 = vmatprep.subr.bf16.mxu0 0
        %2151 = vmatpush1.bf16.msra.mxu0 0
        %2152 = vmatprep.subr.bf16.mxu0 0
        %2153 = vmatpush1.bf16.msra.mxu0 0
        %2154 = vmatprep.subr.bf16.mxu0 0
        %2155 = vmatpush1.bf16.msra.mxu0 0
        %2156 = vmatprep.subr.bf16.mxu0 0
        %2157 = vmatpush1.bf16.msra.mxu0 0
        %2158 = vmatprep.mubr.bf16.mxu0 0
        %2159 = vmatmul.mubr.bf16.gmra.mrb[0].mxu0 %v2090
        %v2160 = vpop.f32.mrb[0].mxu0
        %v2161 = vadd.f32 0.0, %v2160
        %v2162 = vpop.f32.mrb[0].mxu0
        %v2163 = vpop.f32.mrb[0].mxu0
        %v2164 = vadd.f32 0.0, %v2163
        %v2165 = vpop.f32.mrb[0].mxu0
        %2166 = vmatprep.mubr.bf16.mxu0 0
        %2167 = vmatmul.mubr.bf16.gmra.mrb[0].mxu0 %v2092
        %v2168 = vpop.f32.mrb[0].mxu0
        %v2169 = vadd.f32 0.0, %v2168
        %v2170 = vpop.f32.mrb[0].mxu0
        %v2171 = vpop.f32.mrb[0].mxu0
        %v2172 = vadd.f32 0.0, %v2171
        %v2173 = vpop.f32.mrb[0].mxu0
        %2174 = vmatprep.mubr.bf16.mxu0 0
        %2175 = vmatmul.mubr.bf16.gmra.mrb[0].mxu0 %v2094
        %v2176 = vpop.f32.mrb[0].mxu0
        %v2177 = vadd.f32 0.0, %v2176
        %v2178 = vpop.f32.mrb[0].mxu0
        %v2179 = vpop.f32.mrb[0].mxu0
        %v2180 = vadd.f32 0.0, %v2179
        %v2181 = vpop.f32.mrb[0].mxu0
        %2182 = vmatprep.mubr.bf16.mxu0 0
        %2183 = vmatmul.mubr.bf16.gmra.mrb[0].mxu0 %v2096
        %v2184 = vpop.f32.mrb[0].mxu0
        %v2185 = vadd.f32 0.0, %v2184
        %v2186 = vpop.f32.mrb[0].mxu0
        %v2187 = vpop.f32.mrb[0].mxu0
        %v2188 = vadd.f32 0.0, %v2187
        %v2189 = vpop.f32.mrb[0].mxu0
        %2190 = vmatprep.mubr.bf16.mxu0 0
        %2191 = vmatmul.mubr.bf16.gmra.mrb[0].mxu0 %v2098
        %v2192 = vpop.f32.mrb[0].mxu0
        %v2193 = vadd.f32 0.0, %v2192
        %v2194 = vpop.f32.mrb[0].mxu0
        %v2195 = vpop.f32.mrb[0].mxu0
        %v2196 = vadd.f32 0.0, %v2195
        %v2197 = vpop.f32.mrb[0].mxu0
        %2198 = vmatprep.mubr.bf16.mxu0 0
        %2199 = vmatmul.mubr.bf16.gmra.mrb[0].mxu0 %v2100
        %v2200 = vpop.f32.mrb[0].mxu0
        %v2201 = vadd.f32 0.0, %v2200
        %v2202 = vpop.f32.mrb[0].mxu0
        %v2203 = vpop.f32.mrb[0].mxu0
        %v2204 = vadd.f32 0.0, %v2203
        %v2205 = vpop.f32.mrb[0].mxu0
        %2206 = vmatprep.mubr.bf16.mxu0 0
        %2207 = vmatmul.mubr.bf16.gmra.mrb[0].mxu0 %v2102
        %v2208 = vpop.f32.mrb[0].mxu0
        %v2209 = vadd.f32 0.0, %v2208
        %v2210 = vpop.f32.mrb[0].mxu0
        %v2211 = vpop.f32.mrb[0].mxu0
        %v2212 = vadd.f32 0.0, %v2211
        %v2213 = vpop.f32.mrb[0].mxu0
        %2214 = vmatprep.mubr.bf16.mxu0 0
        %2215 = vmatmul.mubr.bf16.gmra.mrb[0].mxu0 %v2104
        %v2216 = vpop.f32.mrb[0].mxu0
        %v2217 = vadd.f32 0.0, %v2216
        %v2218 = vpop.f32.mrb[0].mxu0
        %v2219 = vpop.f32.mrb[0].mxu0
        %v2220 = vadd.f32 0.0, %v2219
        %v2221 = vpop.f32.mrb[0].mxu0
        %2222 = vmatprep.mubr.bf16.mxu0 0
        %2223 = vmatmul.mubr.bf16.gmra.mrb[0].mxu0 %v2106
        %v2224 = vpop.f32.mrb[0].mxu0
        %v2225 = vadd.f32 0.0, %v2224
        %v2226 = vpop.f32.mrb[0].mxu0
        %v2227 = vpop.f32.mrb[0].mxu0
        %v2228 = vadd.f32 0.0, %v2227
        %v2229 = vpop.f32.mrb[0].mxu0
        %2230 = vmatprep.mubr.bf16.mxu0 0
        %2231 = vmatmul.mubr.bf16.gmra.mrb[0].mxu0 %v2108
        %v2232 = vpop.f32.mrb[0].mxu0
        %v2233 = vadd.f32 0.0, %v2232
        %v2234 = vpop.f32.mrb[0].mxu0
        %v2235 = vpop.f32.mrb[0].mxu0
        %v2236 = vadd.f32 0.0, %v2235
        %v2237 = vpop.f32.mrb[0].mxu0
        %2238 = vmatprep.mubr.bf16.mxu0 0
        %2239 = vmatmul.mubr.bf16.gmra.mrb[0].mxu0 %v2110
        %v2240 = vpop.f32.mrb[0].mxu0
        %v2241 = vadd.f32 0.0, %v2240
        %v2242 = vpop.f32.mrb[0].mxu0
        %v2243 = vpop.f32.mrb[0].mxu0
        %v2244 = vadd.f32 0.0, %v2243
        %v2245 = vpop.f32.mrb[0].mxu0
        %2246 = vmatprep.mubr.bf16.mxu0 0
        %2247 = vmatmul.mubr.bf16.gmra.mrb[0].mxu0 %v2112
        %v2248 = vpop.f32.mrb[0].mxu0
        %v2249 = vadd.f32 0.0, %v2248
        %v2250 = vpop.f32.mrb[0].mxu0
        %v2251 = vpop.f32.mrb[0].mxu0
        %v2252 = vadd.f32 0.0, %v2251
        %v2253 = vpop.f32.mrb[0].mxu0
        %2254 = vmatprep.mubr.bf16.mxu0 0
        %2255 = vmatmul.mubr.bf16.gmra.mrb[0].mxu0 %v2114
        %v2256 = vpop.f32.mrb[0].mxu0
        %v2257 = vadd.f32 0.0, %v2256
        %v2258 = vpop.f32.mrb[0].mxu0
        %v2259 = vpop.f32.mrb[0].mxu0
        %v2260 = vadd.f32 0.0, %v2259
        %v2261 = vpop.f32.mrb[0].mxu0
        %2262 = vmatprep.mubr.bf16.mxu0 0
        %2263 = vmatmul.mubr.bf16.gmra.mrb[0].mxu0 %v2116
        %v2264 = vpop.f32.mrb[0].mxu0
        %v2265 = vadd.f32 0.0, %v2264
        %v2266 = vpop.f32.mrb[0].mxu0
        %v2267 = vpop.f32.mrb[0].mxu0
        %v2268 = vadd.f32 0.0, %v2267
        %v2269 = vpop.f32.mrb[0].mxu0
        %2270 = vmatprep.mubr.bf16.mxu0 0
        %2271 = vmatmul.mubr.bf16.gmra.mrb[0].mxu0 %v2118
        %v2272 = vpop.f32.mrb[0].mxu0
        %v2273 = vadd.f32 0.0, %v2272
        %v2274 = vpop.f32.mrb[0].mxu0
        %v2275 = vpop.f32.mrb[0].mxu0
        %v2276 = vadd.f32 0.0, %v2275
        %v2277 = vpop.f32.mrb[0].mxu0
        %2278 = vmatprep.mubr.bf16.mxu0 0
        %2279 = vmatmul.mubr.bf16.gmra.mrb[0].mxu0 %v2120
        %v2280 = vpop.f32.mrb[0].mxu0
        %v2281 = vadd.f32 0.0, %v2280
        %v2282 = vpop.f32.mrb[0].mxu0
        %v2283 = vpop.f32.mrb[0].mxu0
        %v2284 = vadd.f32 0.0, %v2283
        %v2285 = vpop.f32.mrb[0].mxu0
        %2286 = vdwg.mxu0
        %v2289 = vunpack.c.l.b16 %v964
        %v2290 = vunpack.c.l.b16 %v965
        %v2291 = vpack.c.b16 %v2290, %v2289
        %v2292 = vsel %vm2089, %v1505, 0
        %v2294 = vsel %vm2089, %v1507, 0
        %v2296 = vsel %vm2089, %v1509, 0
        %v2298 = vsel %vm2089, %v1511, 0
        %v2300 = vsel %vm2089, %v1513, 0
        %v2302 = vsel %vm2089, %v1515, 0
        %v2304 = vsel %vm2089, %v1517, 0
        %v2306 = vsel %vm2089, %v1519, 0
        %v2308 = vsel %vm2089, %v1521, 0
        %v2310 = vsel %vm2089, %v1523, 0
        %v2312 = vsel %vm2089, %v1525, 0
        %v2314 = vsel %vm2089, %v1527, 0
        %v2316 = vsel %vm2089, %v1529, 0
        %v2318 = vsel %vm2089, %v1531, 0
        %v2320 = vsel %vm2089, %v1533, 0
        %v2322 = vsel %vm2089, %v1535, 0
        %v2325 = vsel %vm2122, %v2291, 0
        %2327 = vmatprep.subr.bf16.mxu0 0
        %2328 = vmatpush1.bf16.msra.mxu0 %v2325
        %2329 = vmatprep.subr.bf16.mxu0 0
        %2330 = vmatpush1.bf16.msra.mxu0 0
        %2331 = vmatprep.subr.bf16.mxu0 0
        %2332 = vmatpush1.bf16.msra.mxu0 0
        %2333 = vmatprep.subr.bf16.mxu0 0
        %2334 = vmatpush1.bf16.msra.mxu0 0
        %2335 = vmatprep.subr.bf16.mxu0 0
        %2336 = vmatpush1.bf16.msra.mxu0 0
        %2337 = vmatprep.subr.bf16.mxu0 0
        %2338 = vmatpush1.bf16.msra.mxu0 0
        %2339 = vmatprep.subr.bf16.mxu0 0
        %2340 = vmatpush1.bf16.msra.mxu0 0
        %2341 = vmatprep.subr.bf16.mxu0 0
        %2342 = vmatpush1.bf16.msra.mxu0 0
        %2343 = vmatprep.subr.bf16.mxu0 0
        %2344 = vmatpush1.bf16.msra.mxu0 0
        %2345 = vmatprep.subr.bf16.mxu0 0
        %2346 = vmatpush1.bf16.msra.mxu0 0
        %2347 = vmatprep.subr.bf16.mxu0 0
        %2348 = vmatpush1.bf16.msra.mxu0 0
        %2349 = vmatprep.subr.bf16.mxu0 0
        %2350 = vmatpush1.bf16.msra.mxu0 0
        %2351 = vmatprep.subr.bf16.mxu0 0
        %2352 = vmatpush1.bf16.msra.mxu0 0
        %2353 = vmatprep.subr.bf16.mxu0 0
        %2354 = vmatpush1.bf16.msra.mxu0 0
        %2355 = vmatprep.subr.bf16.mxu0 0
        %2356 = vmatpush1.bf16.msra.mxu0 0
        %2357 = vmatprep.subr.bf16.mxu0 0
        %2358 = vmatpush1.bf16.msra.mxu0 0
        %2359 = vmatprep.mubr.bf16.mxu0 0
        %2360 = vmatmul.mubr.bf16.gmra.mrb[0].mxu0 %v2292
        %v2361 = vpop.f32.mrb[0].mxu0
        %v2362 = vadd.f32 %v2161, %v2361
        %v2363 = vpop.f32.mrb[0].mxu0
        %v2364 = vpop.f32.mrb[0].mxu0
        %v2365 = vadd.f32 %v2164, %v2364
        %v2366 = vpop.f32.mrb[0].mxu0
        %2367 = vmatprep.mubr.bf16.mxu0 0
        %2368 = vmatmul.mubr.bf16.gmra.mrb[0].mxu0 %v2294
        %v2369 = vpop.f32.mrb[0].mxu0
        %v2370 = vadd.f32 %v2169, %v2369
        %v2371 = vpop.f32.mrb[0].mxu0
        %v2372 = vpop.f32.mrb[0].mxu0
        %v2373 = vadd.f32 %v2172, %v2372
        %v2374 = vpop.f32.mrb[0].mxu0
        %2375 = vmatprep.mubr.bf16.mxu0 0
        %2376 = vmatmul.mubr.bf16.gmra.mrb[0].mxu0 %v2296
        %v2377 = vpop.f32.mrb[0].mxu0
        %v2378 = vadd.f32 %v2177, %v2377
        %v2379 = vpop.f32.mrb[0].mxu0
        %v2380 = vpop.f32.mrb[0].mxu0
        %v2381 = vadd.f32 %v2180, %v2380
        %v2382 = vpop.f32.mrb[0].mxu0
        %2383 = vmatprep.mubr.bf16.mxu0 0
        %2384 = vmatmul.mubr.bf16.gmra.mrb[0].mxu0 %v2298
        %v2385 = vpop.f32.mrb[0].mxu0
        %v2386 = vadd.f32 %v2185, %v2385
        %v2387 = vpop.f32.mrb[0].mxu0
        %v2388 = vpop.f32.mrb[0].mxu0
        %v2389 = vadd.f32 %v2188, %v2388
        %v2390 = vpop.f32.mrb[0].mxu0
        %2391 = vmatprep.mubr.bf16.mxu0 0
        %2392 = vmatmul.mubr.bf16.gmra.mrb[0].mxu0 %v2300
        %v2393 = vpop.f32.mrb[0].mxu0
        %v2394 = vadd.f32 %v2193, %v2393
        %v2395 = vpop.f32.mrb[0].mxu0
        %v2396 = vpop.f32.mrb[0].mxu0
        %v2397 = vadd.f32 %v2196, %v2396
        %v2398 = vpop.f32.mrb[0].mxu0
        %2399 = vmatprep.mubr.bf16.mxu0 0
        %2400 = vmatmul.mubr.bf16.gmra.mrb[0].mxu0 %v2302
        %v2401 = vpop.f32.mrb[0].mxu0
        %v2402 = vadd.f32 %v2201, %v2401
        %v2403 = vpop.f32.mrb[0].mxu0
        %v2404 = vpop.f32.mrb[0].mxu0
        %v2405 = vadd.f32 %v2204, %v2404
        %v2406 = vpop.f32.mrb[0].mxu0
        %2407 = vmatprep.mubr.bf16.mxu0 0
        %2408 = vmatmul.mubr.bf16.gmra.mrb[0].mxu0 %v2304
        %v2409 = vpop.f32.mrb[0].mxu0
        %v2410 = vadd.f32 %v2209, %v2409
        %v2411 = vpop.f32.mrb[0].mxu0
        %v2412 = vpop.f32.mrb[0].mxu0
        %v2413 = vadd.f32 %v2212, %v2412
        %v2414 = vpop.f32.mrb[0].mxu0
        %2415 = vmatprep.mubr.bf16.mxu0 0
        %2416 = vmatmul.mubr.bf16.gmra.mrb[0].mxu0 %v2306
        %v2417 = vpop.f32.mrb[0].mxu0
        %v2418 = vadd.f32 %v2217, %v2417
        %v2419 = vpop.f32.mrb[0].mxu0
        %v2420 = vpop.f32.mrb[0].mxu0
        %v2421 = vadd.f32 %v2220, %v2420
        %v2422 = vpop.f32.mrb[0].mxu0
        %2423 = vmatprep.mubr.bf16.mxu0 0
        %2424 = vmatmul.mubr.bf16.gmra.mrb[0].mxu0 %v2308
        %v2425 = vpop.f32.mrb[0].mxu0
        %v2426 = vadd.f32 %v2225, %v2425
        %v2427 = vpop.f32.mrb[0].mxu0
        %v2428 = vpop.f32.mrb[0].mxu0
        %v2429 = vadd.f32 %v2228, %v2428
        %v2430 = vpop.f32.mrb[0].mxu0
        %2431 = vmatprep.mubr.bf16.mxu0 0
        %2432 = vmatmul.mubr.bf16.gmra.mrb[0].mxu0 %v2310
        %v2433 = vpop.f32.mrb[0].mxu0
        %v2434 = vadd.f32 %v2233, %v2433
        %v2435 = vpop.f32.mrb[0].mxu0
        %v2436 = vpop.f32.mrb[0].mxu0
        %v2437 = vadd.f32 %v2236, %v2436
        %v2438 = vpop.f32.mrb[0].mxu0
        %2439 = vmatprep.mubr.bf16.mxu0 0
        %2440 = vmatmul.mubr.bf16.gmra.mrb[0].mxu0 %v2312
        %v2441 = vpop.f32.mrb[0].mxu0
        %v2442 = vadd.f32 %v2241, %v2441
        %v2443 = vpop.f32.mrb[0].mxu0
        %v2444 = vpop.f32.mrb[0].mxu0
        %v2445 = vadd.f32 %v2244, %v2444
        %v2446 = vpop.f32.mrb[0].mxu0
        %2447 = vmatprep.mubr.bf16.mxu0 0
        %2448 = vmatmul.mubr.bf16.gmra.mrb[0].mxu0 %v2314
        %v2449 = vpop.f32.mrb[0].mxu0
        %v2450 = vadd.f32 %v2249, %v2449
        %v2451 = vpop.f32.mrb[0].mxu0
        %v2452 = vpop.f32.mrb[0].mxu0
        %v2453 = vadd.f32 %v2252, %v2452
        %v2454 = vpop.f32.mrb[0].mxu0
        %2455 = vmatprep.mubr.bf16.mxu0 0
        %2456 = vmatmul.mubr.bf16.gmra.mrb[0].mxu0 %v2316
        %v2457 = vpop.f32.mrb[0].mxu0
        %v2458 = vadd.f32 %v2257, %v2457
        %v2459 = vpop.f32.mrb[0].mxu0
        %v2460 = vpop.f32.mrb[0].mxu0
        %v2461 = vadd.f32 %v2260, %v2460
        %v2462 = vpop.f32.mrb[0].mxu0
        %2463 = vmatprep.mubr.bf16.mxu0 0
        %2464 = vmatmul.mubr.bf16.gmra.mrb[0].mxu0 %v2318
        %v2465 = vpop.f32.mrb[0].mxu0
        %v2466 = vadd.f32 %v2265, %v2465
        %v2467 = vpop.f32.mrb[0].mxu0
        %v2468 = vpop.f32.mrb[0].mxu0
        %v2469 = vadd.f32 %v2268, %v2468
        %v2470 = vpop.f32.mrb[0].mxu0
        %2471 = vmatprep.mubr.bf16.mxu0 0
        %2472 = vmatmul.mubr.bf16.gmra.mrb[0].mxu0 %v2320
        %v2473 = vpop.f32.mrb[0].mxu0
        %v2474 = vadd.f32 %v2273, %v2473
        %v2475 = vpop.f32.mrb[0].mxu0
        %v2476 = vpop.f32.mrb[0].mxu0
        %v2477 = vadd.f32 %v2276, %v2476
        %v2478 = vpop.f32.mrb[0].mxu0
        %2479 = vmatprep.mubr.bf16.mxu0 0
        %2480 = vmatmul.mubr.bf16.gmra.mrb[0].mxu0 %v2322
        %v2481 = vpop.f32.mrb[0].mxu0
        %v2482 = vadd.f32 %v2281, %v2481
        %v2483 = vpop.f32.mrb[0].mxu0
        %v2484 = vpop.f32.mrb[0].mxu0
        %v2485 = vadd.f32 %v2284, %v2484
        %v2486 = vpop.f32.mrb[0].mxu0
        %2487 = vdwg.mxu0
        %s2488 = sadd.s32 %s963, 2
        %s2489 = smul.u32 %s2488, 3
        %s2490 = smul.addr %s2489, 4
        %s2491 = scalar_lea.vmem [#allocation2], %s2490
        %v2492 = vld [vmem:[%s2491] sm:$0xf]
        %v2493 = vld [vmem:[%s2491 + $0x4] sm:$0xf]
        %v2494 = vld [vmem:[%s2491 + $0x8] sm:$0x1]
        %v2495 = vld [vmem:[%s2491 + $0xc] sm:$0xf]
        %v2496 = vld [vmem:[%s2491 + $0x10] sm:$0xf]
        %v2497 = vld [vmem:[%s2491 + $0x14] sm:$0x1]
        %v2498 = vld [vmem:[%s2491 + $0x18] sm:$0xf]
        %v2499 = vld [vmem:[%s2491 + $0x1c] sm:$0xf]
        %v2500 = vld [vmem:[%s2491 + $0x20] sm:$0x1]
        %v2501 = vld [vmem:[%s2491 + $0x24] sm:$0xf]
        %v2502 = vld [vmem:[%s2491 + $0x28] sm:$0xf]
        %v2503 = vld [vmem:[%s2491 + $0x2c] sm:$0x1]
        %v2504 = vld [vmem:[%s2491 + $0x30] sm:$0xf]
        %v2505 = vld [vmem:[%s2491 + $0x34] sm:$0xf]
        %v2506 = vld [vmem:[%s2491 + $0x38] sm:$0x1]
        %v2507 = vld [vmem:[%s2491 + $0x3c] sm:$0xf]
        %v2508 = vld [vmem:[%s2491 + $0x40] sm:$0xf]
        %v2509 = vld [vmem:[%s2491 + $0x44] sm:$0x1]
        %v2510 = vld [vmem:[%s2491 + $0x48] sm:$0xf]
        %v2511 = vld [vmem:[%s2491 + $0x4c] sm:$0xf]
        %v2512 = vld [vmem:[%s2491 + $0x50] sm:$0x1]
        %v2513 = vld [vmem:[%s2491 + $0x54] sm:$0xf]
        %v2514 = vld [vmem:[%s2491 + $0x58] sm:$0xf]
        %v2515 = vld [vmem:[%s2491 + $0x5c] sm:$0x1]
        %v2516 = vld [vmem:[%s2491 + $0x60] sm:$0xf]
        %v2517 = vld [vmem:[%s2491 + $0x64] sm:$0xf]
        %v2518 = vld [vmem:[%s2491 + $0x68] sm:$0x1]
        %v2519 = vld [vmem:[%s2491 + $0x6c] sm:$0xf]
        %v2520 = vld [vmem:[%s2491 + $0x70] sm:$0xf]
        %v2521 = vld [vmem:[%s2491 + $0x74] sm:$0x1]
        %v2522 = vld [vmem:[%s2491 + $0x78] sm:$0xf]
        %v2523 = vld [vmem:[%s2491 + $0x7c] sm:$0xf]
        %v2524 = vld [vmem:[%s2491 + $0x80] sm:$0x1]
        %v2525 = vld [vmem:[%s2491 + $0x84] sm:$0xf]
        %v2526 = vld [vmem:[%s2491 + $0x88] sm:$0xf]
        %v2527 = vld [vmem:[%s2491 + $0x8c] sm:$0x1]
        %v2528 = vld [vmem:[%s2491 + $0x90] sm:$0xf]
        %v2529 = vld [vmem:[%s2491 + $0x94] sm:$0xf]
        %v2530 = vld [vmem:[%s2491 + $0x98] sm:$0x1]
        %v2531 = vld [vmem:[%s2491 + $0x9c] sm:$0xf]
        %v2532 = vld [vmem:[%s2491 + $0xa0] sm:$0xf]
        %v2533 = vld [vmem:[%s2491 + $0xa4] sm:$0x1]
        %v2534 = vld [vmem:[%s2491 + $0xa8] sm:$0xf]
        %v2535 = vld [vmem:[%s2491 + $0xac] sm:$0xf]
        %v2536 = vld [vmem:[%s2491 + $0xb0] sm:$0x1]
        %v2537 = vld [vmem:[%s2491 + $0xb4] sm:$0xf]
        %v2538 = vld [vmem:[%s2491 + $0xb8] sm:$0xf]
        %v2539 = vld [vmem:[%s2491 + $0xbc] sm:$0x1]
        %v2572 = vunpack.c.l.b16 %v2492
        %v2573 = vunpack.c.l.b16 %v2493
        %v2574 = vunpack.c.l.b16 %v2495
        %v2575 = vunpack.c.l.b16 %v2496
        %v2576 = vunpack.c.l.b16 %v2498
        %v2577 = vunpack.c.l.b16 %v2499
        %v2578 = vunpack.c.l.b16 %v2501
        %v2579 = vunpack.c.l.b16 %v2502
        %v2580 = vunpack.c.l.b16 %v2504
        %v2581 = vunpack.c.l.b16 %v2505
        %v2582 = vunpack.c.l.b16 %v2507
        %v2583 = vunpack.c.l.b16 %v2508
        %v2584 = vunpack.c.l.b16 %v2510
        %v2585 = vunpack.c.l.b16 %v2511
        %v2586 = vunpack.c.l.b16 %v2513
        %v2587 = vunpack.c.l.b16 %v2514
        %v2588 = vunpack.c.l.b16 %v2516
        %v2589 = vunpack.c.l.b16 %v2517
        %v2590 = vunpack.c.l.b16 %v2519
        %v2591 = vunpack.c.l.b16 %v2520
        %v2592 = vunpack.c.l.b16 %v2522
        %v2593 = vunpack.c.l.b16 %v2523
        %v2594 = vunpack.c.l.b16 %v2525
        %v2595 = vunpack.c.l.b16 %v2526
        %v2596 = vunpack.c.l.b16 %v2528
        %v2597 = vunpack.c.l.b16 %v2529
        %v2598 = vunpack.c.l.b16 %v2531
        %v2599 = vunpack.c.l.b16 %v2532
        %v2600 = vunpack.c.l.b16 %v2534
        %v2601 = vunpack.c.l.b16 %v2535
        %v2602 = vunpack.c.l.b16 %v2537
        %v2603 = vunpack.c.l.b16 %v2538
        %v2604 = vpack.c.b16 %v2573, %v2572
        %v2605 = vpack.c.b16 %v2575, %v2574
        %v2606 = vpack.c.b16 %v2577, %v2576
        %v2607 = vpack.c.b16 %v2579, %v2578
        %v2608 = vpack.c.b16 %v2581, %v2580
        %v2609 = vpack.c.b16 %v2583, %v2582
        %v2610 = vpack.c.b16 %v2585, %v2584
        %v2611 = vpack.c.b16 %v2587, %v2586
        %v2612 = vpack.c.b16 %v2589, %v2588
        %v2613 = vpack.c.b16 %v2591, %v2590
        %v2614 = vpack.c.b16 %v2593, %v2592
        %v2615 = vpack.c.b16 %v2595, %v2594
        %v2616 = vpack.c.b16 %v2597, %v2596
        %v2617 = vpack.c.b16 %v2599, %v2598
        %v2618 = vpack.c.b16 %v2601, %v2600
        %v2619 = vpack.c.b16 %v2603, %v2602
        %v2636 = vunpack.c.l.b16 %v2494
        %v2637 = vunpack.c.l.b16 %v2497
        %v2638 = vunpack.c.l.b16 %v2500
        %v2639 = vunpack.c.l.b16 %v2503
        %v2640 = vunpack.c.l.b16 %v2506
        %v2641 = vunpack.c.l.b16 %v2509
        %v2642 = vunpack.c.l.b16 %v2512
        %v2643 = vunpack.c.l.b16 %v2515
        %v2644 = vunpack.c.l.b16 %v2518
        %v2645 = vunpack.c.l.b16 %v2521
        %v2646 = vunpack.c.l.b16 %v2524
        %v2647 = vunpack.c.l.b16 %v2527
        %v2648 = vunpack.c.l.b16 %v2530
        %v2649 = vunpack.c.l.b16 %v2533
        %v2650 = vunpack.c.l.b16 %v2536
        %v2651 = vunpack.c.l.b16 %v2539
        %v2652 = vpack.c.b16 %v2636, %v2636
        %v2653 = vpack.c.b16 %v2637, %v2637
        %v2654 = vpack.c.b16 %v2638, %v2638
        %v2655 = vpack.c.b16 %v2639, %v2639
        %v2656 = vpack.c.b16 %v2640, %v2640
        %v2657 = vpack.c.b16 %v2641, %v2641
        %v2658 = vpack.c.b16 %v2642, %v2642
        %v2659 = vpack.c.b16 %v2643, %v2643
        %v2660 = vpack.c.b16 %v2644, %v2644
        %v2661 = vpack.c.b16 %v2645, %v2645
        %v2662 = vpack.c.b16 %v2646, %v2646
        %v2663 = vpack.c.b16 %v2647, %v2647
        %v2664 = vpack.c.b16 %v2648, %v2648
        %v2665 = vpack.c.b16 %v2649, %v2649
        %v2666 = vpack.c.b16 %v2650, %v2650
        %v2667 = vpack.c.b16 %v2651, %v2651
        %v2669 = vshrl.u32 %v2604, 16
        %v2671 = vshll.u32 %v2604, 16
        %v2673 = vrot.slane %v2671, 1
        %v2674 = vor.u32 %v2669, %v2673
        %v2676 = vshll.u32 %v2652, 16
        %v2678 = vrot.slane %v2676, 1
        %v2679 = vsel %vm1164, %v2674, %v2678
        %v2681 = vshrl.u32 %v2605, 16
        %v2683 = vshll.u32 %v2605, 16
        %v2685 = vrot.slane %v2683, 1
        %v2686 = vor.u32 %v2681, %v2685
        %v2688 = vshll.u32 %v2653, 16
        %v2690 = vrot.slane %v2688, 1
        %v2691 = vsel %vm1164, %v2686, %v2690
        %v2693 = vshrl.u32 %v2606, 16
        %v2695 = vshll.u32 %v2606, 16
        %v2697 = vrot.slane %v2695, 1
        %v2698 = vor.u32 %v2693, %v2697
        %v2700 = vshll.u32 %v2654, 16
        %v2702 = vrot.slane %v2700, 1
        %v2703 = vsel %vm1164, %v2698, %v2702
        %v2705 = vshrl.u32 %v2607, 16
        %v2707 = vshll.u32 %v2607, 16
        %v2709 = vrot.slane %v2707, 1
        %v2710 = vor.u32 %v2705, %v2709
        %v2712 = vshll.u32 %v2655, 16
        %v2714 = vrot.slane %v2712, 1
        %v2715 = vsel %vm1164, %v2710, %v2714
        %v2717 = vshrl.u32 %v2608, 16
        %v2719 = vshll.u32 %v2608, 16
        %v2721 = vrot.slane %v2719, 1
        %v2722 = vor.u32 %v2717, %v2721
        %v2724 = vshll.u32 %v2656, 16
        %v2726 = vrot.slane %v2724, 1
        %v2727 = vsel %vm1164, %v2722, %v2726
        %v2729 = vshrl.u32 %v2609, 16
        %v2731 = vshll.u32 %v2609, 16
        %v2733 = vrot.slane %v2731, 1
        %v2734 = vor.u32 %v2729, %v2733
        %v2736 = vshll.u32 %v2657, 16
        %v2738 = vrot.slane %v2736, 1
        %v2739 = vsel %vm1164, %v2734, %v2738
        %v2741 = vshrl.u32 %v2610, 16
        %v2743 = vshll.u32 %v2610, 16
        %v2745 = vrot.slane %v2743, 1
        %v2746 = vor.u32 %v2741, %v2745
        %v2748 = vshll.u32 %v2658, 16
        %v2750 = vrot.slane %v2748, 1
        %v2751 = vsel %vm1164, %v2746, %v2750
        %v2753 = vshrl.u32 %v2611, 16
        %v2755 = vshll.u32 %v2611, 16
        %v2757 = vrot.slane %v2755, 1
        %v2758 = vor.u32 %v2753, %v2757
        %v2760 = vshll.u32 %v2659, 16
        %v2762 = vrot.slane %v2760, 1
        %v2763 = vsel %vm1164, %v2758, %v2762
        %v2765 = vshrl.u32 %v2612, 16
        %v2767 = vshll.u32 %v2612, 16
        %v2769 = vrot.slane %v2767, 1
        %v2770 = vor.u32 %v2765, %v2769
        %v2772 = vshll.u32 %v2660, 16
        %v2774 = vrot.slane %v2772, 1
        %v2775 = vsel %vm1164, %v2770, %v2774
        %v2777 = vshrl.u32 %v2613, 16
        %v2779 = vshll.u32 %v2613, 16
        %v2781 = vrot.slane %v2779, 1
        %v2782 = vor.u32 %v2777, %v2781
        %v2784 = vshll.u32 %v2661, 16
        %v2786 = vrot.slane %v2784, 1
        %v2787 = vsel %vm1164, %v2782, %v2786
        %v2789 = vshrl.u32 %v2614, 16
        %v2791 = vshll.u32 %v2614, 16
        %v2793 = vrot.slane %v2791, 1
        %v2794 = vor.u32 %v2789, %v2793
        %v2796 = vshll.u32 %v2662, 16
        %v2798 = vrot.slane %v2796, 1
        %v2799 = vsel %vm1164, %v2794, %v2798
        %v2801 = vshrl.u32 %v2615, 16
        %v2803 = vshll.u32 %v2615, 16
        %v2805 = vrot.slane %v2803, 1
        %v2806 = vor.u32 %v2801, %v2805
        %v2808 = vshll.u32 %v2663, 16
        %v2810 = vrot.slane %v2808, 1
        %v2811 = vsel %vm1164, %v2806, %v2810
        %v2813 = vshrl.u32 %v2616, 16
        %v2815 = vshll.u32 %v2616, 16
        %v2817 = vrot.slane %v2815, 1
        %v2818 = vor.u32 %v2813, %v2817
        %v2820 = vshll.u32 %v2664, 16
        %v2822 = vrot.slane %v2820, 1
        %v2823 = vsel %vm1164, %v2818, %v2822
        %v2825 = vshrl.u32 %v2617, 16
        %v2827 = vshll.u32 %v2617, 16
        %v2829 = vrot.slane %v2827, 1
        %v2830 = vor.u32 %v2825, %v2829
        %v2832 = vshll.u32 %v2665, 16
        %v2834 = vrot.slane %v2832, 1
        %v2835 = vsel %vm1164, %v2830, %v2834
        %v2837 = vshrl.u32 %v2618, 16
        %v2839 = vshll.u32 %v2618, 16
        %v2841 = vrot.slane %v2839, 1
        %v2842 = vor.u32 %v2837, %v2841
        %v2844 = vshll.u32 %v2666, 16
        %v2846 = vrot.slane %v2844, 1
        %v2847 = vsel %vm1164, %v2842, %v2846
        %v2849 = vshrl.u32 %v2619, 16
        %v2851 = vshll.u32 %v2619, 16
        %v2853 = vrot.slane %v2851, 1
        %v2854 = vor.u32 %v2849, %v2853
        %v2856 = vshll.u32 %v2667, 16
        %v2858 = vrot.slane %v2856, 1
        %v2859 = vsel %vm1164, %v2854, %v2858
        %2860 = vrot.lane.b32.xlu0 %v2679, 4
        %v2861 = vpop.permute.xlu0 %2860
        %2862 = vrot.lane.b32.xlu0 %v2691, 4
        %v2863 = vpop.permute.xlu0 %2862
        %2864 = vrot.lane.b32.xlu0 %v2703, 4
        %v2865 = vpop.permute.xlu0 %2864
        %2866 = vrot.lane.b32.xlu0 %v2715, 4
        %v2867 = vpop.permute.xlu0 %2866
        %2868 = vrot.lane.b32.xlu0 %v2727, 4
        %v2869 = vpop.permute.xlu0 %2868
        %2870 = vrot.lane.b32.xlu0 %v2739, 4
        %v2871 = vpop.permute.xlu0 %2870
        %2872 = vrot.lane.b32.xlu0 %v2751, 4
        %v2873 = vpop.permute.xlu0 %2872
        %2874 = vrot.lane.b32.xlu0 %v2763, 4
        %v2875 = vpop.permute.xlu0 %2874
        %2876 = vrot.lane.b32.xlu0 %v2775, 4
        %v2877 = vpop.permute.xlu0 %2876
        %2878 = vrot.lane.b32.xlu0 %v2787, 4
        %v2879 = vpop.permute.xlu0 %2878
        %2880 = vrot.lane.b32.xlu0 %v2799, 4
        %v2881 = vpop.permute.xlu0 %2880
        %2882 = vrot.lane.b32.xlu0 %v2811, 4
        %v2883 = vpop.permute.xlu0 %2882
        %2884 = vrot.lane.b32.xlu0 %v2823, 4
        %v2885 = vpop.permute.xlu0 %2884
        %2886 = vrot.lane.b32.xlu0 %v2835, 4
        %v2887 = vpop.permute.xlu0 %2886
        %2888 = vrot.lane.b32.xlu0 %v2847, 4
        %v2889 = vpop.permute.xlu0 %2888
        %2890 = vrot.lane.b32.xlu0 %v2859, 4
        %v2891 = vpop.permute.xlu0 %2890
        %v2892 = vrot.slane %v2604, 1
        %v2893 = vrot.slane %v2652, 1
        %v2894 = vsel %vm1389, %v2892, %v2893
        %v2895 = vrot.slane %v2605, 1
        %v2896 = vrot.slane %v2653, 1
        %v2897 = vsel %vm1389, %v2895, %v2896
        %v2898 = vrot.slane %v2606, 1
        %v2899 = vrot.slane %v2654, 1
        %v2900 = vsel %vm1389, %v2898, %v2899
        %v2901 = vrot.slane %v2607, 1
        %v2902 = vrot.slane %v2655, 1
        %v2903 = vsel %vm1389, %v2901, %v2902
        %v2904 = vrot.slane %v2608, 1
        %v2905 = vrot.slane %v2656, 1
        %v2906 = vsel %vm1389, %v2904, %v2905
        %v2907 = vrot.slane %v2609, 1
        %v2908 = vrot.slane %v2657, 1
        %v2909 = vsel %vm1389, %v2907, %v2908
        %v2910 = vrot.slane %v2610, 1
        %v2911 = vrot.slane %v2658, 1
        %v2912 = vsel %vm1389, %v2910, %v2911
        %v2913 = vrot.slane %v2611, 1
        %v2914 = vrot.slane %v2659, 1
        %v2915 = vsel %vm1389, %v2913, %v2914
        %v2916 = vrot.slane %v2612, 1
        %v2917 = vrot.slane %v2660, 1
        %v2918 = vsel %vm1389, %v2916, %v2917
        %v2919 = vrot.slane %v2613, 1
        %v2920 = vrot.slane %v2661, 1
        %v2921 = vsel %vm1389, %v2919, %v2920
        %v2922 = vrot.slane %v2614, 1
        %v2923 = vrot.slane %v2662, 1
        %v2924 = vsel %vm1389, %v2922, %v2923
        %v2925 = vrot.slane %v2615, 1
        %v2926 = vrot.slane %v2663, 1
        %v2927 = vsel %vm1389, %v2925, %v2926
        %v2928 = vrot.slane %v2616, 1
        %v2929 = vrot.slane %v2664, 1
        %v2930 = vsel %vm1389, %v2928, %v2929
        %v2931 = vrot.slane %v2617, 1
        %v2932 = vrot.slane %v2665, 1
        %v2933 = vsel %vm1389, %v2931, %v2932
        %v2934 = vrot.slane %v2618, 1
        %v2935 = vrot.slane %v2666, 1
        %v2936 = vsel %vm1389, %v2934, %v2935
        %v2937 = vrot.slane %v2619, 1
        %v2938 = vrot.slane %v2667, 1
        %v2939 = vsel %vm1389, %v2937, %v2938
        %2940 = vrot.lane.b32.xlu0 %v2894, 8
        %v2941 = vpop.permute.xlu0 %2940
        %2942 = vrot.lane.b32.xlu0 %v2897, 8
        %v2943 = vpop.permute.xlu0 %2942
        %2944 = vrot.lane.b32.xlu0 %v2900, 8
        %v2945 = vpop.permute.xlu0 %2944
        %2946 = vrot.lane.b32.xlu0 %v2903, 8
        %v2947 = vpop.permute.xlu0 %2946
        %2948 = vrot.lane.b32.xlu0 %v2906, 8
        %v2949 = vpop.permute.xlu0 %2948
        %2950 = vrot.lane.b32.xlu0 %v2909, 8
        %v2951 = vpop.permute.xlu0 %2950
        %2952 = vrot.lane.b32.xlu0 %v2912, 8
        %v2953 = vpop.permute.xlu0 %2952
        %2954 = vrot.lane.b32.xlu0 %v2915, 8
        %v2955 = vpop.permute.xlu0 %2954
        %2956 = vrot.lane.b32.xlu0 %v2918, 8
        %v2957 = vpop.permute.xlu0 %2956
        %2958 = vrot.lane.b32.xlu0 %v2921, 8
        %v2959 = vpop.permute.xlu0 %2958
        %2960 = vrot.lane.b32.xlu0 %v2924, 8
        %v2961 = vpop.permute.xlu0 %2960
        %2962 = vrot.lane.b32.xlu0 %v2927, 8
        %v2963 = vpop.permute.xlu0 %2962
        %2964 = vrot.lane.b32.xlu0 %v2930, 8
        %v2965 = vpop.permute.xlu0 %2964
        %2966 = vrot.lane.b32.xlu0 %v2933, 8
        %v2967 = vpop.permute.xlu0 %2966
        %2968 = vrot.lane.b32.xlu0 %v2936, 8
        %v2969 = vpop.permute.xlu0 %2968
        %2970 = vrot.lane.b32.xlu0 %v2939, 8
        %v2971 = vpop.permute.xlu0 %2970
        %v2973 = vsel %vm1470, %v2604, %v2861
        %v2975 = vsel %vm1470, %v2605, %v2863
        %v2977 = vsel %vm1470, %v2606, %v2865
        %v2979 = vsel %vm1470, %v2607, %v2867
        %v2981 = vsel %vm1470, %v2608, %v2869
        %v2983 = vsel %vm1470, %v2609, %v2871
        %v2985 = vsel %vm1470, %v2610, %v2873
        %v2987 = vsel %vm1470, %v2611, %v2875
        %v2989 = vsel %vm1470, %v2612, %v2877
        %v2991 = vsel %vm1470, %v2613, %v2879
        %v2993 = vsel %vm1470, %v2614, %v2881
        %v2995 = vsel %vm1470, %v2615, %v2883
        %v2997 = vsel %vm1470, %v2616, %v2885
        %v2999 = vsel %vm1470, %v2617, %v2887
        %v3001 = vsel %vm1470, %v2618, %v2889
        %v3003 = vsel %vm1470, %v2619, %v2891
        %v3005 = vsel %vm1503, %v2973, %v2941
        %v3007 = vsel %vm1503, %v2975, %v2943
        %v3009 = vsel %vm1503, %v2977, %v2945
        %v3011 = vsel %vm1503, %v2979, %v2947
        %v3013 = vsel %vm1503, %v2981, %v2949
        %v3015 = vsel %vm1503, %v2983, %v2951
        %v3017 = vsel %vm1503, %v2985, %v2953
        %v3019 = vsel %vm1503, %v2987, %v2955
        %v3021 = vsel %vm1503, %v2989, %v2957
        %v3023 = vsel %vm1503, %v2991, %v2959
        %v3025 = vsel %vm1503, %v2993, %v2961
        %v3027 = vsel %vm1503, %v2995, %v2963
        %v3029 = vsel %vm1503, %v2997, %v2965
        %v3031 = vsel %vm1503, %v2999, %v2967
        %v3033 = vsel %vm1503, %v3001, %v2969
        %v3035 = vsel %vm1503, %v3003, %v2971
        %v3038 = vunpack.c.l.b16 %v970
        %v3039 = vunpack.c.l.b16 %v971
        %v3040 = vpack.c.b16 %v3039, %v3038
        %v3041 = vsel %vm2089, %v3005, 0
        %v3043 = vsel %vm2089, %v3007, 0
        %v3045 = vsel %vm2089, %v3009, 0
        %v3047 = vsel %vm2089, %v3011, 0
        %v3049 = vsel %vm2089, %v3013, 0
        %v3051 = vsel %vm2089, %v3015, 0
        %v3053 = vsel %vm2089, %v3017, 0
        %v3055 = vsel %vm2089, %v3019, 0
        %v3057 = vsel %vm2089, %v3021, 0
        %v3059 = vsel %vm2089, %v3023, 0
        %v3061 = vsel %vm2089, %v3025, 0
        %v3063 = vsel %vm2089, %v3027, 0
        %v3065 = vsel %vm2089, %v3029, 0
        %v3067 = vsel %vm2089, %v3031, 0
        %v3069 = vsel %vm2089, %v3033, 0
        %v3071 = vsel %vm2089, %v3035, 0
        %v3074 = vsel %vm2122, %v3040, 0
        %3076 = vmatprep.subr.bf16.mxu0 0
        %3077 = vmatpush1.bf16.msra.mxu0 %v3074
        %3078 = vmatprep.subr.bf16.mxu0 0
        %3079 = vmatpush1.bf16.msra.mxu0 0
        %3080 = vmatprep.subr.bf16.mxu0 0
        %3081 = vmatpush1.bf16.msra.mxu0 0
        %3082 = vmatprep.subr.bf16.mxu0 0
        %3083 = vmatpush1.bf16.msra.mxu0 0
        %3084 = vmatprep.subr.bf16.mxu0 0
        %3085 = vmatpush1.bf16.msra.mxu0 0
        %3086 = vmatprep.subr.bf16.mxu0 0
        %3087 = vmatpush1.bf16.msra.mxu0 0
        %3088 = vmatprep.subr.bf16.mxu0 0
        %3089 = vmatpush1.bf16.msra.mxu0 0
        %3090 = vmatprep.subr.bf16.mxu0 0
        %3091 = vmatpush1.bf16.msra.mxu0 0
        %3092 = vmatprep.subr.bf16.mxu0 0
        %3093 = vmatpush1.bf16.msra.mxu0 0
        %3094 = vmatprep.subr.bf16.mxu0 0
        %3095 = vmatpush1.bf16.msra.mxu0 0
        %3096 = vmatprep.subr.bf16.mxu0 0
        %3097 = vmatpush1.bf16.msra.mxu0 0
        %3098 = vmatprep.subr.bf16.mxu0 0
        %3099 = vmatpush1.bf16.msra.mxu0 0
        %3100 = vmatprep.subr.bf16.mxu0 0
        %3101 = vmatpush1.bf16.msra.mxu0 0
        %3102 = vmatprep.subr.bf16.mxu0 0
        %3103 = vmatpush1.bf16.msra.mxu0 0
        %3104 = vmatprep.subr.bf16.mxu0 0
        %3105 = vmatpush1.bf16.msra.mxu0 0
        %3106 = vmatprep.subr.bf16.mxu0 0
        %3107 = vmatpush1.bf16.msra.mxu0 0
        %3108 = vmatprep.mubr.bf16.mxu0 0
        %3109 = vmatmul.mubr.bf16.gmra.mrb[0].mxu0 %v3041
        %v3110 = vpop.f32.mrb[0].mxu0
        %v3111 = vadd.f32 0.0, %v3110
        %v3112 = vpop.f32.mrb[0].mxu0
        %v3113 = vpop.f32.mrb[0].mxu0
        %v3114 = vadd.f32 0.0, %v3113
        %v3115 = vpop.f32.mrb[0].mxu0
        %3116 = vmatprep.mubr.bf16.mxu0 0
        %3117 = vmatmul.mubr.bf16.gmra.mrb[0].mxu0 %v3043
        %v3118 = vpop.f32.mrb[0].mxu0
        %v3119 = vadd.f32 0.0, %v3118
        %v3120 = vpop.f32.mrb[0].mxu0
        %v3121 = vpop.f32.mrb[0].mxu0
        %v3122 = vadd.f32 0.0, %v3121
        %v3123 = vpop.f32.mrb[0].mxu0
        %3124 = vmatprep.mubr.bf16.mxu0 0
        %3125 = vmatmul.mubr.bf16.gmra.mrb[0].mxu0 %v3045
        %v3126 = vpop.f32.mrb[0].mxu0
        %v3127 = vadd.f32 0.0, %v3126
        %v3128 = vpop.f32.mrb[0].mxu0
        %v3129 = vpop.f32.mrb[0].mxu0
        %v3130 = vadd.f32 0.0, %v3129
        %v3131 = vpop.f32.mrb[0].mxu0
        %3132 = vmatprep.mubr.bf16.mxu0 0
        %3133 = vmatmul.mubr.bf16.gmra.mrb[0].mxu0 %v3047
        %v3134 = vpop.f32.mrb[0].mxu0
        %v3135 = vadd.f32 0.0, %v3134
        %v3136 = vpop.f32.mrb[0].mxu0
        %v3137 = vpop.f32.mrb[0].mxu0
        %v3138 = vadd.f32 0.0, %v3137
        %v3139 = vpop.f32.mrb[0].mxu0
        %3140 = vmatprep.mubr.bf16.mxu0 0
        %3141 = vmatmul.mubr.bf16.gmra.mrb[0].mxu0 %v3049
        %v3142 = vpop.f32.mrb[0].mxu0
        %v3143 = vadd.f32 0.0, %v3142
        %v3144 = vpop.f32.mrb[0].mxu0
        %v3145 = vpop.f32.mrb[0].mxu0
        %v3146 = vadd.f32 0.0, %v3145
        %v3147 = vpop.f32.mrb[0].mxu0
        %3148 = vmatprep.mubr.bf16.mxu0 0
        %3149 = vmatmul.mubr.bf16.gmra.mrb[0].mxu0 %v3051
        %v3150 = vpop.f32.mrb[0].mxu0
        %v3151 = vadd.f32 0.0, %v3150
        %v3152 = vpop.f32.mrb[0].mxu0
        %v3153 = vpop.f32.mrb[0].mxu0
        %v3154 = vadd.f32 0.0, %v3153
        %v3155 = vpop.f32.mrb[0].mxu0
        %3156 = vmatprep.mubr.bf16.mxu0 0
        %3157 = vmatmul.mubr.bf16.gmra.mrb[0].mxu0 %v3053
        %v3158 = vpop.f32.mrb[0].mxu0
        %v3159 = vadd.f32 0.0, %v3158
        %v3160 = vpop.f32.mrb[0].mxu0
        %v3161 = vpop.f32.mrb[0].mxu0
        %v3162 = vadd.f32 0.0, %v3161
        %v3163 = vpop.f32.mrb[0].mxu0
        %3164 = vmatprep.mubr.bf16.mxu0 0
        %3165 = vmatmul.mubr.bf16.gmra.mrb[0].mxu0 %v3055
        %v3166 = vpop.f32.mrb[0].mxu0
        %v3167 = vadd.f32 0.0, %v3166
        %v3168 = vpop.f32.mrb[0].mxu0
        %v3169 = vpop.f32.mrb[0].mxu0
        %v3170 = vadd.f32 0.0, %v3169
        %v3171 = vpop.f32.mrb[0].mxu0
        %3172 = vmatprep.mubr.bf16.mxu0 0
        %3173 = vmatmul.mubr.bf16.gmra.mrb[0].mxu0 %v3057
        %v3174 = vpop.f32.mrb[0].mxu0
        %v3175 = vadd.f32 0.0, %v3174
        %v3176 = vpop.f32.mrb[0].mxu0
        %v3177 = vpop.f32.mrb[0].mxu0
        %v3178 = vadd.f32 0.0, %v3177
        %v3179 = vpop.f32.mrb[0].mxu0
        %3180 = vmatprep.mubr.bf16.mxu0 0
        %3181 = vmatmul.mubr.bf16.gmra.mrb[0].mxu0 %v3059
        %v3182 = vpop.f32.mrb[0].mxu0
        %v3183 = vadd.f32 0.0, %v3182
        %v3184 = vpop.f32.mrb[0].mxu0
        %v3185 = vpop.f32.mrb[0].mxu0
        %v3186 = vadd.f32 0.0, %v3185
        %v3187 = vpop.f32.mrb[0].mxu0
        %3188 = vmatprep.mubr.bf16.mxu0 0
        %3189 = vmatmul.mubr.bf16.gmra.mrb[0].mxu0 %v3061
        %v3190 = vpop.f32.mrb[0].mxu0
        %v3191 = vadd.f32 0.0, %v3190
        %v3192 = vpop.f32.mrb[0].mxu0
        %v3193 = vpop.f32.mrb[0].mxu0
        %v3194 = vadd.f32 0.0, %v3193
        %v3195 = vpop.f32.mrb[0].mxu0
        %3196 = vmatprep.mubr.bf16.mxu0 0
        %3197 = vmatmul.mubr.bf16.gmra.mrb[0].mxu0 %v3063
        %v3198 = vpop.f32.mrb[0].mxu0
        %v3199 = vadd.f32 0.0, %v3198
        %v3200 = vpop.f32.mrb[0].mxu0
        %v3201 = vpop.f32.mrb[0].mxu0
        %v3202 = vadd.f32 0.0, %v3201
        %v3203 = vpop.f32.mrb[0].mxu0
        %3204 = vmatprep.mubr.bf16.mxu0 0
        %3205 = vmatmul.mubr.bf16.gmra.mrb[0].mxu0 %v3065
        %v3206 = vpop.f32.mrb[0].mxu0
        %v3207 = vadd.f32 0.0, %v3206
        %v3208 = vpop.f32.mrb[0].mxu0
        %v3209 = vpop.f32.mrb[0].mxu0
        %v3210 = vadd.f32 0.0, %v3209
        %v3211 = vpop.f32.mrb[0].mxu0
        %3212 = vmatprep.mubr.bf16.mxu0 0
        %3213 = vmatmul.mubr.bf16.gmra.mrb[0].mxu0 %v3067
        %v3214 = vpop.f32.mrb[0].mxu0
        %v3215 = vadd.f32 0.0, %v3214
        %v3216 = vpop.f32.mrb[0].mxu0
        %v3217 = vpop.f32.mrb[0].mxu0
        %v3218 = vadd.f32 0.0, %v3217
        %v3219 = vpop.f32.mrb[0].mxu0
        %3220 = vmatprep.mubr.bf16.mxu0 0
        %3221 = vmatmul.mubr.bf16.gmra.mrb[0].mxu0 %v3069
        %v3222 = vpop.f32.mrb[0].mxu0
        %v3223 = vadd.f32 0.0, %v3222
        %v3224 = vpop.f32.mrb[0].mxu0
        %v3225 = vpop.f32.mrb[0].mxu0
        %v3226 = vadd.f32 0.0, %v3225
        %v3227 = vpop.f32.mrb[0].mxu0
        %3228 = vmatprep.mubr.bf16.mxu0 0
        %3229 = vmatmul.mubr.bf16.gmra.mrb[0].mxu0 %v3071
        %v3230 = vpop.f32.mrb[0].mxu0
        %v3231 = vadd.f32 0.0, %v3230
        %v3232 = vpop.f32.mrb[0].mxu0
        %v3233 = vpop.f32.mrb[0].mxu0
        %v3234 = vadd.f32 0.0, %v3233
        %v3235 = vpop.f32.mrb[0].mxu0
        %3236 = vdwg.mxu0
        %v3237 = vadd.f32 %v2362, %v3111
        %v3238 = vadd.f32 %v2365, %v3114
        %v3239 = vadd.f32 %v2370, %v3119
        %v3240 = vadd.f32 %v2373, %v3122
        %v3241 = vadd.f32 %v2378, %v3127
        %v3242 = vadd.f32 %v2381, %v3130
        %v3243 = vadd.f32 %v2386, %v3135
        %v3244 = vadd.f32 %v2389, %v3138
        %v3245 = vadd.f32 %v2394, %v3143
        %v3246 = vadd.f32 %v2397, %v3146
        %v3247 = vadd.f32 %v2402, %v3151
        %v3248 = vadd.f32 %v2405, %v3154
        %v3249 = vadd.f32 %v2410, %v3159
        %v3250 = vadd.f32 %v2413, %v3162
        %v3251 = vadd.f32 %v2418, %v3167
        %v3252 = vadd.f32 %v2421, %v3170
        %v3253 = vadd.f32 %v2426, %v3175
        %v3254 = vadd.f32 %v2429, %v3178
        %v3255 = vadd.f32 %v2434, %v3183
        %v3256 = vadd.f32 %v2437, %v3186
        %v3257 = vadd.f32 %v2442, %v3191
        %v3258 = vadd.f32 %v2445, %v3194
        %v3259 = vadd.f32 %v2450, %v3199
        %v3260 = vadd.f32 %v2453, %v3202
        %v3261 = vadd.f32 %v2458, %v3207
        %v3262 = vadd.f32 %v2461, %v3210
        %v3263 = vadd.f32 %v2466, %v3215
        %v3264 = vadd.f32 %v2469, %v3218
        %v3265 = vadd.f32 %v2474, %v3223
        %v3266 = vadd.f32 %v2477, %v3226
        %v3267 = vadd.f32 %v2482, %v3231
        %v3268 = vadd.f32 %v2485, %v3234
        %v3270 = vlaneseq
        %v3271 = vshrl.u32 %v3270, 7
        %v3272 = vsub.s32 0, %v3271
        %v3273 = vrot.slane %v983, %v3272
        %v3275 = vadd.f32 %v3237, %v3273
        %v3276 = vadd.f32 %v3238, %v3273
        %v3277 = vadd.f32 %v3239, %v3273
        %v3278 = vadd.f32 %v3240, %v3273
        %v3279 = vadd.f32 %v3241, %v3273
        %v3280 = vadd.f32 %v3242, %v3273
        %v3281 = vadd.f32 %v3243, %v3273
        %v3282 = vadd.f32 %v3244, %v3273
        %v3283 = vadd.f32 %v3245, %v3273
        %v3284 = vadd.f32 %v3246, %v3273
        %v3285 = vadd.f32 %v3247, %v3273
        %v3286 = vadd.f32 %v3248, %v3273
        %v3287 = vadd.f32 %v3249, %v3273
        %v3288 = vadd.f32 %v3250, %v3273
        %v3289 = vadd.f32 %v3251, %v3273
        %v3290 = vadd.f32 %v3252, %v3273
        %v3291 = vadd.f32 %v3253, %v3273
        %v3292 = vadd.f32 %v3254, %v3273
        %v3293 = vadd.f32 %v3255, %v3273
        %v3294 = vadd.f32 %v3256, %v3273
        %v3295 = vadd.f32 %v3257, %v3273
        %v3296 = vadd.f32 %v3258, %v3273
        %v3297 = vadd.f32 %v3259, %v3273
        %v3298 = vadd.f32 %v3260, %v3273
        %v3299 = vadd.f32 %v3261, %v3273
        %v3300 = vadd.f32 %v3262, %v3273
        %v3301 = vadd.f32 %v3263, %v3273
        %v3302 = vadd.f32 %v3264, %v3273
        %v3303 = vadd.f32 %v3265, %v3273
        %v3304 = vadd.f32 %v3266, %v3273
        %v3305 = vadd.f32 %v3267, %v3273
        %v3306 = vadd.f32 %v3268, %v3273
        %v3307 = vmax.f32 %v3275, 0.0
        %v3308 = vmax.f32 %v3276, 0.0
        %v3309 = vmax.f32 %v3277, 0.0
        %v3310 = vmax.f32 %v3278, 0.0
        %v3311 = vmax.f32 %v3279, 0.0
        %v3312 = vmax.f32 %v3280, 0.0
        %v3313 = vmax.f32 %v3281, 0.0
        %v3314 = vmax.f32 %v3282, 0.0
        %v3315 = vmax.f32 %v3283, 0.0
        %v3316 = vmax.f32 %v3284, 0.0
        %v3317 = vmax.f32 %v3285, 0.0
        %v3318 = vmax.f32 %v3286, 0.0
        %v3319 = vmax.f32 %v3287, 0.0
        %v3320 = vmax.f32 %v3288, 0.0
        %v3321 = vmax.f32 %v3289, 0.0
        %v3322 = vmax.f32 %v3290, 0.0
        %v3323 = vmax.f32 %v3291, 0.0
        %v3324 = vmax.f32 %v3292, 0.0
        %v3325 = vmax.f32 %v3293, 0.0
        %v3326 = vmax.f32 %v3294, 0.0
        %v3327 = vmax.f32 %v3295, 0.0
        %v3328 = vmax.f32 %v3296, 0.0
        %v3329 = vmax.f32 %v3297, 0.0
        %v3330 = vmax.f32 %v3298, 0.0
        %v3331 = vmax.f32 %v3299, 0.0
        %v3332 = vmax.f32 %v3300, 0.0
        %v3333 = vmax.f32 %v3301, 0.0
        %v3334 = vmax.f32 %v3302, 0.0
        %v3335 = vmax.f32 %v3303, 0.0
        %v3336 = vmax.f32 %v3304, 0.0
        %v3337 = vmax.f32 %v3305, 0.0
        %v3338 = vmax.f32 %v3306, 0.0
        %v3339 = vpack.c.bf16 %v3308, %v3307
        %v3340 = vpack.c.bf16 %v3310, %v3309
        %v3341 = vpack.c.bf16 %v3312, %v3311
        %v3342 = vpack.c.bf16 %v3314, %v3313
        %v3343 = vpack.c.bf16 %v3316, %v3315
        %v3344 = vpack.c.bf16 %v3318, %v3317
        %v3345 = vpack.c.bf16 %v3320, %v3319
        %v3346 = vpack.c.bf16 %v3322, %v3321
        %v3347 = vpack.c.bf16 %v3324, %v3323
        %v3348 = vpack.c.bf16 %v3326, %v3325
        %v3349 = vpack.c.bf16 %v3328, %v3327
        %v3350 = vpack.c.bf16 %v3330, %v3329
        %v3351 = vpack.c.bf16 %v3332, %v3331
        %v3352 = vpack.c.bf16 %v3334, %v3333
        %v3353 = vpack.c.bf16 %v3336, %v3335
        %v3354 = vpack.c.bf16 %v3338, %v3337
        %v3371 = vunpack.c.l.b16 %v3339
        %v3372 = vunpack.c.h.b16 %v3339
        %v3373 = vunpack.c.l.b16 %v3340
        %v3374 = vunpack.c.h.b16 %v3340
        %v3375 = vunpack.c.l.b16 %v3341
        %v3376 = vunpack.c.h.b16 %v3341
        %v3377 = vunpack.c.l.b16 %v3342
        %v3378 = vunpack.c.h.b16 %v3342
        %v3379 = vunpack.c.l.b16 %v3343
        %v3380 = vunpack.c.h.b16 %v3343
        %v3381 = vunpack.c.l.b16 %v3344
        %v3382 = vunpack.c.h.b16 %v3344
        %v3383 = vunpack.c.l.b16 %v3345
        %v3384 = vunpack.c.h.b16 %v3345
        %v3385 = vunpack.c.l.b16 %v3346
        %v3386 = vunpack.c.h.b16 %v3346
        %v3387 = vunpack.c.l.b16 %v3347
        %v3388 = vunpack.c.h.b16 %v3347
        %v3389 = vunpack.c.l.b16 %v3348
        %v3390 = vunpack.c.h.b16 %v3348
        %v3391 = vunpack.c.l.b16 %v3349
        %v3392 = vunpack.c.h.b16 %v3349
        %v3393 = vunpack.c.l.b16 %v3350
        %v3394 = vunpack.c.h.b16 %v3350
        %v3395 = vunpack.c.l.b16 %v3351
        %v3396 = vunpack.c.h.b16 %v3351
        %v3397 = vunpack.c.l.b16 %v3352
        %v3398 = vunpack.c.h.b16 %v3352
        %v3399 = vunpack.c.l.b16 %v3353
        %v3400 = vunpack.c.h.b16 %v3353
        %v3401 = vunpack.c.l.b16 %v3354
        %v3402 = vunpack.c.h.b16 %v3354
        %v3403 = vpack.c.b16 %v3371, %v3371
        %v3404 = vpack.c.b16 %v3372, %v3372
        %v3405 = vpack.c.b16 %v3373, %v3373
        %v3406 = vpack.c.b16 %v3374, %v3374
        %v3407 = vpack.c.b16 %v3375, %v3375
        %v3408 = vpack.c.b16 %v3376, %v3376
        %v3409 = vpack.c.b16 %v3377, %v3377
        %v3410 = vpack.c.b16 %v3378, %v3378
        %v3411 = vpack.c.b16 %v3379, %v3379
        %v3412 = vpack.c.b16 %v3380, %v3380
        %v3413 = vpack.c.b16 %v3381, %v3381
        %v3414 = vpack.c.b16 %v3382, %v3382
        %v3415 = vpack.c.b16 %v3383, %v3383
        %v3416 = vpack.c.b16 %v3384, %v3384
        %v3417 = vpack.c.b16 %v3385, %v3385
        %v3418 = vpack.c.b16 %v3386, %v3386
        %v3419 = vpack.c.b16 %v3387, %v3387
        %v3420 = vpack.c.b16 %v3388, %v3388
        %v3421 = vpack.c.b16 %v3389, %v3389
        %v3422 = vpack.c.b16 %v3390, %v3390
        %v3423 = vpack.c.b16 %v3391, %v3391
        %v3424 = vpack.c.b16 %v3392, %v3392
        %v3425 = vpack.c.b16 %v3393, %v3393
        %v3426 = vpack.c.b16 %v3394, %v3394
        %v3427 = vpack.c.b16 %v3395, %v3395
        %v3428 = vpack.c.b16 %v3396, %v3396
        %v3429 = vpack.c.b16 %v3397, %v3397
        %v3430 = vpack.c.b16 %v3398, %v3398
        %v3431 = vpack.c.b16 %v3399, %v3399
        %v3432 = vpack.c.b16 %v3400, %v3400
        %v3433 = vpack.c.b16 %v3401, %v3401
        %v3434 = vpack.c.b16 %v3402, %v3402
        %vm3435 = vsmask.f32 256
        %vm3436 = vsmask.f32 4368
        %vm3437 = vmor %vm3435, %vm3436
        %v3439 = vshrl.u32 %v3403, 16
        %v3441 = vrot.slane %v3439, 7
        %v3442 = vshll.u32 %v3403, 16
        %v3444 = vor.u32 %v3441, %v3442
        %v3445 = vrot.slane %v3441, 4
        %v3447 = vshrl.u32 %v3404, 16
        %v3449 = vrot.slane %v3447, 7
        %v3450 = vshll.u32 %v3404, 16
        %v3452 = vor.u32 %v3449, %v3450
        %v3453 = vsel %vm3437, %v3445, %v3452
        %v3454 = vrot.slane %v3449, 4
        %v3456 = vshrl.u32 %v3405, 16
        %v3458 = vrot.slane %v3456, 7
        %v3459 = vshll.u32 %v3405, 16
        %v3461 = vor.u32 %v3458, %v3459
        %v3462 = vrot.slane %v3458, 4
        %v3464 = vshrl.u32 %v3406, 16
        %v3466 = vrot.slane %v3464, 7
        %v3467 = vshll.u32 %v3406, 16
        %v3469 = vor.u32 %v3466, %v3467
        %v3470 = vsel %vm3437, %v3462, %v3469
        %v3471 = vrot.slane %v3466, 4
        %v3473 = vshrl.u32 %v3407, 16
        %v3475 = vrot.slane %v3473, 7
        %v3476 = vshll.u32 %v3407, 16
        %v3478 = vor.u32 %v3475, %v3476
        %v3479 = vrot.slane %v3475, 4
        %v3481 = vshrl.u32 %v3408, 16
        %v3483 = vrot.slane %v3481, 7
        %v3484 = vshll.u32 %v3408, 16
        %v3486 = vor.u32 %v3483, %v3484
        %v3487 = vsel %vm3437, %v3479, %v3486
        %v3488 = vrot.slane %v3483, 4
        %v3490 = vshrl.u32 %v3409, 16
        %v3492 = vrot.slane %v3490, 7
        %v3493 = vshll.u32 %v3409, 16
        %v3495 = vor.u32 %v3492, %v3493
        %v3496 = vrot.slane %v3492, 4
        %v3498 = vshrl.u32 %v3410, 16
        %v3500 = vrot.slane %v3498, 7
        %v3501 = vshll.u32 %v3410, 16
        %v3503 = vor.u32 %v3500, %v3501
        %v3504 = vsel %vm3437, %v3496, %v3503
        %v3505 = vrot.slane %v3500, 4
        %v3507 = vshrl.u32 %v3411, 16
        %v3509 = vrot.slane %v3507, 7
        %v3510 = vshll.u32 %v3411, 16
        %v3512 = vor.u32 %v3509, %v3510
        %v3513 = vrot.slane %v3509, 4
        %v3515 = vshrl.u32 %v3412, 16
        %v3517 = vrot.slane %v3515, 7
        %v3518 = vshll.u32 %v3412, 16
        %v3520 = vor.u32 %v3517, %v3518
        %v3521 = vsel %vm3437, %v3513, %v3520
        %v3522 = vrot.slane %v3517, 4
        %v3524 = vshrl.u32 %v3413, 16
        %v3526 = vrot.slane %v3524, 7
        %v3527 = vshll.u32 %v3413, 16
        %v3529 = vor.u32 %v3526, %v3527
        %v3530 = vrot.slane %v3526, 4
        %v3532 = vshrl.u32 %v3414, 16
        %v3534 = vrot.slane %v3532, 7
        %v3535 = vshll.u32 %v3414, 16
        %v3537 = vor.u32 %v3534, %v3535
        %v3538 = vsel %vm3437, %v3530, %v3537
        %v3539 = vrot.slane %v3534, 4
        %v3541 = vshrl.u32 %v3415, 16
        %v3543 = vrot.slane %v3541, 7
        %v3544 = vshll.u32 %v3415, 16
        %v3546 = vor.u32 %v3543, %v3544
        %v3547 = vrot.slane %v3543, 4
        %v3549 = vshrl.u32 %v3416, 16
        %v3551 = vrot.slane %v3549, 7
        %v3552 = vshll.u32 %v3416, 16
        %v3554 = vor.u32 %v3551, %v3552
        %v3555 = vsel %vm3437, %v3547, %v3554
        %v3556 = vrot.slane %v3551, 4
        %v3558 = vshrl.u32 %v3417, 16
        %v3560 = vrot.slane %v3558, 7
        %v3561 = vshll.u32 %v3417, 16
        %v3563 = vor.u32 %v3560, %v3561
        %v3564 = vrot.slane %v3560, 4
        %v3566 = vshrl.u32 %v3418, 16
        %v3568 = vrot.slane %v3566, 7
        %v3569 = vshll.u32 %v3418, 16
        %v3571 = vor.u32 %v3568, %v3569
        %v3572 = vsel %vm3437, %v3564, %v3571
        %v3573 = vrot.slane %v3568, 4
        %v3575 = vshrl.u32 %v3419, 16
        %v3577 = vrot.slane %v3575, 7
        %v3578 = vshll.u32 %v3419, 16
        %v3580 = vor.u32 %v3577, %v3578
        %v3581 = vrot.slane %v3577, 4
        %v3583 = vshrl.u32 %v3420, 16
        %v3585 = vrot.slane %v3583, 7
        %v3586 = vshll.u32 %v3420, 16
        %v3588 = vor.u32 %v3585, %v3586
        %v3589 = vsel %vm3437, %v3581, %v3588
        %v3590 = vrot.slane %v3585, 4
        %v3592 = vshrl.u32 %v3421, 16
        %v3594 = vrot.slane %v3592, 7
        %v3595 = vshll.u32 %v3421, 16
        %v3597 = vor.u32 %v3594, %v3595
        %v3598 = vrot.slane %v3594, 4
        %v3600 = vshrl.u32 %v3422, 16
        %v3602 = vrot.slane %v3600, 7
        %v3603 = vshll.u32 %v3422, 16
        %v3605 = vor.u32 %v3602, %v3603
        %v3606 = vsel %vm3437, %v3598, %v3605
        %v3607 = vrot.slane %v3602, 4
        %v3609 = vshrl.u32 %v3423, 16
        %v3611 = vrot.slane %v3609, 7
        %v3612 = vshll.u32 %v3423, 16
        %v3614 = vor.u32 %v3611, %v3612
        %v3615 = vrot.slane %v3611, 4
        %v3617 = vshrl.u32 %v3424, 16
        %v3619 = vrot.slane %v3617, 7
        %v3620 = vshll.u32 %v3424, 16
        %v3622 = vor.u32 %v3619, %v3620
        %v3623 = vsel %vm3437, %v3615, %v3622
        %v3624 = vrot.slane %v3619, 4
        %v3626 = vshrl.u32 %v3425, 16
        %v3628 = vrot.slane %v3626, 7
        %v3629 = vshll.u32 %v3425, 16
        %v3631 = vor.u32 %v3628, %v3629
        %v3632 = vrot.slane %v3628, 4
        %v3634 = vshrl.u32 %v3426, 16
        %v3636 = vrot.slane %v3634, 7
        %v3637 = vshll.u32 %v3426, 16
        %v3639 = vor.u32 %v3636, %v3637
        %v3640 = vsel %vm3437, %v3632, %v3639
        %v3641 = vrot.slane %v3636, 4
        %v3643 = vshrl.u32 %v3427, 16
        %v3645 = vrot.slane %v3643, 7
        %v3646 = vshll.u32 %v3427, 16
        %v3648 = vor.u32 %v3645, %v3646
        %v3649 = vrot.slane %v3645, 4
        %v3651 = vshrl.u32 %v3428, 16
        %v3653 = vrot.slane %v3651, 7
        %v3654 = vshll.u32 %v3428, 16
        %v3656 = vor.u32 %v3653, %v3654
        %v3657 = vsel %vm3437, %v3649, %v3656
        %v3658 = vrot.slane %v3653, 4
        %v3660 = vshrl.u32 %v3429, 16
        %v3662 = vrot.slane %v3660, 7
        %v3663 = vshll.u32 %v3429, 16
        %v3665 = vor.u32 %v3662, %v3663
        %v3666 = vrot.slane %v3662, 4
        %v3668 = vshrl.u32 %v3430, 16
        %v3670 = vrot.slane %v3668, 7
        %v3671 = vshll.u32 %v3430, 16
        %v3673 = vor.u32 %v3670, %v3671
        %v3674 = vsel %vm3437, %v3666, %v3673
        %v3675 = vrot.slane %v3670, 4
        %v3677 = vshrl.u32 %v3431, 16
        %v3679 = vrot.slane %v3677, 7
        %v3680 = vshll.u32 %v3431, 16
        %v3682 = vor.u32 %v3679, %v3680
        %v3683 = vrot.slane %v3679, 4
        %v3685 = vshrl.u32 %v3432, 16
        %v3687 = vrot.slane %v3685, 7
        %v3688 = vshll.u32 %v3432, 16
        %v3690 = vor.u32 %v3687, %v3688
        %v3691 = vsel %vm3437, %v3683, %v3690
        %v3692 = vrot.slane %v3687, 4
        %v3694 = vshrl.u32 %v3433, 16
        %v3696 = vrot.slane %v3694, 7
        %v3697 = vshll.u32 %v3433, 16
        %v3699 = vor.u32 %v3696, %v3697
        %v3700 = vrot.slane %v3696, 4
        %v3702 = vshrl.u32 %v3434, 16
        %v3704 = vrot.slane %v3702, 7
        %v3705 = vshll.u32 %v3434, 16
        %v3707 = vor.u32 %v3704, %v3705
        %v3708 = vsel %vm3437, %v3700, %v3707
        %v3709 = vrot.slane %v3704, 4
        %vm3758 = vcmask 60416
        %vm3759 = vsmask.f32 7938
        %vm3760 = vmand %vm3758, %vm3759
        %v3761 = vld [vmem:[#allocation3] sm:$0xf]
        %v3762 = vsel %vm3760, %v3444, %v3761
        %3763 = vst [vmem:[#allocation3] sm:$0xf] %v3762
        %vm3764 = vcmask 60416
        %3765 = vst.msk [vmem:[#allocation3 + $0x4] sm:$0xf] %vm3764, %v3453
        %vm3766 = vcmask 57344
        %vm3767 = vmand %vm3766, %vm3435
        %v3768 = vld [vmem:[#allocation3 + $0x8] sm:$0x1]
        %v3769 = vsel %vm3767, %v3454, %v3768
        %3770 = vst [vmem:[#allocation3 + $0x8] sm:$0x1] %v3769
        %v3771 = vld [vmem:[#allocation3 + $0xc] sm:$0xf]
        %v3772 = vsel %vm3760, %v3461, %v3771
        %3773 = vst [vmem:[#allocation3 + $0xc] sm:$0xf] %v3772
        %3774 = vst.msk [vmem:[#allocation3 + $0x10] sm:$0xf] %vm3764, %v3470
        %v3775 = vld [vmem:[#allocation3 + $0x14] sm:$0x1]
        %v3776 = vsel %vm3767, %v3471, %v3775
        %3777 = vst [vmem:[#allocation3 + $0x14] sm:$0x1] %v3776
        %v3778 = vld [vmem:[#allocation3 + $0x18] sm:$0xf]
        %v3779 = vsel %vm3760, %v3478, %v3778
        %3780 = vst [vmem:[#allocation3 + $0x18] sm:$0xf] %v3779
        %3781 = vst.msk [vmem:[#allocation3 + $0x1c] sm:$0xf] %vm3764, %v3487
        %v3782 = vld [vmem:[#allocation3 + $0x20] sm:$0x1]
        %v3783 = vsel %vm3767, %v3488, %v3782
        %3784 = vst [vmem:[#allocation3 + $0x20] sm:$0x1] %v3783
        %v3785 = vld [vmem:[#allocation3 + $0x24] sm:$0xf]
        %v3786 = vsel %vm3760, %v3495, %v3785
        %3787 = vst [vmem:[#allocation3 + $0x24] sm:$0xf] %v3786
        %3788 = vst.msk [vmem:[#allocation3 + $0x28] sm:$0xf] %vm3764, %v3504
        %v3789 = vld [vmem:[#allocation3 + $0x2c] sm:$0x1]
        %v3790 = vsel %vm3767, %v3505, %v3789
        %3791 = vst [vmem:[#allocation3 + $0x2c] sm:$0x1] %v3790
        %v3792 = vld [vmem:[#allocation3 + $0x30] sm:$0xf]
        %v3793 = vsel %vm3760, %v3512, %v3792
        %3794 = vst [vmem:[#allocation3 + $0x30] sm:$0xf] %v3793
        %3795 = vst.msk [vmem:[#allocation3 + $0x34] sm:$0xf] %vm3764, %v3521
        %v3796 = vld [vmem:[#allocation3 + $0x38] sm:$0x1]
        %v3797 = vsel %vm3767, %v3522, %v3796
        %3798 = vst [vmem:[#allocation3 + $0x38] sm:$0x1] %v3797
        %v3799 = vld [vmem:[#allocation3 + $0x3c] sm:$0xf]
        %v3800 = vsel %vm3760, %v3529, %v3799
        %3801 = vst [vmem:[#allocation3 + $0x3c] sm:$0xf] %v3800
        %3802 = vst.msk [vmem:[#allocation3 + $0x40] sm:$0xf] %vm3764, %v3538
        %v3803 = vld [vmem:[#allocation3 + $0x44] sm:$0x1]
        %v3804 = vsel %vm3767, %v3539, %v3803
        %3805 = vst [vmem:[#allocation3 + $0x44] sm:$0x1] %v3804
        %v3806 = vld [vmem:[#allocation3 + $0x48] sm:$0xf]
        %v3807 = vsel %vm3760, %v3546, %v3806
        %3808 = vst [vmem:[#allocation3 + $0x48] sm:$0xf] %v3807
        %3809 = vst.msk [vmem:[#allocation3 + $0x4c] sm:$0xf] %vm3764, %v3555
        %v3810 = vld [vmem:[#allocation3 + $0x50] sm:$0x1]
        %v3811 = vsel %vm3767, %v3556, %v3810
        %3812 = vst [vmem:[#allocation3 + $0x50] sm:$0x1] %v3811
        %v3813 = vld [vmem:[#allocation3 + $0x54] sm:$0xf]
        %v3814 = vsel %vm3760, %v3563, %v3813
        %3815 = vst [vmem:[#allocation3 + $0x54] sm:$0xf] %v3814
        %3816 = vst.msk [vmem:[#allocation3 + $0x58] sm:$0xf] %vm3764, %v3572
        %v3817 = vld [vmem:[#allocation3 + $0x5c] sm:$0x1]
        %v3818 = vsel %vm3767, %v3573, %v3817
        %3819 = vst [vmem:[#allocation3 + $0x5c] sm:$0x1] %v3818
        %v3820 = vld [vmem:[#allocation3 + $0x60] sm:$0xf]
        %v3821 = vsel %vm3760, %v3580, %v3820
        %3822 = vst [vmem:[#allocation3 + $0x60] sm:$0xf] %v3821
        %3823 = vst.msk [vmem:[#allocation3 + $0x64] sm:$0xf] %vm3764, %v3589
        %v3824 = vld [vmem:[#allocation3 + $0x68] sm:$0x1]
        %v3825 = vsel %vm3767, %v3590, %v3824
        %3826 = vst [vmem:[#allocation3 + $0x68] sm:$0x1] %v3825
        %v3827 = vld [vmem:[#allocation3 + $0x6c] sm:$0xf]
        %v3828 = vsel %vm3760, %v3597, %v3827
        %3829 = vst [vmem:[#allocation3 + $0x6c] sm:$0xf] %v3828
        %3830 = vst.msk [vmem:[#allocation3 + $0x70] sm:$0xf] %vm3764, %v3606
        %v3831 = vld [vmem:[#allocation3 + $0x74] sm:$0x1]
        %v3832 = vsel %vm3767, %v3607, %v3831
        %3833 = vst [vmem:[#allocation3 + $0x74] sm:$0x1] %v3832
        %v3834 = vld [vmem:[#allocation3 + $0x78] sm:$0xf]
        %v3835 = vsel %vm3760, %v3614, %v3834
        %3836 = vst [vmem:[#allocation3 + $0x78] sm:$0xf] %v3835
        %3837 = vst.msk [vmem:[#allocation3 + $0x7c] sm:$0xf] %vm3764, %v3623
        %v3838 = vld [vmem:[#allocation3 + $0x80] sm:$0x1]
        %v3839 = vsel %vm3767, %v3624, %v3838
        %3840 = vst [vmem:[#allocation3 + $0x80] sm:$0x1] %v3839
        %v3841 = vld [vmem:[#allocation3 + $0x84] sm:$0xf]
        %v3842 = vsel %vm3760, %v3631, %v3841
        %3843 = vst [vmem:[#allocation3 + $0x84] sm:$0xf] %v3842
        %3844 = vst.msk [vmem:[#allocation3 + $0x88] sm:$0xf] %vm3764, %v3640
        %v3845 = vld [vmem:[#allocation3 + $0x8c] sm:$0x1]
        %v3846 = vsel %vm3767, %v3641, %v3845
        %3847 = vst [vmem:[#allocation3 + $0x8c] sm:$0x1] %v3846
        %v3848 = vld [vmem:[#allocation3 + $0x90] sm:$0xf]
        %v3849 = vsel %vm3760, %v3648, %v3848
        %3850 = vst [vmem:[#allocation3 + $0x90] sm:$0xf] %v3849
        %3851 = vst.msk [vmem:[#allocation3 + $0x94] sm:$0xf] %vm3764, %v3657
        %v3852 = vld [vmem:[#allocation3 + $0x98] sm:$0x1]
        %v3853 = vsel %vm3767, %v3658, %v3852
        %3854 = vst [vmem:[#allocation3 + $0x98] sm:$0x1] %v3853
        %v3855 = vld [vmem:[#allocation3 + $0x9c] sm:$0xf]
        %v3856 = vsel %vm3760, %v3665, %v3855
        %3857 = vst [vmem:[#allocation3 + $0x9c] sm:$0xf] %v3856
        %3858 = vst.msk [vmem:[#allocation3 + $0xa0] sm:$0xf] %vm3764, %v3674
        %v3859 = vld [vmem:[#allocation3 + $0xa4] sm:$0x1]
        %v3860 = vsel %vm3767, %v3675, %v3859
        %3861 = vst [vmem:[#allocation3 + $0xa4] sm:$0x1] %v3860
        %v3862 = vld [vmem:[#allocation3 + $0xa8] sm:$0xf]
        %v3863 = vsel %vm3760, %v3682, %v3862
        %3864 = vst [vmem:[#allocation3 + $0xa8] sm:$0xf] %v3863
        %3865 = vst.msk [vmem:[#allocation3 + $0xac] sm:$0xf] %vm3764, %v3691
        %v3866 = vld [vmem:[#allocation3 + $0xb0] sm:$0x1]
        %v3867 = vsel %vm3767, %v3692, %v3866
        %3868 = vst [vmem:[#allocation3 + $0xb0] sm:$0x1] %v3867
        %v3869 = vld [vmem:[#allocation3 + $0xb4] sm:$0xf]
        %v3870 = vsel %vm3760, %v3699, %v3869
        %3871 = vst [vmem:[#allocation3 + $0xb4] sm:$0xf] %v3870
        %3872 = vst.msk [vmem:[#allocation3 + $0xb8] sm:$0xf] %vm3764, %v3708
        %v3873 = vld [vmem:[#allocation3 + $0xbc] sm:$0x1]
        %v3874 = vsel %vm3767, %v3709, %v3873
        %3875 = vst [vmem:[#allocation3 + $0xbc] sm:$0x1] %v3874
        %s3876 = sadd.s32 %s963, 16
        %s3877 = smul.u32 %s3876, 3
        %s3878 = smul.addr %s3877, 4
        %s3879 = scalar_lea.vmem [#allocation2], %s3878
        %v3880 = vld [vmem:[%s3879] sm:$0xf]
        %v3881 = vld [vmem:[%s3879 + $0x4] sm:$0xf]
        %v3882 = vld [vmem:[%s3879 + $0x8] sm:$0x1]
        %v3883 = vld [vmem:[%s3879 + $0xc] sm:$0xf]
        %v3884 = vld [vmem:[%s3879 + $0x10] sm:$0xf]
        %v3885 = vld [vmem:[%s3879 + $0x14] sm:$0x1]
        %v3890 = vunpack.c.l.b16 %v3880
        %v3891 = vunpack.c.l.b16 %v3881
        %v3892 = vunpack.c.l.b16 %v3883
        %v3893 = vunpack.c.l.b16 %v3884
        %v3894 = vpack.c.b16 %v3891, %v3890
        %v3895 = vpack.c.b16 %v3893, %v3892
        %v3898 = vunpack.c.l.b16 %v3882
        %v3899 = vunpack.c.l.b16 %v3885
        %v3900 = vpack.c.b16 %v3898, %v3898
        %v3901 = vpack.c.b16 %v3899, %v3899
        %v3903 = vshrl.u32 %v3894, 16
        %v3905 = vshll.u32 %v3894, 16
        %v3907 = vrot.slane %v3905, 1
        %v3908 = vor.u32 %v3903, %v3907
        %v3910 = vshll.u32 %v3900, 16
        %v3912 = vrot.slane %v3910, 1
        %v3913 = vsel %vm1164, %v3908, %v3912
        %v3915 = vshrl.u32 %v3895, 16
        %v3917 = vshll.u32 %v3895, 16
        %v3919 = vrot.slane %v3917, 1
        %v3920 = vor.u32 %v3915, %v3919
        %v3922 = vshll.u32 %v3901, 16
        %v3924 = vrot.slane %v3922, 1
        %v3925 = vsel %vm1164, %v3920, %v3924
        %3926 = vrot.lane.b32.xlu0 %v3913, 4
        %v3927 = vpop.permute.xlu0 %3926
        %3928 = vrot.lane.b32.xlu0 %v3925, 4
        %v3929 = vpop.permute.xlu0 %3928
        %v3930 = vrot.slane %v3894, 1
        %v3931 = vrot.slane %v3900, 1
        %v3932 = vsel %vm1389, %v3930, %v3931
        %v3933 = vrot.slane %v3895, 1
        %v3934 = vrot.slane %v3901, 1
        %v3935 = vsel %vm1389, %v3933, %v3934
        %3936 = vrot.lane.b32.xlu0 %v3932, 8
        %v3937 = vpop.permute.xlu0 %3936
        %3938 = vrot.lane.b32.xlu0 %v3935, 8
        %v3939 = vpop.permute.xlu0 %3938
        %v3941 = vsel %vm1470, %v3894, %v3927
        %v3943 = vsel %vm1470, %v3895, %v3929
        %v3945 = vsel %vm1503, %v3941, %v3937
        %v3947 = vsel %vm1503, %v3943, %v3939
        %s3948 = sadd.s32 %s963, 17
        %s3949 = smul.u32 %s3948, 3
        %s3950 = smul.addr %s3949, 4
        %s3951 = scalar_lea.vmem [#allocation2], %s3950
        %v3952 = vld [vmem:[%s3951] sm:$0xf]
        %v3953 = vld [vmem:[%s3951 + $0x4] sm:$0xf]
        %v3954 = vld [vmem:[%s3951 + $0x8] sm:$0x1]
        %v3955 = vld [vmem:[%s3951 + $0xc] sm:$0xf]
        %v3956 = vld [vmem:[%s3951 + $0x10] sm:$0xf]
        %v3957 = vld [vmem:[%s3951 + $0x14] sm:$0x1]
        %v3962 = vunpack.c.l.b16 %v3952
        %v3963 = vunpack.c.l.b16 %v3953
        %v3964 = vunpack.c.l.b16 %v3955
        %v3965 = vunpack.c.l.b16 %v3956
        %v3966 = vpack.c.b16 %v3963, %v3962
        %v3967 = vpack.c.b16 %v3965, %v3964
        %v3970 = vunpack.c.l.b16 %v3954
        %v3971 = vunpack.c.l.b16 %v3957
        %v3972 = vpack.c.b16 %v3970, %v3970
        %v3973 = vpack.c.b16 %v3971, %v3971
        %v3975 = vshrl.u32 %v3966, 16
        %v3977 = vshll.u32 %v3966, 16
        %v3979 = vrot.slane %v3977, 1
        %v3980 = vor.u32 %v3975, %v3979
        %v3982 = vshll.u32 %v3972, 16
        %v3984 = vrot.slane %v3982, 1
        %v3985 = vsel %vm1164, %v3980, %v3984
        %v3987 = vshrl.u32 %v3967, 16
        %v3989 = vshll.u32 %v3967, 16
        %v3991 = vrot.slane %v3989, 1
        %v3992 = vor.u32 %v3987, %v3991
        %v3994 = vshll.u32 %v3973, 16
        %v3996 = vrot.slane %v3994, 1
        %v3997 = vsel %vm1164, %v3992, %v3996
        %3998 = vrot.lane.b32.xlu0 %v3985, 4
        %v3999 = vpop.permute.xlu0 %3998
        %4000 = vrot.lane.b32.xlu0 %v3997, 4
        %v4001 = vpop.permute.xlu0 %4000
        %v4002 = vrot.slane %v3966, 1
        %v4003 = vrot.slane %v3972, 1
        %v4004 = vsel %vm1389, %v4002, %v4003
        %v4005 = vrot.slane %v3967, 1
        %v4006 = vrot.slane %v3973, 1
        %v4007 = vsel %vm1389, %v4005, %v4006
        %4008 = vrot.lane.b32.xlu0 %v4004, 8
        %v4009 = vpop.permute.xlu0 %4008
        %4010 = vrot.lane.b32.xlu0 %v4007, 8
        %v4011 = vpop.permute.xlu0 %4010
        %v4013 = vsel %vm1470, %v3966, %v3999
        %v4015 = vsel %vm1470, %v3967, %v4001
        %v4017 = vsel %vm1503, %v4013, %v4009
        %v4019 = vsel %vm1503, %v4015, %v4011
        %v4020 = vsel %vm2089, %v4017, 0
        %v4022 = vsel %vm2089, %v4019, 0
        %4024 = vmatprep.subr.bf16.mxu0 0
        %4025 = vmatpush1.bf16.msra.mxu0 %v2124
        %4026 = vmatprep.subr.bf16.mxu0 0
        %4027 = vmatpush1.bf16.msra.mxu0 0
        %4028 = vmatprep.subr.bf16.mxu0 0
        %4029 = vmatpush1.bf16.msra.mxu0 0
        %4030 = vmatprep.subr.bf16.mxu0 0
        %4031 = vmatpush1.bf16.msra.mxu0 0
        %4032 = vmatprep.subr.bf16.mxu0 0
        %4033 = vmatpush1.bf16.msra.mxu0 0
        %4034 = vmatprep.subr.bf16.mxu0 0
        %4035 = vmatpush1.bf16.msra.mxu0 0
        %4036 = vmatprep.subr.bf16.mxu0 0
        %4037 = vmatpush1.bf16.msra.mxu0 0
        %4038 = vmatprep.subr.bf16.mxu0 0
        %4039 = vmatpush1.bf16.msra.mxu0 0
        %4040 = vmatprep.subr.bf16.mxu0 0
        %4041 = vmatpush1.bf16.msra.mxu0 0
        %4042 = vmatprep.subr.bf16.mxu0 0
        %4043 = vmatpush1.bf16.msra.mxu0 0
        %4044 = vmatprep.subr.bf16.mxu0 0
        %4045 = vmatpush1.bf16.msra.mxu0 0
        %4046 = vmatprep.subr.bf16.mxu0 0
        %4047 = vmatpush1.bf16.msra.mxu0 0
        %4048 = vmatprep.subr.bf16.mxu0 0
        %4049 = vmatpush1.bf16.msra.mxu0 0
        %4050 = vmatprep.subr.bf16.mxu0 0
        %4051 = vmatpush1.bf16.msra.mxu0 0
        %4052 = vmatprep.subr.bf16.mxu0 0
        %4053 = vmatpush1.bf16.msra.mxu0 0
        %4054 = vmatprep.subr.bf16.mxu0 0
        %4055 = vmatpush1.bf16.msra.mxu0 0
        %4056 = vmatprep.mubr.bf16.mxu0 0
        %4057 = vmatmul.mubr.bf16.gmra.mrb[0].mxu0 %v4020
        %v4058 = vpop.f32.mrb[0].mxu0
        %v4059 = vadd.f32 0.0, %v4058
        %v4060 = vpop.f32.mrb[0].mxu0
        %v4061 = vpop.f32.mrb[0].mxu0
        %v4062 = vadd.f32 0.0, %v4061
        %v4063 = vpop.f32.mrb[0].mxu0
        %4064 = vmatprep.mubr.bf16.mxu0 0
        %4065 = vmatmul.mubr.bf16.gmra.mrb[0].mxu0 %v4022
        %v4066 = vpop.f32.mrb[0].mxu0
        %v4067 = vadd.f32 0.0, %v4066
        %v4068 = vpop.f32.mrb[0].mxu0
        %v4069 = vpop.f32.mrb[0].mxu0
        %v4070 = vadd.f32 0.0, %v4069
        %v4071 = vpop.f32.mrb[0].mxu0
        %4072 = vdwg.mxu0
        %v4073 = vsel %vm2089, %v3945, 0
        %v4075 = vsel %vm2089, %v3947, 0
        %4077 = vmatprep.subr.bf16.mxu0 0
        %4078 = vmatpush1.bf16.msra.mxu0 %v2325
        %4079 = vmatprep.subr.bf16.mxu0 0
        %4080 = vmatpush1.bf16.msra.mxu0 0
        %4081 = vmatprep.subr.bf16.mxu0 0
        %4082 = vmatpush1.bf16.msra.mxu0 0
        %4083 = vmatprep.subr.bf16.mxu0 0
        %4084 = vmatpush1.bf16.msra.mxu0 0
        %4085 = vmatprep.subr.bf16.mxu0 0
        %4086 = vmatpush1.bf16.msra.mxu0 0
        %4087 = vmatprep.subr.bf16.mxu0 0
        %4088 = vmatpush1.bf16.msra.mxu0 0
        %4089 = vmatprep.subr.bf16.mxu0 0
        %4090 = vmatpush1.bf16.msra.mxu0 0
        %4091 = vmatprep.subr.bf16.mxu0 0
        %4092 = vmatpush1.bf16.msra.mxu0 0
        %4093 = vmatprep.subr.bf16.mxu0 0
        %4094 = vmatpush1.bf16.msra.mxu0 0
        %4095 = vmatprep.subr.bf16.mxu0 0
        %4096 = vmatpush1.bf16.msra.mxu0 0
        %4097 = vmatprep.subr.bf16.mxu0 0
        %4098 = vmatpush1.bf16.msra.mxu0 0
        %4099 = vmatprep.subr.bf16.mxu0 0
        %4100 = vmatpush1.bf16.msra.mxu0 0
        %4101 = vmatprep.subr.bf16.mxu0 0
        %4102 = vmatpush1.bf16.msra.mxu0 0
        %4103 = vmatprep.subr.bf16.mxu0 0
        %4104 = vmatpush1.bf16.msra.mxu0 0
        %4105 = vmatprep.subr.bf16.mxu0 0
        %4106 = vmatpush1.bf16.msra.mxu0 0
        %4107 = vmatprep.subr.bf16.mxu0 0
        %4108 = vmatpush1.bf16.msra.mxu0 0
        %4109 = vmatprep.mubr.bf16.mxu0 0
        %4110 = vmatmul.mubr.bf16.gmra.mrb[0].mxu0 %v4073
        %v4111 = vpop.f32.mrb[0].mxu0
        %v4112 = vadd.f32 %v4059, %v4111
        %v4113 = vpop.f32.mrb[0].mxu0
        %v4114 = vpop.f32.mrb[0].mxu0
        %v4115 = vadd.f32 %v4062, %v4114
        %v4116 = vpop.f32.mrb[0].mxu0
        %4117 = vmatprep.mubr.bf16.mxu0 0
        %4118 = vmatmul.mubr.bf16.gmra.mrb[0].mxu0 %v4075
        %v4119 = vpop.f32.mrb[0].mxu0
        %v4120 = vadd.f32 %v4067, %v4119
        %v4121 = vpop.f32.mrb[0].mxu0
        %v4122 = vpop.f32.mrb[0].mxu0
        %v4123 = vadd.f32 %v4070, %v4122
        %v4124 = vpop.f32.mrb[0].mxu0
        %4125 = vdwg.mxu0
        %s4126 = sadd.s32 %s963, 18
        %s4127 = smul.u32 %s4126, 3
        %s4128 = smul.addr %s4127, 4
        %s4129 = scalar_lea.vmem [#allocation2], %s4128
        %v4130 = vld [vmem:[%s4129] sm:$0xf]
        %v4131 = vld [vmem:[%s4129 + $0x4] sm:$0xf]
        %v4132 = vld [vmem:[%s4129 + $0x8] sm:$0x1]
        %v4133 = vld [vmem:[%s4129 + $0xc] sm:$0xf]
        %v4134 = vld [vmem:[%s4129 + $0x10] sm:$0xf]
        %v4135 = vld [vmem:[%s4129 + $0x14] sm:$0x1]
        %v4140 = vunpack.c.l.b16 %v4130
        %v4141 = vunpack.c.l.b16 %v4131
        %v4142 = vunpack.c.l.b16 %v4133
        %v4143 = vunpack.c.l.b16 %v4134
        %v4144 = vpack.c.b16 %v4141, %v4140
        %v4145 = vpack.c.b16 %v4143, %v4142
        %v4148 = vunpack.c.l.b16 %v4132
        %v4149 = vunpack.c.l.b16 %v4135
        %v4150 = vpack.c.b16 %v4148, %v4148
        %v4151 = vpack.c.b16 %v4149, %v4149
        %v4153 = vshrl.u32 %v4144, 16
        %v4155 = vshll.u32 %v4144, 16
        %v4157 = vrot.slane %v4155, 1
        %v4158 = vor.u32 %v4153, %v4157
        %v4160 = vshll.u32 %v4150, 16
        %v4162 = vrot.slane %v4160, 1
        %v4163 = vsel %vm1164, %v4158, %v4162
        %v4165 = vshrl.u32 %v4145, 16
        %v4167 = vshll.u32 %v4145, 16
        %v4169 = vrot.slane %v4167, 1
        %v4170 = vor.u32 %v4165, %v4169
        %v4172 = vshll.u32 %v4151, 16
        %v4174 = vrot.slane %v4172, 1
        %v4175 = vsel %vm1164, %v4170, %v4174
        %4176 = vrot.lane.b32.xlu0 %v4163, 4
        %v4177 = vpop.permute.xlu0 %4176
        %4178 = vrot.lane.b32.xlu0 %v4175, 4
        %v4179 = vpop.permute.xlu0 %4178
        %v4180 = vrot.slane %v4144, 1
        %v4181 = vrot.slane %v4150, 1
        %v4182 = vsel %vm1389, %v4180, %v4181
        %v4183 = vrot.slane %v4145, 1
        %v4184 = vrot.slane %v4151, 1
        %v4185 = vsel %vm1389, %v4183, %v4184
        %4186 = vrot.lane.b32.xlu0 %v4182, 8
        %v4187 = vpop.permute.xlu0 %4186
        %4188 = vrot.lane.b32.xlu0 %v4185, 8
        %v4189 = vpop.permute.xlu0 %4188
        %v4191 = vsel %vm1470, %v4144, %v4177
        %v4193 = vsel %vm1470, %v4145, %v4179
        %v4195 = vsel %vm1503, %v4191, %v4187
        %v4197 = vsel %vm1503, %v4193, %v4189
        %v4198 = vsel %vm2089, %v4195, 0
        %v4200 = vsel %vm2089, %v4197, 0
        %4202 = vmatprep.subr.bf16.mxu0 0
        %4203 = vmatpush1.bf16.msra.mxu0 %v3074
        %4204 = vmatprep.subr.bf16.mxu0 0
        %4205 = vmatpush1.bf16.msra.mxu0 0
        %4206 = vmatprep.subr.bf16.mxu0 0
        %4207 = vmatpush1.bf16.msra.mxu0 0
        %4208 = vmatprep.subr.bf16.mxu0 0
        %4209 = vmatpush1.bf16.msra.mxu0 0
        %4210 = vmatprep.subr.bf16.mxu0 0
        %4211 = vmatpush1.bf16.msra.mxu0 0
        %4212 = vmatprep.subr.bf16.mxu0 0
        %4213 = vmatpush1.bf16.msra.mxu0 0
        %4214 = vmatprep.subr.bf16.mxu0 0
        %4215 = vmatpush1.bf16.msra.mxu0 0
        %4216 = vmatprep.subr.bf16.mxu0 0
        %4217 = vmatpush1.bf16.msra.mxu0 0
        %4218 = vmatprep.subr.bf16.mxu0 0
        %4219 = vmatpush1.bf16.msra.mxu0 0
        %4220 = vmatprep.subr.bf16.mxu0 0
        %4221 = vmatpush1.bf16.msra.mxu0 0
        %4222 = vmatprep.subr.bf16.mxu0 0
        %4223 = vmatpush1.bf16.msra.mxu0 0
        %4224 = vmatprep.subr.bf16.mxu0 0
        %4225 = vmatpush1.bf16.msra.mxu0 0
        %4226 = vmatprep.subr.bf16.mxu0 0
        %4227 = vmatpush1.bf16.msra.mxu0 0
        %4228 = vmatprep.subr.bf16.mxu0 0
        %4229 = vmatpush1.bf16.msra.mxu0 0
        %4230 = vmatprep.subr.bf16.mxu0 0
        %4231 = vmatpush1.bf16.msra.mxu0 0
        %4232 = vmatprep.subr.bf16.mxu0 0
        %4233 = vmatpush1.bf16.msra.mxu0 0
        %4234 = vmatprep.mubr.bf16.mxu0 0
        %4235 = vmatmul.mubr.bf16.gmra.mrb[0].mxu0 %v4198
        %v4236 = vpop.f32.mrb[0].mxu0
        %v4237 = vadd.f32 0.0, %v4236
        %v4238 = vpop.f32.mrb[0].mxu0
        %v4239 = vpop.f32.mrb[0].mxu0
        %v4240 = vadd.f32 0.0, %v4239
        %v4241 = vpop.f32.mrb[0].mxu0
        %4242 = vmatprep.mubr.bf16.mxu0 0
        %4243 = vmatmul.mubr.bf16.gmra.mrb[0].mxu0 %v4200
        %v4244 = vpop.f32.mrb[0].mxu0
        %v4245 = vadd.f32 0.0, %v4244
        %v4246 = vpop.f32.mrb[0].mxu0
        %v4247 = vpop.f32.mrb[0].mxu0
        %v4248 = vadd.f32 0.0, %v4247
        %v4249 = vpop.f32.mrb[0].mxu0
        %4250 = vdwg.mxu0
        %v4251 = vadd.f32 %v4112, %v4237
        %v4252 = vadd.f32 %v4115, %v4240
        %v4253 = vadd.f32 %v4120, %v4245
        %v4254 = vadd.f32 %v4123, %v4248
        %v4255 = vadd.f32 %v4251, %v3273
        %v4256 = vadd.f32 %v4252, %v3273
        %v4257 = vadd.f32 %v4253, %v3273
        %v4258 = vadd.f32 %v4254, %v3273
        %v4259 = vmax.f32 %v4255, 0.0
        %v4260 = vmax.f32 %v4256, 0.0
        %v4261 = vmax.f32 %v4257, 0.0
        %v4262 = vmax.f32 %v4258, 0.0
        %v4263 = vpack.c.bf16 %v4260, %v4259
        %v4264 = vpack.c.bf16 %v4262, %v4261
        %v4267 = vunpack.c.l.b16 %v4263
        %v4268 = vunpack.c.h.b16 %v4263
        %v4269 = vunpack.c.l.b16 %v4264
        %v4270 = vunpack.c.h.b16 %v4264
        %v4271 = vpack.c.b16 %v4267, %v4267
        %v4272 = vpack.c.b16 %v4268, %v4268
        %v4273 = vpack.c.b16 %v4269, %v4269
        %v4274 = vpack.c.b16 %v4270, %v4270
        %v4276 = vshrl.u32 %v4271, 16
        %v4278 = vrot.slane %v4276, 7
        %v4279 = vshll.u32 %v4271, 16
        %v4281 = vor.u32 %v4278, %v4279
        %v4282 = vrot.slane %v4278, 4
        %v4284 = vshrl.u32 %v4272, 16
        %v4286 = vrot.slane %v4284, 7
        %v4287 = vshll.u32 %v4272, 16
        %v4289 = vor.u32 %v4286, %v4287
        %v4290 = vsel %vm3437, %v4282, %v4289
        %v4291 = vrot.slane %v4286, 4
        %v4293 = vshrl.u32 %v4273, 16
        %v4295 = vrot.slane %v4293, 7
        %v4296 = vshll.u32 %v4273, 16
        %v4298 = vor.u32 %v4295, %v4296
        %v4299 = vrot.slane %v4295, 4
        %v4301 = vshrl.u32 %v4274, 16
        %v4303 = vrot.slane %v4301, 7
        %v4304 = vshll.u32 %v4274, 16
        %v4306 = vor.u32 %v4303, %v4304
        %v4307 = vsel %vm3437, %v4299, %v4306
        %v4308 = vrot.slane %v4303, 4
        %s4315 = scalar_lea.vmem [#allocation3], 192
        %v4316 = vld [vmem:[%s4315] sm:$0xf]
        %v4317 = vsel %vm3760, %v4281, %v4316
        %4318 = vst [vmem:[%s4315] sm:$0xf] %v4317
        %4319 = vst.msk [vmem:[%s4315 + $0x4] sm:$0xf] %vm3764, %v4290
        %v4320 = vld [vmem:[%s4315 + $0x8] sm:$0x1]
        %v4321 = vsel %vm3767, %v4291, %v4320
        %4322 = vst [vmem:[%s4315 + $0x8] sm:$0x1] %v4321
        %v4323 = vld [vmem:[%s4315 + $0xc] sm:$0xf]
        %v4324 = vsel %vm3760, %v4298, %v4323
        %4325 = vst [vmem:[%s4315 + $0xc] sm:$0xf] %v4324
        %4326 = vst.msk [vmem:[%s4315 + $0x10] sm:$0xf] %vm3764, %v4307
        %v4327 = vld [vmem:[%s4315 + $0x14] sm:$0x1]
        %v4328 = vsel %vm3767, %v4308, %v4327
        %4329 = vst [vmem:[%s4315 + $0x14] sm:$0x1] %v4328
        // Predicated region
        $region45: #{tpu_custom_call.1} parent=39 // pred_check
          %p4330 = pneg %p239
        $region46: #{tpu_custom_call.1} parent=39 // pred_check_branch
          %4332 = sbr.rel (%p4330) target = $region48
        $region47: #{tpu_custom_call.1} parent=39 // pred_region
          %v4333 = vld [vmem:[#allocation3] sm:$0xf]
          %v4334 = vsel %vm3760, 0, %v4333
          %4335 = vst [vmem:[#allocation3] sm:$0xf] %v4334
          %4336 = vst.msk [vmem:[#allocation3 + $0x4] sm:$0xf] %vm3764, 0
          %v4337 = vld [vmem:[#allocation3 + $0x8] sm:$0x1]
          %v4338 = vsel %vm3767, 0, %v4337
          %4339 = vst [vmem:[#allocation3 + $0x8] sm:$0x1] %v4338
          %s4340 = scalar_lea.vmem [#allocation3], 204
          %v4341 = vld [vmem:[%s4340] sm:$0xf]
          %v4342 = vsel %vm3760, 0, %v4341
          %4343 = vst [vmem:[%s4340] sm:$0xf] %v4342
          %4344 = vst.msk [vmem:[%s4340 + $0x4] sm:$0xf] %vm3764, 0
          %v4345 = vld [vmem:[%s4340 + $0x8] sm:$0x1]
          %v4346 = vsel %vm3767, 0, %v4345
          %4347 = vst [vmem:[%s4340 + $0x8] sm:$0x1] %v4346
        $region48: #{tpu_custom_call.1} parent=39 // pred_fallthru
          _
        %v4348 = vld [vmem:[#allocation3] sm:$0xf]
        %v4349 = vld [vmem:[#allocation3 + $0x4] sm:$0xf]
        %v4350 = vld [vmem:[#allocation3 + $0x8] sm:$0x1]
        %v4351 = vld [vmem:[#allocation3 + $0xc] sm:$0xf]
        %v4352 = vld [vmem:[#allocation3 + $0x10] sm:$0xf]
        %v4353 = vld [vmem:[#allocation3 + $0x14] sm:$0x1]
        %v4354 = vld [vmem:[#allocation3 + $0x18] sm:$0xf]
        %v4355 = vld [vmem:[#allocation3 + $0x1c] sm:$0xf]
        %v4356 = vld [vmem:[#allocation3 + $0x20] sm:$0x1]
        %v4357 = vld [vmem:[#allocation3 + $0x24] sm:$0xf]
        %v4358 = vld [vmem:[#allocation3 + $0x28] sm:$0xf]
        %v4359 = vld [vmem:[#allocation3 + $0x2c] sm:$0x1]
        %v4360 = vld [vmem:[#allocation3 + $0x30] sm:$0xf]
        %v4361 = vld [vmem:[#allocation3 + $0x34] sm:$0xf]
        %v4362 = vld [vmem:[#allocation3 + $0x38] sm:$0x1]
        %v4363 = vld [vmem:[#allocation3 + $0x3c] sm:$0xf]
        %v4364 = vld [vmem:[#allocation3 + $0x40] sm:$0xf]
        %v4365 = vld [vmem:[#allocation3 + $0x44] sm:$0x1]
        %v4366 = vld [vmem:[#allocation3 + $0x48] sm:$0xf]
        %v4367 = vld [vmem:[#allocation3 + $0x4c] sm:$0xf]
        %v4368 = vld [vmem:[#allocation3 + $0x50] sm:$0x1]
        %v4369 = vld [vmem:[#allocation3 + $0x54] sm:$0xf]
        %v4370 = vld [vmem:[#allocation3 + $0x58] sm:$0xf]
        %v4371 = vld [vmem:[#allocation3 + $0x5c] sm:$0x1]
        %v4372 = vld [vmem:[#allocation3 + $0x60] sm:$0xf]
        %v4373 = vld [vmem:[#allocation3 + $0x64] sm:$0xf]
        %v4374 = vld [vmem:[#allocation3 + $0x68] sm:$0x1]
        %v4375 = vld [vmem:[#allocation3 + $0x6c] sm:$0xf]
        %v4376 = vld [vmem:[#allocation3 + $0x70] sm:$0xf]
        %v4377 = vld [vmem:[#allocation3 + $0x74] sm:$0x1]
        %v4378 = vld [vmem:[#allocation3 + $0x78] sm:$0xf]
        %v4379 = vld [vmem:[#allocation3 + $0x7c] sm:$0xf]
        %v4380 = vld [vmem:[#allocation3 + $0x80] sm:$0x1]
        %v4381 = vld [vmem:[#allocation3 + $0x84] sm:$0xf]
        %v4382 = vld [vmem:[#allocation3 + $0x88] sm:$0xf]
        %v4383 = vld [vmem:[#allocation3 + $0x8c] sm:$0x1]
        %v4384 = vld [vmem:[#allocation3 + $0x90] sm:$0xf]
        %v4385 = vld [vmem:[#allocation3 + $0x94] sm:$0xf]
        %v4386 = vld [vmem:[#allocation3 + $0x98] sm:$0x1]
        %v4387 = vld [vmem:[#allocation3 + $0x9c] sm:$0xf]
        %v4388 = vld [vmem:[#allocation3 + $0xa0] sm:$0xf]
        %v4389 = vld [vmem:[#allocation3 + $0xa4] sm:$0x1]
        %v4390 = vld [vmem:[#allocation3 + $0xa8] sm:$0xf]
        %v4391 = vld [vmem:[#allocation3 + $0xac] sm:$0xf]
        %v4392 = vld [vmem:[#allocation3 + $0xb0] sm:$0x1]
        %v4393 = vld [vmem:[#allocation3 + $0xb4] sm:$0xf]
        %v4394 = vld [vmem:[#allocation3 + $0xb8] sm:$0xf]
        %v4395 = vld [vmem:[#allocation3 + $0xbc] sm:$0x1]
        %v4428 = vunpack.c.l.b16 %v4348
        %v4429 = vunpack.c.l.b16 %v4349
        %v4430 = vunpack.c.l.b16 %v4351
        %v4431 = vunpack.c.l.b16 %v4352
        %v4432 = vunpack.c.l.b16 %v4354
        %v4433 = vunpack.c.l.b16 %v4355
        %v4434 = vunpack.c.l.b16 %v4357
        %v4435 = vunpack.c.l.b16 %v4358
        %v4436 = vunpack.c.l.b16 %v4360
        %v4437 = vunpack.c.l.b16 %v4361
        %v4438 = vunpack.c.l.b16 %v4363
        %v4439 = vunpack.c.l.b16 %v4364
        %v4440 = vunpack.c.l.b16 %v4366
        %v4441 = vunpack.c.l.b16 %v4367
        %v4442 = vunpack.c.l.b16 %v4369
        %v4443 = vunpack.c.l.b16 %v4370
        %v4444 = vunpack.c.l.b16 %v4372
        %v4445 = vunpack.c.l.b16 %v4373
        %v4446 = vunpack.c.l.b16 %v4375
        %v4447 = vunpack.c.l.b16 %v4376
        %v4448 = vunpack.c.l.b16 %v4378
        %v4449 = vunpack.c.l.b16 %v4379
        %v4450 = vunpack.c.l.b16 %v4381
        %v4451 = vunpack.c.l.b16 %v4382
        %v4452 = vunpack.c.l.b16 %v4384
        %v4453 = vunpack.c.l.b16 %v4385
        %v4454 = vunpack.c.l.b16 %v4387
        %v4455 = vunpack.c.l.b16 %v4388
        %v4456 = vunpack.c.l.b16 %v4390
        %v4457 = vunpack.c.l.b16 %v4391
        %v4458 = vunpack.c.l.b16 %v4393
        %v4459 = vunpack.c.l.b16 %v4394
        %v4460 = vpack.c.b16 %v4429, %v4428
        %v4461 = vpack.c.b16 %v4431, %v4430
        %v4462 = vpack.c.b16 %v4433, %v4432
        %v4463 = vpack.c.b16 %v4435, %v4434
        %v4464 = vpack.c.b16 %v4437, %v4436
        %v4465 = vpack.c.b16 %v4439, %v4438
        %v4466 = vpack.c.b16 %v4441, %v4440
        %v4467 = vpack.c.b16 %v4443, %v4442
        %v4468 = vpack.c.b16 %v4445, %v4444
        %v4469 = vpack.c.b16 %v4447, %v4446
        %v4470 = vpack.c.b16 %v4449, %v4448
        %v4471 = vpack.c.b16 %v4451, %v4450
        %v4472 = vpack.c.b16 %v4453, %v4452
        %v4473 = vpack.c.b16 %v4455, %v4454
        %v4474 = vpack.c.b16 %v4457, %v4456
        %v4475 = vpack.c.b16 %v4459, %v4458
        %v4492 = vunpack.c.l.b16 %v4350
        %v4493 = vunpack.c.l.b16 %v4353
        %v4494 = vunpack.c.l.b16 %v4356
        %v4495 = vunpack.c.l.b16 %v4359
        %v4496 = vunpack.c.l.b16 %v4362
        %v4497 = vunpack.c.l.b16 %v4365
        %v4498 = vunpack.c.l.b16 %v4368
        %v4499 = vunpack.c.l.b16 %v4371
        %v4500 = vunpack.c.l.b16 %v4374
        %v4501 = vunpack.c.l.b16 %v4377
        %v4502 = vunpack.c.l.b16 %v4380
        %v4503 = vunpack.c.l.b16 %v4383
        %v4504 = vunpack.c.l.b16 %v4386
        %v4505 = vunpack.c.l.b16 %v4389
        %v4506 = vunpack.c.l.b16 %v4392
        %v4507 = vunpack.c.l.b16 %v4395
        %v4508 = vpack.c.b16 %v4492, %v4492
        %v4509 = vpack.c.b16 %v4493, %v4493
        %v4510 = vpack.c.b16 %v4494, %v4494
        %v4511 = vpack.c.b16 %v4495, %v4495
        %v4512 = vpack.c.b16 %v4496, %v4496
        %v4513 = vpack.c.b16 %v4497, %v4497
        %v4514 = vpack.c.b16 %v4498, %v4498
        %v4515 = vpack.c.b16 %v4499, %v4499
        %v4516 = vpack.c.b16 %v4500, %v4500
        %v4517 = vpack.c.b16 %v4501, %v4501
        %v4518 = vpack.c.b16 %v4502, %v4502
        %v4519 = vpack.c.b16 %v4503, %v4503
        %v4520 = vpack.c.b16 %v4504, %v4504
        %v4521 = vpack.c.b16 %v4505, %v4505
        %v4522 = vpack.c.b16 %v4506, %v4506
        %v4523 = vpack.c.b16 %v4507, %v4507
        %v4525 = vshrl.u32 %v4460, 16
        %v4527 = vshll.u32 %v4460, 16
        %v4529 = vrot.slane %v4527, 1
        %v4530 = vor.u32 %v4525, %v4529
        %v4532 = vshll.u32 %v4508, 16
        %v4534 = vrot.slane %v4532, 1
        %v4535 = vsel %vm1164, %v4530, %v4534
        %v4537 = vshrl.u32 %v4461, 16
        %v4539 = vshll.u32 %v4461, 16
        %v4541 = vrot.slane %v4539, 1
        %v4542 = vor.u32 %v4537, %v4541
        %v4544 = vshll.u32 %v4509, 16
        %v4546 = vrot.slane %v4544, 1
        %v4547 = vsel %vm1164, %v4542, %v4546
        %v4549 = vshrl.u32 %v4462, 16
        %v4551 = vshll.u32 %v4462, 16
        %v4553 = vrot.slane %v4551, 1
        %v4554 = vor.u32 %v4549, %v4553
        %v4556 = vshll.u32 %v4510, 16
        %v4558 = vrot.slane %v4556, 1
        %v4559 = vsel %vm1164, %v4554, %v4558
        %v4561 = vshrl.u32 %v4463, 16
        %v4563 = vshll.u32 %v4463, 16
        %v4565 = vrot.slane %v4563, 1
        %v4566 = vor.u32 %v4561, %v4565
        %v4568 = vshll.u32 %v4511, 16
        %v4570 = vrot.slane %v4568, 1
        %v4571 = vsel %vm1164, %v4566, %v4570
        %v4573 = vshrl.u32 %v4464, 16
        %v4575 = vshll.u32 %v4464, 16
        %v4577 = vrot.slane %v4575, 1
        %v4578 = vor.u32 %v4573, %v4577
        %v4580 = vshll.u32 %v4512, 16
        %v4582 = vrot.slane %v4580, 1
        %v4583 = vsel %vm1164, %v4578, %v4582
        %v4585 = vshrl.u32 %v4465, 16
        %v4587 = vshll.u32 %v4465, 16
        %v4589 = vrot.slane %v4587, 1
        %v4590 = vor.u32 %v4585, %v4589
        %v4592 = vshll.u32 %v4513, 16
        %v4594 = vrot.slane %v4592, 1
        %v4595 = vsel %vm1164, %v4590, %v4594
        %v4597 = vshrl.u32 %v4466, 16
        %v4599 = vshll.u32 %v4466, 16
        %v4601 = vrot.slane %v4599, 1
        %v4602 = vor.u32 %v4597, %v4601
        %v4604 = vshll.u32 %v4514, 16
        %v4606 = vrot.slane %v4604, 1
        %v4607 = vsel %vm1164, %v4602, %v4606
        %v4609 = vshrl.u32 %v4467, 16
        %v4611 = vshll.u32 %v4467, 16
        %v4613 = vrot.slane %v4611, 1
        %v4614 = vor.u32 %v4609, %v4613
        %v4616 = vshll.u32 %v4515, 16
        %v4618 = vrot.slane %v4616, 1
        %v4619 = vsel %vm1164, %v4614, %v4618
        %v4621 = vshrl.u32 %v4468, 16
        %v4623 = vshll.u32 %v4468, 16
        %v4625 = vrot.slane %v4623, 1
        %v4626 = vor.u32 %v4621, %v4625
        %v4628 = vshll.u32 %v4516, 16
        %v4630 = vrot.slane %v4628, 1
        %v4631 = vsel %vm1164, %v4626, %v4630
        %v4633 = vshrl.u32 %v4469, 16
        %v4635 = vshll.u32 %v4469, 16
        %v4637 = vrot.slane %v4635, 1
        %v4638 = vor.u32 %v4633, %v4637
        %v4640 = vshll.u32 %v4517, 16
        %v4642 = vrot.slane %v4640, 1
        %v4643 = vsel %vm1164, %v4638, %v4642
        %v4645 = vshrl.u32 %v4470, 16
        %v4647 = vshll.u32 %v4470, 16
        %v4649 = vrot.slane %v4647, 1
        %v4650 = vor.u32 %v4645, %v4649
        %v4652 = vshll.u32 %v4518, 16
        %v4654 = vrot.slane %v4652, 1
        %v4655 = vsel %vm1164, %v4650, %v4654
        %v4657 = vshrl.u32 %v4471, 16
        %v4659 = vshll.u32 %v4471, 16
        %v4661 = vrot.slane %v4659, 1
        %v4662 = vor.u32 %v4657, %v4661
        %v4664 = vshll.u32 %v4519, 16
        %v4666 = vrot.slane %v4664, 1
        %v4667 = vsel %vm1164, %v4662, %v4666
        %v4669 = vshrl.u32 %v4472, 16
        %v4671 = vshll.u32 %v4472, 16
        %v4673 = vrot.slane %v4671, 1
        %v4674 = vor.u32 %v4669, %v4673
        %v4676 = vshll.u32 %v4520, 16
        %v4678 = vrot.slane %v4676, 1
        %v4679 = vsel %vm1164, %v4674, %v4678
        %v4681 = vshrl.u32 %v4473, 16
        %v4683 = vshll.u32 %v4473, 16
        %v4685 = vrot.slane %v4683, 1
        %v4686 = vor.u32 %v4681, %v4685
        %v4688 = vshll.u32 %v4521, 16
        %v4690 = vrot.slane %v4688, 1
        %v4691 = vsel %vm1164, %v4686, %v4690
        %v4693 = vshrl.u32 %v4474, 16
        %v4695 = vshll.u32 %v4474, 16
        %v4697 = vrot.slane %v4695, 1
        %v4698 = vor.u32 %v4693, %v4697
        %v4700 = vshll.u32 %v4522, 16
        %v4702 = vrot.slane %v4700, 1
        %v4703 = vsel %vm1164, %v4698, %v4702
        %v4705 = vshrl.u32 %v4475, 16
        %v4707 = vshll.u32 %v4475, 16
        %v4709 = vrot.slane %v4707, 1
        %v4710 = vor.u32 %v4705, %v4709
        %v4712 = vshll.u32 %v4523, 16
        %v4714 = vrot.slane %v4712, 1
        %v4715 = vsel %vm1164, %v4710, %v4714
        %4716 = vrot.lane.b32.xlu0 %v4535, 8
        %v4717 = vpop.permute.xlu0 %4716
        %4718 = vrot.lane.b32.xlu0 %v4547, 8
        %v4719 = vpop.permute.xlu0 %4718
        %4720 = vrot.lane.b32.xlu0 %v4559, 8
        %v4721 = vpop.permute.xlu0 %4720
        %4722 = vrot.lane.b32.xlu0 %v4571, 8
        %v4723 = vpop.permute.xlu0 %4722
        %4724 = vrot.lane.b32.xlu0 %v4583, 8
        %v4725 = vpop.permute.xlu0 %4724
        %4726 = vrot.lane.b32.xlu0 %v4595, 8
        %v4727 = vpop.permute.xlu0 %4726
        %4728 = vrot.lane.b32.xlu0 %v4607, 8
        %v4729 = vpop.permute.xlu0 %4728
        %4730 = vrot.lane.b32.xlu0 %v4619, 8
        %v4731 = vpop.permute.xlu0 %4730
        %4732 = vrot.lane.b32.xlu0 %v4631, 8
        %v4733 = vpop.permute.xlu0 %4732
        %4734 = vrot.lane.b32.xlu0 %v4643, 8
        %v4735 = vpop.permute.xlu0 %4734
        %4736 = vrot.lane.b32.xlu0 %v4655, 8
        %v4737 = vpop.permute.xlu0 %4736
        %4738 = vrot.lane.b32.xlu0 %v4667, 8
        %v4739 = vpop.permute.xlu0 %4738
        %4740 = vrot.lane.b32.xlu0 %v4679, 8
        %v4741 = vpop.permute.xlu0 %4740
        %4742 = vrot.lane.b32.xlu0 %v4691, 8
        %v4743 = vpop.permute.xlu0 %4742
        %4744 = vrot.lane.b32.xlu0 %v4703, 8
        %v4745 = vpop.permute.xlu0 %4744
        %4746 = vrot.lane.b32.xlu0 %v4715, 8
        %v4747 = vpop.permute.xlu0 %4746
        %v4748 = vrot.slane %v4460, 1
        %v4749 = vrot.slane %v4508, 1
        %v4750 = vsel %vm1389, %v4748, %v4749
        %v4751 = vrot.slane %v4461, 1
        %v4752 = vrot.slane %v4509, 1
        %v4753 = vsel %vm1389, %v4751, %v4752
        %v4754 = vrot.slane %v4462, 1
        %v4755 = vrot.slane %v4510, 1
        %v4756 = vsel %vm1389, %v4754, %v4755
        %v4757 = vrot.slane %v4463, 1
        %v4758 = vrot.slane %v4511, 1
        %v4759 = vsel %vm1389, %v4757, %v4758
        %v4760 = vrot.slane %v4464, 1
        %v4761 = vrot.slane %v4512, 1
        %v4762 = vsel %vm1389, %v4760, %v4761
        %v4763 = vrot.slane %v4465, 1
        %v4764 = vrot.slane %v4513, 1
        %v4765 = vsel %vm1389, %v4763, %v4764
        %v4766 = vrot.slane %v4466, 1
        %v4767 = vrot.slane %v4514, 1
        %v4768 = vsel %vm1389, %v4766, %v4767
        %v4769 = vrot.slane %v4467, 1
        %v4770 = vrot.slane %v4515, 1
        %v4771 = vsel %vm1389, %v4769, %v4770
        %v4772 = vrot.slane %v4468, 1
        %v4773 = vrot.slane %v4516, 1
        %v4774 = vsel %vm1389, %v4772, %v4773
        %v4775 = vrot.slane %v4469, 1
        %v4776 = vrot.slane %v4517, 1
        %v4777 = vsel %vm1389, %v4775, %v4776
        %v4778 = vrot.slane %v4470, 1
        %v4779 = vrot.slane %v4518, 1
        %v4780 = vsel %vm1389, %v4778, %v4779
        %v4781 = vrot.slane %v4471, 1
        %v4782 = vrot.slane %v4519, 1
        %v4783 = vsel %vm1389, %v4781, %v4782
        %v4784 = vrot.slane %v4472, 1
        %v4785 = vrot.slane %v4520, 1
        %v4786 = vsel %vm1389, %v4784, %v4785
        %v4787 = vrot.slane %v4473, 1
        %v4788 = vrot.slane %v4521, 1
        %v4789 = vsel %vm1389, %v4787, %v4788
        %v4790 = vrot.slane %v4474, 1
        %v4791 = vrot.slane %v4522, 1
        %v4792 = vsel %vm1389, %v4790, %v4791
        %v4793 = vrot.slane %v4475, 1
        %v4794 = vrot.slane %v4523, 1
        %v4795 = vsel %vm1389, %v4793, %v4794
        %4796 = vrot.lane.b32.xlu0 %v4750, 16
        %v4797 = vpop.permute.xlu0 %4796
        %4798 = vrot.lane.b32.xlu0 %v4753, 16
        %v4799 = vpop.permute.xlu0 %4798
        %4800 = vrot.lane.b32.xlu0 %v4756, 16
        %v4801 = vpop.permute.xlu0 %4800
        %4802 = vrot.lane.b32.xlu0 %v4759, 16
        %v4803 = vpop.permute.xlu0 %4802
        %4804 = vrot.lane.b32.xlu0 %v4762, 16
        %v4805 = vpop.permute.xlu0 %4804
        %4806 = vrot.lane.b32.xlu0 %v4765, 16
        %v4807 = vpop.permute.xlu0 %4806
        %4808 = vrot.lane.b32.xlu0 %v4768, 16
        %v4809 = vpop.permute.xlu0 %4808
        %4810 = vrot.lane.b32.xlu0 %v4771, 16
        %v4811 = vpop.permute.xlu0 %4810
        %4812 = vrot.lane.b32.xlu0 %v4774, 16
        %v4813 = vpop.permute.xlu0 %4812
        %4814 = vrot.lane.b32.xlu0 %v4777, 16
        %v4815 = vpop.permute.xlu0 %4814
        %4816 = vrot.lane.b32.xlu0 %v4780, 16
        %v4817 = vpop.permute.xlu0 %4816
        %4818 = vrot.lane.b32.xlu0 %v4783, 16
        %v4819 = vpop.permute.xlu0 %4818
        %4820 = vrot.lane.b32.xlu0 %v4786, 16
        %v4821 = vpop.permute.xlu0 %4820
        %4822 = vrot.lane.b32.xlu0 %v4789, 16
        %v4823 = vpop.permute.xlu0 %4822
        %4824 = vrot.lane.b32.xlu0 %v4792, 16
        %v4825 = vpop.permute.xlu0 %4824
        %4826 = vrot.lane.b32.xlu0 %v4795, 16
        %v4827 = vpop.permute.xlu0 %4826
        %v4829 = vsel %vm1503, %v4460, %v4717
        %v4831 = vsel %vm1503, %v4461, %v4719
        %v4833 = vsel %vm1503, %v4462, %v4721
        %v4835 = vsel %vm1503, %v4463, %v4723
        %v4837 = vsel %vm1503, %v4464, %v4725
        %v4839 = vsel %vm1503, %v4465, %v4727
        %v4841 = vsel %vm1503, %v4466, %v4729
        %v4843 = vsel %vm1503, %v4467, %v4731
        %v4845 = vsel %vm1503, %v4468, %v4733
        %v4847 = vsel %vm1503, %v4469, %v4735
        %v4849 = vsel %vm1503, %v4470, %v4737
        %v4851 = vsel %vm1503, %v4471, %v4739
        %v4853 = vsel %vm1503, %v4472, %v4741
        %v4855 = vsel %vm1503, %v4473, %v4743
        %v4857 = vsel %vm1503, %v4474, %v4745
        %v4859 = vsel %vm1503, %v4475, %v4747
        %vm4860 = vcmask 130048
        %v4862 = vsel %vm4860, %v4829, %v4797
        %v4864 = vsel %vm4860, %v4831, %v4799
        %v4866 = vsel %vm4860, %v4833, %v4801
        %v4868 = vsel %vm4860, %v4835, %v4803
        %v4870 = vsel %vm4860, %v4837, %v4805
        %v4872 = vsel %vm4860, %v4839, %v4807
        %v4874 = vsel %vm4860, %v4841, %v4809
        %v4876 = vsel %vm4860, %v4843, %v4811
        %v4878 = vsel %vm4860, %v4845, %v4813
        %v4880 = vsel %vm4860, %v4847, %v4815
        %v4882 = vsel %vm4860, %v4849, %v4817
        %v4884 = vsel %vm4860, %v4851, %v4819
        %v4886 = vsel %vm4860, %v4853, %v4821
        %v4888 = vsel %vm4860, %v4855, %v4823
        %v4890 = vsel %vm4860, %v4857, %v4825
        %v4892 = vsel %vm4860, %v4859, %v4827
        %s4893 = scalar_lea.vmem [#allocation3], 12
        %v4894 = vld [vmem:[%s4893] sm:$0xf]
        %v4895 = vld [vmem:[%s4893 + $0x4] sm:$0xf]
        %v4896 = vld [vmem:[%s4893 + $0x8] sm:$0x1]
        %v4897 = vld [vmem:[%s4893 + $0xc] sm:$0xf]
        %v4898 = vld [vmem:[%s4893 + $0x10] sm:$0xf]
        %v4899 = vld [vmem:[%s4893 + $0x14] sm:$0x1]
        %v4900 = vld [vmem:[%s4893 + $0x18] sm:$0xf]
        %v4901 = vld [vmem:[%s4893 + $0x1c] sm:$0xf]
        %v4902 = vld [vmem:[%s4893 + $0x20] sm:$0x1]
        %v4903 = vld [vmem:[%s4893 + $0x24] sm:$0xf]
        %v4904 = vld [vmem:[%s4893 + $0x28] sm:$0xf]
        %v4905 = vld [vmem:[%s4893 + $0x2c] sm:$0x1]
        %v4906 = vld [vmem:[%s4893 + $0x30] sm:$0xf]
        %v4907 = vld [vmem:[%s4893 + $0x34] sm:$0xf]
        %v4908 = vld [vmem:[%s4893 + $0x38] sm:$0x1]
        %v4909 = vld [vmem:[%s4893 + $0x3c] sm:$0xf]
        %v4910 = vld [vmem:[%s4893 + $0x40] sm:$0xf]
        %v4911 = vld [vmem:[%s4893 + $0x44] sm:$0x1]
        %v4912 = vld [vmem:[%s4893 + $0x48] sm:$0xf]
        %v4913 = vld [vmem:[%s4893 + $0x4c] sm:$0xf]
        %v4914 = vld [vmem:[%s4893 + $0x50] sm:$0x1]
        %v4915 = vld [vmem:[%s4893 + $0x54] sm:$0xf]
        %v4916 = vld [vmem:[%s4893 + $0x58] sm:$0xf]
        %v4917 = vld [vmem:[%s4893 + $0x5c] sm:$0x1]
        %v4918 = vld [vmem:[%s4893 + $0x60] sm:$0xf]
        %v4919 = vld [vmem:[%s4893 + $0x64] sm:$0xf]
        %v4920 = vld [vmem:[%s4893 + $0x68] sm:$0x1]
        %v4921 = vld [vmem:[%s4893 + $0x6c] sm:$0xf]
        %v4922 = vld [vmem:[%s4893 + $0x70] sm:$0xf]
        %v4923 = vld [vmem:[%s4893 + $0x74] sm:$0x1]
        %v4924 = vld [vmem:[%s4893 + $0x78] sm:$0xf]
        %v4925 = vld [vmem:[%s4893 + $0x7c] sm:$0xf]
        %v4926 = vld [vmem:[%s4893 + $0x80] sm:$0x1]
        %v4927 = vld [vmem:[%s4893 + $0x84] sm:$0xf]
        %v4928 = vld [vmem:[%s4893 + $0x88] sm:$0xf]
        %v4929 = vld [vmem:[%s4893 + $0x8c] sm:$0x1]
        %v4930 = vld [vmem:[%s4893 + $0x90] sm:$0xf]
        %v4931 = vld [vmem:[%s4893 + $0x94] sm:$0xf]
        %v4932 = vld [vmem:[%s4893 + $0x98] sm:$0x1]
        %v4933 = vld [vmem:[%s4893 + $0x9c] sm:$0xf]
        %v4934 = vld [vmem:[%s4893 + $0xa0] sm:$0xf]
        %v4935 = vld [vmem:[%s4893 + $0xa4] sm:$0x1]
        %v4936 = vld [vmem:[%s4893 + $0xa8] sm:$0xf]
        %v4937 = vld [vmem:[%s4893 + $0xac] sm:$0xf]
        %v4938 = vld [vmem:[%s4893 + $0xb0] sm:$0x1]
        %v4939 = vld [vmem:[%s4893 + $0xb4] sm:$0xf]
        %v4940 = vld [vmem:[%s4893 + $0xb8] sm:$0xf]
        %v4941 = vld [vmem:[%s4893 + $0xbc] sm:$0x1]
        %v4974 = vunpack.c.l.b16 %v4894
        %v4975 = vunpack.c.l.b16 %v4895
        %v4976 = vunpack.c.l.b16 %v4897
        %v4977 = vunpack.c.l.b16 %v4898
        %v4978 = vunpack.c.l.b16 %v4900
        %v4979 = vunpack.c.l.b16 %v4901
        %v4980 = vunpack.c.l.b16 %v4903
        %v4981 = vunpack.c.l.b16 %v4904
        %v4982 = vunpack.c.l.b16 %v4906
        %v4983 = vunpack.c.l.b16 %v4907
        %v4984 = vunpack.c.l.b16 %v4909
        %v4985 = vunpack.c.l.b16 %v4910
        %v4986 = vunpack.c.l.b16 %v4912
        %v4987 = vunpack.c.l.b16 %v4913
        %v4988 = vunpack.c.l.b16 %v4915
        %v4989 = vunpack.c.l.b16 %v4916
        %v4990 = vunpack.c.l.b16 %v4918
        %v4991 = vunpack.c.l.b16 %v4919
        %v4992 = vunpack.c.l.b16 %v4921
        %v4993 = vunpack.c.l.b16 %v4922
        %v4994 = vunpack.c.l.b16 %v4924
        %v4995 = vunpack.c.l.b16 %v4925
        %v4996 = vunpack.c.l.b16 %v4927
        %v4997 = vunpack.c.l.b16 %v4928
        %v4998 = vunpack.c.l.b16 %v4930
        %v4999 = vunpack.c.l.b16 %v4931
        %v5000 = vunpack.c.l.b16 %v4933
        %v5001 = vunpack.c.l.b16 %v4934
        %v5002 = vunpack.c.l.b16 %v4936
        %v5003 = vunpack.c.l.b16 %v4937
        %v5004 = vunpack.c.l.b16 %v4939
        %v5005 = vunpack.c.l.b16 %v4940
        %v5006 = vpack.c.b16 %v4975, %v4974
        %v5007 = vpack.c.b16 %v4977, %v4976
        %v5008 = vpack.c.b16 %v4979, %v4978
        %v5009 = vpack.c.b16 %v4981, %v4980
        %v5010 = vpack.c.b16 %v4983, %v4982
        %v5011 = vpack.c.b16 %v4985, %v4984
        %v5012 = vpack.c.b16 %v4987, %v4986
        %v5013 = vpack.c.b16 %v4989, %v4988
        %v5014 = vpack.c.b16 %v4991, %v4990
        %v5015 = vpack.c.b16 %v4993, %v4992
        %v5016 = vpack.c.b16 %v4995, %v4994
        %v5017 = vpack.c.b16 %v4997, %v4996
        %v5018 = vpack.c.b16 %v4999, %v4998
        %v5019 = vpack.c.b16 %v5001, %v5000
        %v5020 = vpack.c.b16 %v5003, %v5002
        %v5021 = vpack.c.b16 %v5005, %v5004
        %v5038 = vunpack.c.l.b16 %v4896
        %v5039 = vunpack.c.l.b16 %v4899
        %v5040 = vunpack.c.l.b16 %v4902
        %v5041 = vunpack.c.l.b16 %v4905
        %v5042 = vunpack.c.l.b16 %v4908
        %v5043 = vunpack.c.l.b16 %v4911
        %v5044 = vunpack.c.l.b16 %v4914
        %v5045 = vunpack.c.l.b16 %v4917
        %v5046 = vunpack.c.l.b16 %v4920
        %v5047 = vunpack.c.l.b16 %v4923
        %v5048 = vunpack.c.l.b16 %v4926
        %v5049 = vunpack.c.l.b16 %v4929
        %v5050 = vunpack.c.l.b16 %v4932
        %v5051 = vunpack.c.l.b16 %v4935
        %v5052 = vunpack.c.l.b16 %v4938
        %v5053 = vunpack.c.l.b16 %v4941
        %v5054 = vpack.c.b16 %v5038, %v5038
        %v5055 = vpack.c.b16 %v5039, %v5039
        %v5056 = vpack.c.b16 %v5040, %v5040
        %v5057 = vpack.c.b16 %v5041, %v5041
        %v5058 = vpack.c.b16 %v5042, %v5042
        %v5059 = vpack.c.b16 %v5043, %v5043
        %v5060 = vpack.c.b16 %v5044, %v5044
        %v5061 = vpack.c.b16 %v5045, %v5045
        %v5062 = vpack.c.b16 %v5046, %v5046
        %v5063 = vpack.c.b16 %v5047, %v5047
        %v5064 = vpack.c.b16 %v5048, %v5048
        %v5065 = vpack.c.b16 %v5049, %v5049
        %v5066 = vpack.c.b16 %v5050, %v5050
        %v5067 = vpack.c.b16 %v5051, %v5051
        %v5068 = vpack.c.b16 %v5052, %v5052
        %v5069 = vpack.c.b16 %v5053, %v5053
        %v5071 = vshrl.u32 %v5006, 16
        %v5073 = vshll.u32 %v5006, 16
        %v5075 = vrot.slane %v5073, 1
        %v5076 = vor.u32 %v5071, %v5075
        %v5078 = vshll.u32 %v5054, 16
        %v5080 = vrot.slane %v5078, 1
        %v5081 = vsel %vm1164, %v5076, %v5080
        %v5083 = vshrl.u32 %v5007, 16
        %v5085 = vshll.u32 %v5007, 16
        %v5087 = vrot.slane %v5085, 1
        %v5088 = vor.u32 %v5083, %v5087
        %v5090 = vshll.u32 %v5055, 16
        %v5092 = vrot.slane %v5090, 1
        %v5093 = vsel %vm1164, %v5088, %v5092
        %v5095 = vshrl.u32 %v5008, 16
        %v5097 = vshll.u32 %v5008, 16
        %v5099 = vrot.slane %v5097, 1
        %v5100 = vor.u32 %v5095, %v5099
        %v5102 = vshll.u32 %v5056, 16
        %v5104 = vrot.slane %v5102, 1
        %v5105 = vsel %vm1164, %v5100, %v5104
        %v5107 = vshrl.u32 %v5009, 16
        %v5109 = vshll.u32 %v5009, 16
        %v5111 = vrot.slane %v5109, 1
        %v5112 = vor.u32 %v5107, %v5111
        %v5114 = vshll.u32 %v5057, 16
        %v5116 = vrot.slane %v5114, 1
        %v5117 = vsel %vm1164, %v5112, %v5116
        %v5119 = vshrl.u32 %v5010, 16
        %v5121 = vshll.u32 %v5010, 16
        %v5123 = vrot.slane %v5121, 1
        %v5124 = vor.u32 %v5119, %v5123
        %v5126 = vshll.u32 %v5058, 16
        %v5128 = vrot.slane %v5126, 1
        %v5129 = vsel %vm1164, %v5124, %v5128
        %v5131 = vshrl.u32 %v5011, 16
        %v5133 = vshll.u32 %v5011, 16
        %v5135 = vrot.slane %v5133, 1
        %v5136 = vor.u32 %v5131, %v5135
        %v5138 = vshll.u32 %v5059, 16
        %v5140 = vrot.slane %v5138, 1
        %v5141 = vsel %vm1164, %v5136, %v5140
        %v5143 = vshrl.u32 %v5012, 16
        %v5145 = vshll.u32 %v5012, 16
        %v5147 = vrot.slane %v5145, 1
        %v5148 = vor.u32 %v5143, %v5147
        %v5150 = vshll.u32 %v5060, 16
        %v5152 = vrot.slane %v5150, 1
        %v5153 = vsel %vm1164, %v5148, %v5152
        %v5155 = vshrl.u32 %v5013, 16
        %v5157 = vshll.u32 %v5013, 16
        %v5159 = vrot.slane %v5157, 1
        %v5160 = vor.u32 %v5155, %v5159
        %v5162 = vshll.u32 %v5061, 16
        %v5164 = vrot.slane %v5162, 1
        %v5165 = vsel %vm1164, %v5160, %v5164
        %v5167 = vshrl.u32 %v5014, 16
        %v5169 = vshll.u32 %v5014, 16
        %v5171 = vrot.slane %v5169, 1
        %v5172 = vor.u32 %v5167, %v5171
        %v5174 = vshll.u32 %v5062, 16
        %v5176 = vrot.slane %v5174, 1
        %v5177 = vsel %vm1164, %v5172, %v5176
        %v5179 = vshrl.u32 %v5015, 16
        %v5181 = vshll.u32 %v5015, 16
        %v5183 = vrot.slane %v5181, 1
        %v5184 = vor.u32 %v5179, %v5183
        %v5186 = vshll.u32 %v5063, 16
        %v5188 = vrot.slane %v5186, 1
        %v5189 = vsel %vm1164, %v5184, %v5188
        %v5191 = vshrl.u32 %v5016, 16
        %v5193 = vshll.u32 %v5016, 16
        %v5195 = vrot.slane %v5193, 1
        %v5196 = vor.u32 %v5191, %v5195
        %v5198 = vshll.u32 %v5064, 16
        %v5200 = vrot.slane %v5198, 1
        %v5201 = vsel %vm1164, %v5196, %v5200
        %v5203 = vshrl.u32 %v5017, 16
        %v5205 = vshll.u32 %v5017, 16
        %v5207 = vrot.slane %v5205, 1
        %v5208 = vor.u32 %v5203, %v5207
        %v5210 = vshll.u32 %v5065, 16
        %v5212 = vrot.slane %v5210, 1
        %v5213 = vsel %vm1164, %v5208, %v5212
        %v5215 = vshrl.u32 %v5018, 16
        %v5217 = vshll.u32 %v5018, 16
        %v5219 = vrot.slane %v5217, 1
        %v5220 = vor.u32 %v5215, %v5219
        %v5222 = vshll.u32 %v5066, 16
        %v5224 = vrot.slane %v5222, 1
        %v5225 = vsel %vm1164, %v5220, %v5224
        %v5227 = vshrl.u32 %v5019, 16
        %v5229 = vshll.u32 %v5019, 16
        %v5231 = vrot.slane %v5229, 1
        %v5232 = vor.u32 %v5227, %v5231
        %v5234 = vshll.u32 %v5067, 16
        %v5236 = vrot.slane %v5234, 1
        %v5237 = vsel %vm1164, %v5232, %v5236
        %v5239 = vshrl.u32 %v5020, 16
        %v5241 = vshll.u32 %v5020, 16
        %v5243 = vrot.slane %v5241, 1
        %v5244 = vor.u32 %v5239, %v5243
        %v5246 = vshll.u32 %v5068, 16
        %v5248 = vrot.slane %v5246, 1
        %v5249 = vsel %vm1164, %v5244, %v5248
        %v5251 = vshrl.u32 %v5021, 16
        %v5253 = vshll.u32 %v5021, 16
        %v5255 = vrot.slane %v5253, 1
        %v5256 = vor.u32 %v5251, %v5255
        %v5258 = vshll.u32 %v5069, 16
        %v5260 = vrot.slane %v5258, 1
        %v5261 = vsel %vm1164, %v5256, %v5260
        %5262 = vrot.lane.b32.xlu0 %v5081, 8
        %v5263 = vpop.permute.xlu0 %5262
        %5264 = vrot.lane.b32.xlu0 %v5093, 8
        %v5265 = vpop.permute.xlu0 %5264
        %5266 = vrot.lane.b32.xlu0 %v5105, 8
        %v5267 = vpop.permute.xlu0 %5266
        %5268 = vrot.lane.b32.xlu0 %v5117, 8
        %v5269 = vpop.permute.xlu0 %5268
        %5270 = vrot.lane.b32.xlu0 %v5129, 8
        %v5271 = vpop.permute.xlu0 %5270
        %5272 = vrot.lane.b32.xlu0 %v5141, 8
        %v5273 = vpop.permute.xlu0 %5272
        %5274 = vrot.lane.b32.xlu0 %v5153, 8
        %v5275 = vpop.permute.xlu0 %5274
        %5276 = vrot.lane.b32.xlu0 %v5165, 8
        %v5277 = vpop.permute.xlu0 %5276
        %5278 = vrot.lane.b32.xlu0 %v5177, 8
        %v5279 = vpop.permute.xlu0 %5278
        %5280 = vrot.lane.b32.xlu0 %v5189, 8
        %v5281 = vpop.permute.xlu0 %5280
        %5282 = vrot.lane.b32.xlu0 %v5201, 8
        %v5283 = vpop.permute.xlu0 %5282
        %5284 = vrot.lane.b32.xlu0 %v5213, 8
        %v5285 = vpop.permute.xlu0 %5284
        %5286 = vrot.lane.b32.xlu0 %v5225, 8
        %v5287 = vpop.permute.xlu0 %5286
        %5288 = vrot.lane.b32.xlu0 %v5237, 8
        %v5289 = vpop.permute.xlu0 %5288
        %5290 = vrot.lane.b32.xlu0 %v5249, 8
        %v5291 = vpop.permute.xlu0 %5290
        %5292 = vrot.lane.b32.xlu0 %v5261, 8
        %v5293 = vpop.permute.xlu0 %5292
        %v5294 = vrot.slane %v5006, 1
        %v5295 = vrot.slane %v5054, 1
        %v5296 = vsel %vm1389, %v5294, %v5295
        %v5297 = vrot.slane %v5007, 1
        %v5298 = vrot.slane %v5055, 1
        %v5299 = vsel %vm1389, %v5297, %v5298
        %v5300 = vrot.slane %v5008, 1
        %v5301 = vrot.slane %v5056, 1
        %v5302 = vsel %vm1389, %v5300, %v5301
        %v5303 = vrot.slane %v5009, 1
        %v5304 = vrot.slane %v5057, 1
        %v5305 = vsel %vm1389, %v5303, %v5304
        %v5306 = vrot.slane %v5010, 1
        %v5307 = vrot.slane %v5058, 1
        %v5308 = vsel %vm1389, %v5306, %v5307
        %v5309 = vrot.slane %v5011, 1
        %v5310 = vrot.slane %v5059, 1
        %v5311 = vsel %vm1389, %v5309, %v5310
        %v5312 = vrot.slane %v5012, 1
        %v5313 = vrot.slane %v5060, 1
        %v5314 = vsel %vm1389, %v5312, %v5313
        %v5315 = vrot.slane %v5013, 1
        %v5316 = vrot.slane %v5061, 1
        %v5317 = vsel %vm1389, %v5315, %v5316
        %v5318 = vrot.slane %v5014, 1
        %v5319 = vrot.slane %v5062, 1
        %v5320 = vsel %vm1389, %v5318, %v5319
        %v5321 = vrot.slane %v5015, 1
        %v5322 = vrot.slane %v5063, 1
        %v5323 = vsel %vm1389, %v5321, %v5322
        %v5324 = vrot.slane %v5016, 1
        %v5325 = vrot.slane %v5064, 1
        %v5326 = vsel %vm1389, %v5324, %v5325
        %v5327 = vrot.slane %v5017, 1
        %v5328 = vrot.slane %v5065, 1
        %v5329 = vsel %vm1389, %v5327, %v5328
        %v5330 = vrot.slane %v5018, 1
        %v5331 = vrot.slane %v5066, 1
        %v5332 = vsel %vm1389, %v5330, %v5331
        %v5333 = vrot.slane %v5019, 1
        %v5334 = vrot.slane %v5067, 1
        %v5335 = vsel %vm1389, %v5333, %v5334
        %v5336 = vrot.slane %v5020, 1
        %v5337 = vrot.slane %v5068, 1
        %v5338 = vsel %vm1389, %v5336, %v5337
        %v5339 = vrot.slane %v5021, 1
        %v5340 = vrot.slane %v5069, 1
        %v5341 = vsel %vm1389, %v5339, %v5340
        %5342 = vrot.lane.b32.xlu0 %v5296, 16
        %v5343 = vpop.permute.xlu0 %5342
        %5344 = vrot.lane.b32.xlu0 %v5299, 16
        %v5345 = vpop.permute.xlu0 %5344
        %5346 = vrot.lane.b32.xlu0 %v5302, 16
        %v5347 = vpop.permute.xlu0 %5346
        %5348 = vrot.lane.b32.xlu0 %v5305, 16
        %v5349 = vpop.permute.xlu0 %5348
        %5350 = vrot.lane.b32.xlu0 %v5308, 16
        %v5351 = vpop.permute.xlu0 %5350
        %5352 = vrot.lane.b32.xlu0 %v5311, 16
        %v5353 = vpop.permute.xlu0 %5352
        %5354 = vrot.lane.b32.xlu0 %v5314, 16
        %v5355 = vpop.permute.xlu0 %5354
        %5356 = vrot.lane.b32.xlu0 %v5317, 16
        %v5357 = vpop.permute.xlu0 %5356
        %5358 = vrot.lane.b32.xlu0 %v5320, 16
        %v5359 = vpop.permute.xlu0 %5358
        %5360 = vrot.lane.b32.xlu0 %v5323, 16
        %v5361 = vpop.permute.xlu0 %5360
        %5362 = vrot.lane.b32.xlu0 %v5326, 16
        %v5363 = vpop.permute.xlu0 %5362
        %5364 = vrot.lane.b32.xlu0 %v5329, 16
        %v5365 = vpop.permute.xlu0 %5364
        %5366 = vrot.lane.b32.xlu0 %v5332, 16
        %v5367 = vpop.permute.xlu0 %5366
        %5368 = vrot.lane.b32.xlu0 %v5335, 16
        %v5369 = vpop.permute.xlu0 %5368
        %5370 = vrot.lane.b32.xlu0 %v5338, 16
        %v5371 = vpop.permute.xlu0 %5370
        %5372 = vrot.lane.b32.xlu0 %v5341, 16
        %v5373 = vpop.permute.xlu0 %5372
        %v5375 = vsel %vm1503, %v5006, %v5263
        %v5377 = vsel %vm1503, %v5007, %v5265
        %v5379 = vsel %vm1503, %v5008, %v5267
        %v5381 = vsel %vm1503, %v5009, %v5269
        %v5383 = vsel %vm1503, %v5010, %v5271
        %v5385 = vsel %vm1503, %v5011, %v5273
        %v5387 = vsel %vm1503, %v5012, %v5275
        %v5389 = vsel %vm1503, %v5013, %v5277
        %v5391 = vsel %vm1503, %v5014, %v5279
        %v5393 = vsel %vm1503, %v5015, %v5281
        %v5395 = vsel %vm1503, %v5016, %v5283
        %v5397 = vsel %vm1503, %v5017, %v5285
        %v5399 = vsel %vm1503, %v5018, %v5287
        %v5401 = vsel %vm1503, %v5019, %v5289
        %v5403 = vsel %vm1503, %v5020, %v5291
        %v5405 = vsel %vm1503, %v5021, %v5293
        %v5407 = vsel %vm4860, %v5375, %v5343
        %v5409 = vsel %vm4860, %v5377, %v5345
        %v5411 = vsel %vm4860, %v5379, %v5347
        %v5413 = vsel %vm4860, %v5381, %v5349
        %v5415 = vsel %vm4860, %v5383, %v5351
        %v5417 = vsel %vm4860, %v5385, %v5353
        %v5419 = vsel %vm4860, %v5387, %v5355
        %v5421 = vsel %vm4860, %v5389, %v5357
        %v5423 = vsel %vm4860, %v5391, %v5359
        %v5425 = vsel %vm4860, %v5393, %v5361
        %v5427 = vsel %vm4860, %v5395, %v5363
        %v5429 = vsel %vm4860, %v5397, %v5365
        %v5431 = vsel %vm4860, %v5399, %v5367
        %v5433 = vsel %vm4860, %v5401, %v5369
        %v5435 = vsel %vm4860, %v5403, %v5371
        %v5437 = vsel %vm4860, %v5405, %v5373
        %v5441 = vunpack.c.l.b16 %v976
        %v5442 = vunpack.c.l.b16 %v977
        %v5443 = vunpack.c.l.b16 %v978
        %v5444 = vpack.c.b16 %v5442, %v5441
        %v5445 = vpack.c.b16 %v5443, %v5443
        %vm5447 = vcmask 195584
        %v5448 = vsel %vm5447, %v5407, 0
        %v5450 = vsel %vm5447, %v5409, 0
        %v5452 = vsel %vm5447, %v5411, 0
        %v5454 = vsel %vm5447, %v5413, 0
        %v5456 = vsel %vm5447, %v5415, 0
        %v5458 = vsel %vm5447, %v5417, 0
        %v5460 = vsel %vm5447, %v5419, 0
        %v5462 = vsel %vm5447, %v5421, 0
        %v5464 = vsel %vm5447, %v5423, 0
        %v5466 = vsel %vm5447, %v5425, 0
        %v5468 = vsel %vm5447, %v5427, 0
        %v5470 = vsel %vm5447, %v5429, 0
        %v5472 = vsel %vm5447, %v5431, 0
        %v5474 = vsel %vm5447, %v5433, 0
        %v5476 = vsel %vm5447, %v5435, 0
        %v5478 = vsel %vm5447, %v5437, 0
        %vm5480 = vcmask 1043456
        %v5482 = vsel %vm5480, %v5445, 0
        %5484 = vmatprep.subr.bf16.mxu0 0
        %5485 = vmatpush1.bf16.msra.mxu0 %v5444
        %5486 = vmatprep.subr.bf16.mxu0 0
        %5487 = vmatpush1.bf16.msra.mxu0 %v5482
        %5488 = vmatprep.subr.bf16.mxu0 0
        %5489 = vmatpush1.bf16.msra.mxu0 0
        %5490 = vmatprep.subr.bf16.mxu0 0
        %5491 = vmatpush1.bf16.msra.mxu0 0
        %5492 = vmatprep.subr.bf16.mxu0 0
        %5493 = vmatpush1.bf16.msra.mxu0 0
        %5494 = vmatprep.subr.bf16.mxu0 0
        %5495 = vmatpush1.bf16.msra.mxu0 0
        %5496 = vmatprep.subr.bf16.mxu0 0
        %5497 = vmatpush1.bf16.msra.mxu0 0
        %5498 = vmatprep.subr.bf16.mxu0 0
        %5499 = vmatpush1.bf16.msra.mxu0 0
        %5500 = vmatprep.subr.bf16.mxu0 0
        %5501 = vmatpush1.bf16.msra.mxu0 0
        %5502 = vmatprep.subr.bf16.mxu0 0
        %5503 = vmatpush1.bf16.msra.mxu0 0
        %5504 = vmatprep.subr.bf16.mxu0 0
        %5505 = vmatpush1.bf16.msra.mxu0 0
        %5506 = vmatprep.subr.bf16.mxu0 0
        %5507 = vmatpush1.bf16.msra.mxu0 0
        %5508 = vmatprep.subr.bf16.mxu0 0
        %5509 = vmatpush1.bf16.msra.mxu0 0
        %5510 = vmatprep.subr.bf16.mxu0 0
        %5511 = vmatpush1.bf16.msra.mxu0 0
        %5512 = vmatprep.subr.bf16.mxu0 0
        %5513 = vmatpush1.bf16.msra.mxu0 0
        %5514 = vmatprep.subr.bf16.mxu0 0
        %5515 = vmatpush1.bf16.msra.mxu0 0
        %5516 = vmatprep.mubr.bf16.mxu0 0
        %5517 = vmatmul.mubr.bf16.gmra.mrb[0].mxu0 %v5448
        %v5518 = vpop.f32.mrb[0].mxu0
        %v5519 = vadd.f32 0.0, %v5518
        %v5520 = vpop.f32.mrb[0].mxu0
        %v5521 = vpop.f32.mrb[0].mxu0
        %v5522 = vadd.f32 0.0, %v5521
        %v5523 = vpop.f32.mrb[0].mxu0
        %5524 = vmatprep.mubr.bf16.mxu0 0
        %5525 = vmatmul.mubr.bf16.gmra.mrb[0].mxu0 %v5450
        %v5526 = vpop.f32.mrb[0].mxu0
        %v5527 = vadd.f32 0.0, %v5526
        %v5528 = vpop.f32.mrb[0].mxu0
        %v5529 = vpop.f32.mrb[0].mxu0
        %v5530 = vadd.f32 0.0, %v5529
        %v5531 = vpop.f32.mrb[0].mxu0
        %5532 = vmatprep.mubr.bf16.mxu0 0
        %5533 = vmatmul.mubr.bf16.gmra.mrb[0].mxu0 %v5452
        %v5534 = vpop.f32.mrb[0].mxu0
        %v5535 = vadd.f32 0.0, %v5534
        %v5536 = vpop.f32.mrb[0].mxu0
        %v5537 = vpop.f32.mrb[0].mxu0
        %v5538 = vadd.f32 0.0, %v5537
        %v5539 = vpop.f32.mrb[0].mxu0
        %5540 = vmatprep.mubr.bf16.mxu0 0
        %5541 = vmatmul.mubr.bf16.gmra.mrb[0].mxu0 %v5454
        %v5542 = vpop.f32.mrb[0].mxu0
        %v5543 = vadd.f32 0.0, %v5542
        %v5544 = vpop.f32.mrb[0].mxu0
        %v5545 = vpop.f32.mrb[0].mxu0
        %v5546 = vadd.f32 0.0, %v5545
        %v5547 = vpop.f32.mrb[0].mxu0
        %5548 = vmatprep.mubr.bf16.mxu0 0
        %5549 = vmatmul.mubr.bf16.gmra.mrb[0].mxu0 %v5456
        %v5550 = vpop.f32.mrb[0].mxu0
        %v5551 = vadd.f32 0.0, %v5550
        %v5552 = vpop.f32.mrb[0].mxu0
        %v5553 = vpop.f32.mrb[0].mxu0
        %v5554 = vadd.f32 0.0, %v5553
        %v5555 = vpop.f32.mrb[0].mxu0
        %5556 = vmatprep.mubr.bf16.mxu0 0
        %5557 = vmatmul.mubr.bf16.gmra.mrb[0].mxu0 %v5458
        %v5558 = vpop.f32.mrb[0].mxu0
        %v5559 = vadd.f32 0.0, %v5558
        %v5560 = vpop.f32.mrb[0].mxu0
        %v5561 = vpop.f32.mrb[0].mxu0
        %v5562 = vadd.f32 0.0, %v5561
        %v5563 = vpop.f32.mrb[0].mxu0
        %5564 = vmatprep.mubr.bf16.mxu0 0
        %5565 = vmatmul.mubr.bf16.gmra.mrb[0].mxu0 %v5460
        %v5566 = vpop.f32.mrb[0].mxu0
        %v5567 = vadd.f32 0.0, %v5566
        %v5568 = vpop.f32.mrb[0].mxu0
        %v5569 = vpop.f32.mrb[0].mxu0
        %v5570 = vadd.f32 0.0, %v5569
        %v5571 = vpop.f32.mrb[0].mxu0
        %5572 = vmatprep.mubr.bf16.mxu0 0
        %5573 = vmatmul.mubr.bf16.gmra.mrb[0].mxu0 %v5462
        %v5574 = vpop.f32.mrb[0].mxu0
        %v5575 = vadd.f32 0.0, %v5574
        %v5576 = vpop.f32.mrb[0].mxu0
        %v5577 = vpop.f32.mrb[0].mxu0
        %v5578 = vadd.f32 0.0, %v5577
        %v5579 = vpop.f32.mrb[0].mxu0
        %5580 = vmatprep.mubr.bf16.mxu0 0
        %5581 = vmatmul.mubr.bf16.gmra.mrb[0].mxu0 %v5464
        %v5582 = vpop.f32.mrb[0].mxu0
        %v5583 = vadd.f32 0.0, %v5582
        %v5584 = vpop.f32.mrb[0].mxu0
        %v5585 = vpop.f32.mrb[0].mxu0
        %v5586 = vadd.f32 0.0, %v5585
        %v5587 = vpop.f32.mrb[0].mxu0
        %5588 = vmatprep.mubr.bf16.mxu0 0
        %5589 = vmatmul.mubr.bf16.gmra.mrb[0].mxu0 %v5466
        %v5590 = vpop.f32.mrb[0].mxu0
        %v5591 = vadd.f32 0.0, %v5590
        %v5592 = vpop.f32.mrb[0].mxu0
        %v5593 = vpop.f32.mrb[0].mxu0
        %v5594 = vadd.f32 0.0, %v5593
        %v5595 = vpop.f32.mrb[0].mxu0
        %5596 = vmatprep.mubr.bf16.mxu0 0
        %5597 = vmatmul.mubr.bf16.gmra.mrb[0].mxu0 %v5468
        %v5598 = vpop.f32.mrb[0].mxu0
        %v5599 = vadd.f32 0.0, %v5598
        %v5600 = vpop.f32.mrb[0].mxu0
        %v5601 = vpop.f32.mrb[0].mxu0
        %v5602 = vadd.f32 0.0, %v5601
        %v5603 = vpop.f32.mrb[0].mxu0
        %5604 = vmatprep.mubr.bf16.mxu0 0
        %5605 = vmatmul.mubr.bf16.gmra.mrb[0].mxu0 %v5470
        %v5606 = vpop.f32.mrb[0].mxu0
        %v5607 = vadd.f32 0.0, %v5606
        %v5608 = vpop.f32.mrb[0].mxu0
        %v5609 = vpop.f32.mrb[0].mxu0
        %v5610 = vadd.f32 0.0, %v5609
        %v5611 = vpop.f32.mrb[0].mxu0
        %5612 = vmatprep.mubr.bf16.mxu0 0
        %5613 = vmatmul.mubr.bf16.gmra.mrb[0].mxu0 %v5472
        %v5614 = vpop.f32.mrb[0].mxu0
        %v5615 = vadd.f32 0.0, %v5614
        %v5616 = vpop.f32.mrb[0].mxu0
        %v5617 = vpop.f32.mrb[0].mxu0
        %v5618 = vadd.f32 0.0, %v5617
        %v5619 = vpop.f32.mrb[0].mxu0
        %5620 = vmatprep.mubr.bf16.mxu0 0
        %5621 = vmatmul.mubr.bf16.gmra.mrb[0].mxu0 %v5474
        %v5622 = vpop.f32.mrb[0].mxu0
        %v5623 = vadd.f32 0.0, %v5622
        %v5624 = vpop.f32.mrb[0].mxu0
        %v5625 = vpop.f32.mrb[0].mxu0
        %v5626 = vadd.f32 0.0, %v5625
        %v5627 = vpop.f32.mrb[0].mxu0
        %5628 = vmatprep.mubr.bf16.mxu0 0
        %5629 = vmatmul.mubr.bf16.gmra.mrb[0].mxu0 %v5476
        %v5630 = vpop.f32.mrb[0].mxu0
        %v5631 = vadd.f32 0.0, %v5630
        %v5632 = vpop.f32.mrb[0].mxu0
        %v5633 = vpop.f32.mrb[0].mxu0
        %v5634 = vadd.f32 0.0, %v5633
        %v5635 = vpop.f32.mrb[0].mxu0
        %5636 = vmatprep.mubr.bf16.mxu0 0
        %5637 = vmatmul.mubr.bf16.gmra.mrb[0].mxu0 %v5478
        %v5638 = vpop.f32.mrb[0].mxu0
        %v5639 = vadd.f32 0.0, %v5638
        %v5640 = vpop.f32.mrb[0].mxu0
        %v5641 = vpop.f32.mrb[0].mxu0
        %v5642 = vadd.f32 0.0, %v5641
        %v5643 = vpop.f32.mrb[0].mxu0
        %5644 = vdwg.mxu0
        %v5648 = vunpack.c.l.b16 %v972
        %v5649 = vunpack.c.l.b16 %v973
        %v5650 = vunpack.c.l.b16 %v974
        %v5651 = vpack.c.b16 %v5649, %v5648
        %v5652 = vpack.c.b16 %v5650, %v5650
        %v5654 = vsel %vm5447, %v4862, 0
        %v5656 = vsel %vm5447, %v4864, 0
        %v5658 = vsel %vm5447, %v4866, 0
        %v5660 = vsel %vm5447, %v4868, 0
        %v5662 = vsel %vm5447, %v4870, 0
        %v5664 = vsel %vm5447, %v4872, 0
        %v5666 = vsel %vm5447, %v4874, 0
        %v5668 = vsel %vm5447, %v4876, 0
        %v5670 = vsel %vm5447, %v4878, 0
        %v5672 = vsel %vm5447, %v4880, 0
        %v5674 = vsel %vm5447, %v4882, 0
        %v5676 = vsel %vm5447, %v4884, 0
        %v5678 = vsel %vm5447, %v4886, 0
        %v5680 = vsel %vm5447, %v4888, 0
        %v5682 = vsel %vm5447, %v4890, 0
        %v5684 = vsel %vm5447, %v4892, 0
        %v5687 = vsel %vm5480, %v5652, 0
        %5689 = vmatprep.subr.bf16.mxu0 0
        %5690 = vmatpush1.bf16.msra.mxu0 %v5651
        %5691 = vmatprep.subr.bf16.mxu0 0
        %5692 = vmatpush1.bf16.msra.mxu0 %v5687
        %5693 = vmatprep.subr.bf16.mxu0 0
        %5694 = vmatpush1.bf16.msra.mxu0 0
        %5695 = vmatprep.subr.bf16.mxu0 0
        %5696 = vmatpush1.bf16.msra.mxu0 0
        %5697 = vmatprep.subr.bf16.mxu0 0
        %5698 = vmatpush1.bf16.msra.mxu0 0
        %5699 = vmatprep.subr.bf16.mxu0 0
        %5700 = vmatpush1.bf16.msra.mxu0 0
        %5701 = vmatprep.subr.bf16.mxu0 0
        %5702 = vmatpush1.bf16.msra.mxu0 0
        %5703 = vmatprep.subr.bf16.mxu0 0
        %5704 = vmatpush1.bf16.msra.mxu0 0
        %5705 = vmatprep.subr.bf16.mxu0 0
        %5706 = vmatpush1.bf16.msra.mxu0 0
        %5707 = vmatprep.subr.bf16.mxu0 0
        %5708 = vmatpush1.bf16.msra.mxu0 0
        %5709 = vmatprep.subr.bf16.mxu0 0
        %5710 = vmatpush1.bf16.msra.mxu0 0
        %5711 = vmatprep.subr.bf16.mxu0 0
        %5712 = vmatpush1.bf16.msra.mxu0 0
        %5713 = vmatprep.subr.bf16.mxu0 0
        %5714 = vmatpush1.bf16.msra.mxu0 0
        %5715 = vmatprep.subr.bf16.mxu0 0
        %5716 = vmatpush1.bf16.msra.mxu0 0
        %5717 = vmatprep.subr.bf16.mxu0 0
        %5718 = vmatpush1.bf16.msra.mxu0 0
        %5719 = vmatprep.subr.bf16.mxu0 0
        %5720 = vmatpush1.bf16.msra.mxu0 0
        %5721 = vmatprep.mubr.bf16.mxu0 0
        %5722 = vmatmul.mubr.bf16.gmra.mrb[0].mxu0 %v5654
        %v5723 = vpop.f32.mrb[0].mxu0
        %v5724 = vadd.f32 %v5519, %v5723
        %v5725 = vpop.f32.mrb[0].mxu0
        %v5726 = vpop.f32.mrb[0].mxu0
        %v5727 = vadd.f32 %v5522, %v5726
        %v5728 = vpop.f32.mrb[0].mxu0
        %5729 = vmatprep.mubr.bf16.mxu0 0
        %5730 = vmatmul.mubr.bf16.gmra.mrb[0].mxu0 %v5656
        %v5731 = vpop.f32.mrb[0].mxu0
        %v5732 = vadd.f32 %v5527, %v5731
        %v5733 = vpop.f32.mrb[0].mxu0
        %v5734 = vpop.f32.mrb[0].mxu0
        %v5735 = vadd.f32 %v5530, %v5734
        %v5736 = vpop.f32.mrb[0].mxu0
        %5737 = vmatprep.mubr.bf16.mxu0 0
        %5738 = vmatmul.mubr.bf16.gmra.mrb[0].mxu0 %v5658
        %v5739 = vpop.f32.mrb[0].mxu0
        %v5740 = vadd.f32 %v5535, %v5739
        %v5741 = vpop.f32.mrb[0].mxu0
        %v5742 = vpop.f32.mrb[0].mxu0
        %v5743 = vadd.f32 %v5538, %v5742
        %v5744 = vpop.f32.mrb[0].mxu0
        %5745 = vmatprep.mubr.bf16.mxu0 0
        %5746 = vmatmul.mubr.bf16.gmra.mrb[0].mxu0 %v5660
        %v5747 = vpop.f32.mrb[0].mxu0
        %v5748 = vadd.f32 %v5543, %v5747
        %v5749 = vpop.f32.mrb[0].mxu0
        %v5750 = vpop.f32.mrb[0].mxu0
        %v5751 = vadd.f32 %v5546, %v5750
        %v5752 = vpop.f32.mrb[0].mxu0
        %5753 = vmatprep.mubr.bf16.mxu0 0
        %5754 = vmatmul.mubr.bf16.gmra.mrb[0].mxu0 %v5662
        %v5755 = vpop.f32.mrb[0].mxu0
        %v5756 = vadd.f32 %v5551, %v5755
        %v5757 = vpop.f32.mrb[0].mxu0
        %v5758 = vpop.f32.mrb[0].mxu0
        %v5759 = vadd.f32 %v5554, %v5758
        %v5760 = vpop.f32.mrb[0].mxu0
        %5761 = vmatprep.mubr.bf16.mxu0 0
        %5762 = vmatmul.mubr.bf16.gmra.mrb[0].mxu0 %v5664
        %v5763 = vpop.f32.mrb[0].mxu0
        %v5764 = vadd.f32 %v5559, %v5763
        %v5765 = vpop.f32.mrb[0].mxu0
        %v5766 = vpop.f32.mrb[0].mxu0
        %v5767 = vadd.f32 %v5562, %v5766
        %v5768 = vpop.f32.mrb[0].mxu0
        %5769 = vmatprep.mubr.bf16.mxu0 0
        %5770 = vmatmul.mubr.bf16.gmra.mrb[0].mxu0 %v5666
        %v5771 = vpop.f32.mrb[0].mxu0
        %v5772 = vadd.f32 %v5567, %v5771
        %v5773 = vpop.f32.mrb[0].mxu0
        %v5774 = vpop.f32.mrb[0].mxu0
        %v5775 = vadd.f32 %v5570, %v5774
        %v5776 = vpop.f32.mrb[0].mxu0
        %5777 = vmatprep.mubr.bf16.mxu0 0
        %5778 = vmatmul.mubr.bf16.gmra.mrb[0].mxu0 %v5668
        %v5779 = vpop.f32.mrb[0].mxu0
        %v5780 = vadd.f32 %v5575, %v5779
        %v5781 = vpop.f32.mrb[0].mxu0
        %v5782 = vpop.f32.mrb[0].mxu0
        %v5783 = vadd.f32 %v5578, %v5782
        %v5784 = vpop.f32.mrb[0].mxu0
        %5785 = vmatprep.mubr.bf16.mxu0 0
        %5786 = vmatmul.mubr.bf16.gmra.mrb[0].mxu0 %v5670
        %v5787 = vpop.f32.mrb[0].mxu0
        %v5788 = vadd.f32 %v5583, %v5787
        %v5789 = vpop.f32.mrb[0].mxu0
        %v5790 = vpop.f32.mrb[0].mxu0
        %v5791 = vadd.f32 %v5586, %v5790
        %v5792 = vpop.f32.mrb[0].mxu0
        %5793 = vmatprep.mubr.bf16.mxu0 0
        %5794 = vmatmul.mubr.bf16.gmra.mrb[0].mxu0 %v5672
        %v5795 = vpop.f32.mrb[0].mxu0
        %v5796 = vadd.f32 %v5591, %v5795
        %v5797 = vpop.f32.mrb[0].mxu0
        %v5798 = vpop.f32.mrb[0].mxu0
        %v5799 = vadd.f32 %v5594, %v5798
        %v5800 = vpop.f32.mrb[0].mxu0
        %5801 = vmatprep.mubr.bf16.mxu0 0
        %5802 = vmatmul.mubr.bf16.gmra.mrb[0].mxu0 %v5674
        %v5803 = vpop.f32.mrb[0].mxu0
        %v5804 = vadd.f32 %v5599, %v5803
        %v5805 = vpop.f32.mrb[0].mxu0
        %v5806 = vpop.f32.mrb[0].mxu0
        %v5807 = vadd.f32 %v5602, %v5806
        %v5808 = vpop.f32.mrb[0].mxu0
        %5809 = vmatprep.mubr.bf16.mxu0 0
        %5810 = vmatmul.mubr.bf16.gmra.mrb[0].mxu0 %v5676
        %v5811 = vpop.f32.mrb[0].mxu0
        %v5812 = vadd.f32 %v5607, %v5811
        %v5813 = vpop.f32.mrb[0].mxu0
        %v5814 = vpop.f32.mrb[0].mxu0
        %v5815 = vadd.f32 %v5610, %v5814
        %v5816 = vpop.f32.mrb[0].mxu0
        %5817 = vmatprep.mubr.bf16.mxu0 0
        %5818 = vmatmul.mubr.bf16.gmra.mrb[0].mxu0 %v5678
        %v5819 = vpop.f32.mrb[0].mxu0
        %v5820 = vadd.f32 %v5615, %v5819
        %v5821 = vpop.f32.mrb[0].mxu0
        %v5822 = vpop.f32.mrb[0].mxu0
        %v5823 = vadd.f32 %v5618, %v5822
        %v5824 = vpop.f32.mrb[0].mxu0
        %5825 = vmatprep.mubr.bf16.mxu0 0
        %5826 = vmatmul.mubr.bf16.gmra.mrb[0].mxu0 %v5680
        %v5827 = vpop.f32.mrb[0].mxu0
        %v5828 = vadd.f32 %v5623, %v5827
        %v5829 = vpop.f32.mrb[0].mxu0
        %v5830 = vpop.f32.mrb[0].mxu0
        %v5831 = vadd.f32 %v5626, %v5830
        %v5832 = vpop.f32.mrb[0].mxu0
        %5833 = vmatprep.mubr.bf16.mxu0 0
        %5834 = vmatmul.mubr.bf16.gmra.mrb[0].mxu0 %v5682
        %v5835 = vpop.f32.mrb[0].mxu0
        %v5836 = vadd.f32 %v5631, %v5835
        %v5837 = vpop.f32.mrb[0].mxu0
        %v5838 = vpop.f32.mrb[0].mxu0
        %v5839 = vadd.f32 %v5634, %v5838
        %v5840 = vpop.f32.mrb[0].mxu0
        %5841 = vmatprep.mubr.bf16.mxu0 0
        %5842 = vmatmul.mubr.bf16.gmra.mrb[0].mxu0 %v5684
        %v5843 = vpop.f32.mrb[0].mxu0
        %v5844 = vadd.f32 %v5639, %v5843
        %v5845 = vpop.f32.mrb[0].mxu0
        %v5846 = vpop.f32.mrb[0].mxu0
        %v5847 = vadd.f32 %v5642, %v5846
        %v5848 = vpop.f32.mrb[0].mxu0
        %5849 = vdwg.mxu0
        %s5850 = scalar_lea.vmem [#allocation3], 24
        %v5851 = vld [vmem:[%s5850] sm:$0xf]
        %v5852 = vld [vmem:[%s5850 + $0x4] sm:$0xf]
        %v5853 = vld [vmem:[%s5850 + $0x8] sm:$0x1]
        %v5854 = vld [vmem:[%s5850 + $0xc] sm:$0xf]
        %v5855 = vld [vmem:[%s5850 + $0x10] sm:$0xf]
        %v5856 = vld [vmem:[%s5850 + $0x14] sm:$0x1]
        %v5857 = vld [vmem:[%s5850 + $0x18] sm:$0xf]
        %v5858 = vld [vmem:[%s5850 + $0x1c] sm:$0xf]
        %v5859 = vld [vmem:[%s5850 + $0x20] sm:$0x1]
        %v5860 = vld [vmem:[%s5850 + $0x24] sm:$0xf]
        %v5861 = vld [vmem:[%s5850 + $0x28] sm:$0xf]
        %v5862 = vld [vmem:[%s5850 + $0x2c] sm:$0x1]
        %v5863 = vld [vmem:[%s5850 + $0x30] sm:$0xf]
        %v5864 = vld [vmem:[%s5850 + $0x34] sm:$0xf]
        %v5865 = vld [vmem:[%s5850 + $0x38] sm:$0x1]
        %v5866 = vld [vmem:[%s5850 + $0x3c] sm:$0xf]
        %v5867 = vld [vmem:[%s5850 + $0x40] sm:$0xf]
        %v5868 = vld [vmem:[%s5850 + $0x44] sm:$0x1]
        %v5869 = vld [vmem:[%s5850 + $0x48] sm:$0xf]
        %v5870 = vld [vmem:[%s5850 + $0x4c] sm:$0xf]
        %v5871 = vld [vmem:[%s5850 + $0x50] sm:$0x1]
        %v5872 = vld [vmem:[%s5850 + $0x54] sm:$0xf]
        %v5873 = vld [vmem:[%s5850 + $0x58] sm:$0xf]
        %v5874 = vld [vmem:[%s5850 + $0x5c] sm:$0x1]
        %v5875 = vld [vmem:[%s5850 + $0x60] sm:$0xf]
        %v5876 = vld [vmem:[%s5850 + $0x64] sm:$0xf]
        %v5877 = vld [vmem:[%s5850 + $0x68] sm:$0x1]
        %v5878 = vld [vmem:[%s5850 + $0x6c] sm:$0xf]
        %v5879 = vld [vmem:[%s5850 + $0x70] sm:$0xf]
        %v5880 = vld [vmem:[%s5850 + $0x74] sm:$0x1]
        %v5881 = vld [vmem:[%s5850 + $0x78] sm:$0xf]
        %v5882 = vld [vmem:[%s5850 + $0x7c] sm:$0xf]
        %v5883 = vld [vmem:[%s5850 + $0x80] sm:$0x1]
        %v5884 = vld [vmem:[%s5850 + $0x84] sm:$0xf]
        %v5885 = vld [vmem:[%s5850 + $0x88] sm:$0xf]
        %v5886 = vld [vmem:[%s5850 + $0x8c] sm:$0x1]
        %v5887 = vld [vmem:[%s5850 + $0x90] sm:$0xf]
        %v5888 = vld [vmem:[%s5850 + $0x94] sm:$0xf]
        %v5889 = vld [vmem:[%s5850 + $0x98] sm:$0x1]
        %v5890 = vld [vmem:[%s5850 + $0x9c] sm:$0xf]
        %v5891 = vld [vmem:[%s5850 + $0xa0] sm:$0xf]
        %v5892 = vld [vmem:[%s5850 + $0xa4] sm:$0x1]
        %v5893 = vld [vmem:[%s5850 + $0xa8] sm:$0xf]
        %v5894 = vld [vmem:[%s5850 + $0xac] sm:$0xf]
        %v5895 = vld [vmem:[%s5850 + $0xb0] sm:$0x1]
        %v5896 = vld [vmem:[%s5850 + $0xb4] sm:$0xf]
        %v5897 = vld [vmem:[%s5850 + $0xb8] sm:$0xf]
        %v5898 = vld [vmem:[%s5850 + $0xbc] sm:$0x1]
        %v5931 = vunpack.c.l.b16 %v5851
        %v5932 = vunpack.c.l.b16 %v5852
        %v5933 = vunpack.c.l.b16 %v5854
        %v5934 = vunpack.c.l.b16 %v5855
        %v5935 = vunpack.c.l.b16 %v5857
        %v5936 = vunpack.c.l.b16 %v5858
        %v5937 = vunpack.c.l.b16 %v5860
        %v5938 = vunpack.c.l.b16 %v5861
        %v5939 = vunpack.c.l.b16 %v5863
        %v5940 = vunpack.c.l.b16 %v5864
        %v5941 = vunpack.c.l.b16 %v5866
        %v5942 = vunpack.c.l.b16 %v5867
        %v5943 = vunpack.c.l.b16 %v5869
        %v5944 = vunpack.c.l.b16 %v5870
        %v5945 = vunpack.c.l.b16 %v5872
        %v5946 = vunpack.c.l.b16 %v5873
        %v5947 = vunpack.c.l.b16 %v5875
        %v5948 = vunpack.c.l.b16 %v5876
        %v5949 = vunpack.c.l.b16 %v5878
        %v5950 = vunpack.c.l.b16 %v5879
        %v5951 = vunpack.c.l.b16 %v5881
        %v5952 = vunpack.c.l.b16 %v5882
        %v5953 = vunpack.c.l.b16 %v5884
        %v5954 = vunpack.c.l.b16 %v5885
        %v5955 = vunpack.c.l.b16 %v5887
        %v5956 = vunpack.c.l.b16 %v5888
        %v5957 = vunpack.c.l.b16 %v5890
        %v5958 = vunpack.c.l.b16 %v5891
        %v5959 = vunpack.c.l.b16 %v5893
        %v5960 = vunpack.c.l.b16 %v5894
        %v5961 = vunpack.c.l.b16 %v5896
        %v5962 = vunpack.c.l.b16 %v5897
        %v5963 = vpack.c.b16 %v5932, %v5931
        %v5964 = vpack.c.b16 %v5934, %v5933
        %v5965 = vpack.c.b16 %v5936, %v5935
        %v5966 = vpack.c.b16 %v5938, %v5937
        %v5967 = vpack.c.b16 %v5940, %v5939
        %v5968 = vpack.c.b16 %v5942, %v5941
        %v5969 = vpack.c.b16 %v5944, %v5943
        %v5970 = vpack.c.b16 %v5946, %v5945
        %v5971 = vpack.c.b16 %v5948, %v5947
        %v5972 = vpack.c.b16 %v5950, %v5949
        %v5973 = vpack.c.b16 %v5952, %v5951
        %v5974 = vpack.c.b16 %v5954, %v5953
        %v5975 = vpack.c.b16 %v5956, %v5955
        %v5976 = vpack.c.b16 %v5958, %v5957
        %v5977 = vpack.c.b16 %v5960, %v5959
        %v5978 = vpack.c.b16 %v5962, %v5961
        %v5995 = vunpack.c.l.b16 %v5853
        %v5996 = vunpack.c.l.b16 %v5856
        %v5997 = vunpack.c.l.b16 %v5859
        %v5998 = vunpack.c.l.b16 %v5862
        %v5999 = vunpack.c.l.b16 %v5865
        %v6000 = vunpack.c.l.b16 %v5868
        %v6001 = vunpack.c.l.b16 %v5871
        %v6002 = vunpack.c.l.b16 %v5874
        %v6003 = vunpack.c.l.b16 %v5877
        %v6004 = vunpack.c.l.b16 %v5880
        %v6005 = vunpack.c.l.b16 %v5883
        %v6006 = vunpack.c.l.b16 %v5886
        %v6007 = vunpack.c.l.b16 %v5889
        %v6008 = vunpack.c.l.b16 %v5892
        %v6009 = vunpack.c.l.b16 %v5895
        %v6010 = vunpack.c.l.b16 %v5898
        %v6011 = vpack.c.b16 %v5995, %v5995
        %v6012 = vpack.c.b16 %v5996, %v5996
        %v6013 = vpack.c.b16 %v5997, %v5997
        %v6014 = vpack.c.b16 %v5998, %v5998
        %v6015 = vpack.c.b16 %v5999, %v5999
        %v6016 = vpack.c.b16 %v6000, %v6000
        %v6017 = vpack.c.b16 %v6001, %v6001
        %v6018 = vpack.c.b16 %v6002, %v6002
        %v6019 = vpack.c.b16 %v6003, %v6003
        %v6020 = vpack.c.b16 %v6004, %v6004
        %v6021 = vpack.c.b16 %v6005, %v6005
        %v6022 = vpack.c.b16 %v6006, %v6006
        %v6023 = vpack.c.b16 %v6007, %v6007
        %v6024 = vpack.c.b16 %v6008, %v6008
        %v6025 = vpack.c.b16 %v6009, %v6009
        %v6026 = vpack.c.b16 %v6010, %v6010
        %v6028 = vshrl.u32 %v5963, 16
        %v6030 = vshll.u32 %v5963, 16
        %v6032 = vrot.slane %v6030, 1
        %v6033 = vor.u32 %v6028, %v6032
        %v6035 = vshll.u32 %v6011, 16
        %v6037 = vrot.slane %v6035, 1
        %v6038 = vsel %vm1164, %v6033, %v6037
        %v6040 = vshrl.u32 %v5964, 16
        %v6042 = vshll.u32 %v5964, 16
        %v6044 = vrot.slane %v6042, 1
        %v6045 = vor.u32 %v6040, %v6044
        %v6047 = vshll.u32 %v6012, 16
        %v6049 = vrot.slane %v6047, 1
        %v6050 = vsel %vm1164, %v6045, %v6049
        %v6052 = vshrl.u32 %v5965, 16
        %v6054 = vshll.u32 %v5965, 16
        %v6056 = vrot.slane %v6054, 1
        %v6057 = vor.u32 %v6052, %v6056
        %v6059 = vshll.u32 %v6013, 16
        %v6061 = vrot.slane %v6059, 1
        %v6062 = vsel %vm1164, %v6057, %v6061
        %v6064 = vshrl.u32 %v5966, 16
        %v6066 = vshll.u32 %v5966, 16
        %v6068 = vrot.slane %v6066, 1
        %v6069 = vor.u32 %v6064, %v6068
        %v6071 = vshll.u32 %v6014, 16
        %v6073 = vrot.slane %v6071, 1
        %v6074 = vsel %vm1164, %v6069, %v6073
        %v6076 = vshrl.u32 %v5967, 16
        %v6078 = vshll.u32 %v5967, 16
        %v6080 = vrot.slane %v6078, 1
        %v6081 = vor.u32 %v6076, %v6080
        %v6083 = vshll.u32 %v6015, 16
        %v6085 = vrot.slane %v6083, 1
        %v6086 = vsel %vm1164, %v6081, %v6085
        %v6088 = vshrl.u32 %v5968, 16
        %v6090 = vshll.u32 %v5968, 16
        %v6092 = vrot.slane %v6090, 1
        %v6093 = vor.u32 %v6088, %v6092
        %v6095 = vshll.u32 %v6016, 16
        %v6097 = vrot.slane %v6095, 1
        %v6098 = vsel %vm1164, %v6093, %v6097
        %v6100 = vshrl.u32 %v5969, 16
        %v6102 = vshll.u32 %v5969, 16
        %v6104 = vrot.slane %v6102, 1
        %v6105 = vor.u32 %v6100, %v6104
        %v6107 = vshll.u32 %v6017, 16
        %v6109 = vrot.slane %v6107, 1
        %v6110 = vsel %vm1164, %v6105, %v6109
        %v6112 = vshrl.u32 %v5970, 16
        %v6114 = vshll.u32 %v5970, 16
        %v6116 = vrot.slane %v6114, 1
        %v6117 = vor.u32 %v6112, %v6116
        %v6119 = vshll.u32 %v6018, 16
        %v6121 = vrot.slane %v6119, 1
        %v6122 = vsel %vm1164, %v6117, %v6121
        %v6124 = vshrl.u32 %v5971, 16
        %v6126 = vshll.u32 %v5971, 16
        %v6128 = vrot.slane %v6126, 1
        %v6129 = vor.u32 %v6124, %v6128
        %v6131 = vshll.u32 %v6019, 16
        %v6133 = vrot.slane %v6131, 1
        %v6134 = vsel %vm1164, %v6129, %v6133
        %v6136 = vshrl.u32 %v5972, 16
        %v6138 = vshll.u32 %v5972, 16
        %v6140 = vrot.slane %v6138, 1
        %v6141 = vor.u32 %v6136, %v6140
        %v6143 = vshll.u32 %v6020, 16
        %v6145 = vrot.slane %v6143, 1
        %v6146 = vsel %vm1164, %v6141, %v6145
        %v6148 = vshrl.u32 %v5973, 16
        %v6150 = vshll.u32 %v5973, 16
        %v6152 = vrot.slane %v6150, 1
        %v6153 = vor.u32 %v6148, %v6152
        %v6155 = vshll.u32 %v6021, 16
        %v6157 = vrot.slane %v6155, 1
        %v6158 = vsel %vm1164, %v6153, %v6157
        %v6160 = vshrl.u32 %v5974, 16
        %v6162 = vshll.u32 %v5974, 16
        %v6164 = vrot.slane %v6162, 1
        %v6165 = vor.u32 %v6160, %v6164
        %v6167 = vshll.u32 %v6022, 16
        %v6169 = vrot.slane %v6167, 1
        %v6170 = vsel %vm1164, %v6165, %v6169
        %v6172 = vshrl.u32 %v5975, 16
        %v6174 = vshll.u32 %v5975, 16
        %v6176 = vrot.slane %v6174, 1
        %v6177 = vor.u32 %v6172, %v6176
        %v6179 = vshll.u32 %v6023, 16
        %v6181 = vrot.slane %v6179, 1
        %v6182 = vsel %vm1164, %v6177, %v6181
        %v6184 = vshrl.u32 %v5976, 16
        %v6186 = vshll.u32 %v5976, 16
        %v6188 = vrot.slane %v6186, 1
        %v6189 = vor.u32 %v6184, %v6188
        %v6191 = vshll.u32 %v6024, 16
        %v6193 = vrot.slane %v6191, 1
        %v6194 = vsel %vm1164, %v6189, %v6193
        %v6196 = vshrl.u32 %v5977, 16
        %v6198 = vshll.u32 %v5977, 16
        %v6200 = vrot.slane %v6198, 1
        %v6201 = vor.u32 %v6196, %v6200
        %v6203 = vshll.u32 %v6025, 16
        %v6205 = vrot.slane %v6203, 1
        %v6206 = vsel %vm1164, %v6201, %v6205
        %v6208 = vshrl.u32 %v5978, 16
        %v6210 = vshll.u32 %v5978, 16
        %v6212 = vrot.slane %v6210, 1
        %v6213 = vor.u32 %v6208, %v6212
        %v6215 = vshll.u32 %v6026, 16
        %v6217 = vrot.slane %v6215, 1
        %v6218 = vsel %vm1164, %v6213, %v6217
        %6219 = vrot.lane.b32.xlu0 %v6038, 8
        %v6220 = vpop.permute.xlu0 %6219
        %6221 = vrot.lane.b32.xlu0 %v6050, 8
        %v6222 = vpop.permute.xlu0 %6221
        %6223 = vrot.lane.b32.xlu0 %v6062, 8
        %v6224 = vpop.permute.xlu0 %6223
        %6225 = vrot.lane.b32.xlu0 %v6074, 8
        %v6226 = vpop.permute.xlu0 %6225
        %6227 = vrot.lane.b32.xlu0 %v6086, 8
        %v6228 = vpop.permute.xlu0 %6227
        %6229 = vrot.lane.b32.xlu0 %v6098, 8
        %v6230 = vpop.permute.xlu0 %6229
        %6231 = vrot.lane.b32.xlu0 %v6110, 8
        %v6232 = vpop.permute.xlu0 %6231
        %6233 = vrot.lane.b32.xlu0 %v6122, 8
        %v6234 = vpop.permute.xlu0 %6233
        %6235 = vrot.lane.b32.xlu0 %v6134, 8
        %v6236 = vpop.permute.xlu0 %6235
        %6237 = vrot.lane.b32.xlu0 %v6146, 8
        %v6238 = vpop.permute.xlu0 %6237
        %6239 = vrot.lane.b32.xlu0 %v6158, 8
        %v6240 = vpop.permute.xlu0 %6239
        %6241 = vrot.lane.b32.xlu0 %v6170, 8
        %v6242 = vpop.permute.xlu0 %6241
        %6243 = vrot.lane.b32.xlu0 %v6182, 8
        %v6244 = vpop.permute.xlu0 %6243
        %6245 = vrot.lane.b32.xlu0 %v6194, 8
        %v6246 = vpop.permute.xlu0 %6245
        %6247 = vrot.lane.b32.xlu0 %v6206, 8
        %v6248 = vpop.permute.xlu0 %6247
        %6249 = vrot.lane.b32.xlu0 %v6218, 8
        %v6250 = vpop.permute.xlu0 %6249
        %v6251 = vrot.slane %v5963, 1
        %v6252 = vrot.slane %v6011, 1
        %v6253 = vsel %vm1389, %v6251, %v6252
        %v6254 = vrot.slane %v5964, 1
        %v6255 = vrot.slane %v6012, 1
        %v6256 = vsel %vm1389, %v6254, %v6255
        %v6257 = vrot.slane %v5965, 1
        %v6258 = vrot.slane %v6013, 1
        %v6259 = vsel %vm1389, %v6257, %v6258
        %v6260 = vrot.slane %v5966, 1
        %v6261 = vrot.slane %v6014, 1
        %v6262 = vsel %vm1389, %v6260, %v6261
        %v6263 = vrot.slane %v5967, 1
        %v6264 = vrot.slane %v6015, 1
        %v6265 = vsel %vm1389, %v6263, %v6264
        %v6266 = vrot.slane %v5968, 1
        %v6267 = vrot.slane %v6016, 1
        %v6268 = vsel %vm1389, %v6266, %v6267
        %v6269 = vrot.slane %v5969, 1
        %v6270 = vrot.slane %v6017, 1
        %v6271 = vsel %vm1389, %v6269, %v6270
        %v6272 = vrot.slane %v5970, 1
        %v6273 = vrot.slane %v6018, 1
        %v6274 = vsel %vm1389, %v6272, %v6273
        %v6275 = vrot.slane %v5971, 1
        %v6276 = vrot.slane %v6019, 1
        %v6277 = vsel %vm1389, %v6275, %v6276
        %v6278 = vrot.slane %v5972, 1
        %v6279 = vrot.slane %v6020, 1
        %v6280 = vsel %vm1389, %v6278, %v6279
        %v6281 = vrot.slane %v5973, 1
        %v6282 = vrot.slane %v6021, 1
        %v6283 = vsel %vm1389, %v6281, %v6282
        %v6284 = vrot.slane %v5974, 1
        %v6285 = vrot.slane %v6022, 1
        %v6286 = vsel %vm1389, %v6284, %v6285
        %v6287 = vrot.slane %v5975, 1
        %v6288 = vrot.slane %v6023, 1
        %v6289 = vsel %vm1389, %v6287, %v6288
        %v6290 = vrot.slane %v5976, 1
        %v6291 = vrot.slane %v6024, 1
        %v6292 = vsel %vm1389, %v6290, %v6291
        %v6293 = vrot.slane %v5977, 1
        %v6294 = vrot.slane %v6025, 1
        %v6295 = vsel %vm1389, %v6293, %v6294
        %v6296 = vrot.slane %v5978, 1
        %v6297 = vrot.slane %v6026, 1
        %v6298 = vsel %vm1389, %v6296, %v6297
        %6299 = vrot.lane.b32.xlu0 %v6253, 16
        %v6300 = vpop.permute.xlu0 %6299
        %6301 = vrot.lane.b32.xlu0 %v6256, 16
        %v6302 = vpop.permute.xlu0 %6301
        %6303 = vrot.lane.b32.xlu0 %v6259, 16
        %v6304 = vpop.permute.xlu0 %6303
        %6305 = vrot.lane.b32.xlu0 %v6262, 16
        %v6306 = vpop.permute.xlu0 %6305
        %6307 = vrot.lane.b32.xlu0 %v6265, 16
        %v6308 = vpop.permute.xlu0 %6307
        %6309 = vrot.lane.b32.xlu0 %v6268, 16
        %v6310 = vpop.permute.xlu0 %6309
        %6311 = vrot.lane.b32.xlu0 %v6271, 16
        %v6312 = vpop.permute.xlu0 %6311
        %6313 = vrot.lane.b32.xlu0 %v6274, 16
        %v6314 = vpop.permute.xlu0 %6313
        %6315 = vrot.lane.b32.xlu0 %v6277, 16
        %v6316 = vpop.permute.xlu0 %6315
        %6317 = vrot.lane.b32.xlu0 %v6280, 16
        %v6318 = vpop.permute.xlu0 %6317
        %6319 = vrot.lane.b32.xlu0 %v6283, 16
        %v6320 = vpop.permute.xlu0 %6319
        %6321 = vrot.lane.b32.xlu0 %v6286, 16
        %v6322 = vpop.permute.xlu0 %6321
        %6323 = vrot.lane.b32.xlu0 %v6289, 16
        %v6324 = vpop.permute.xlu0 %6323
        %6325 = vrot.lane.b32.xlu0 %v6292, 16
        %v6326 = vpop.permute.xlu0 %6325
        %6327 = vrot.lane.b32.xlu0 %v6295, 16
        %v6328 = vpop.permute.xlu0 %6327
        %6329 = vrot.lane.b32.xlu0 %v6298, 16
        %v6330 = vpop.permute.xlu0 %6329
        %v6332 = vsel %vm1503, %v5963, %v6220
        %v6334 = vsel %vm1503, %v5964, %v6222
        %v6336 = vsel %vm1503, %v5965, %v6224
        %v6338 = vsel %vm1503, %v5966, %v6226
        %v6340 = vsel %vm1503, %v5967, %v6228
        %v6342 = vsel %vm1503, %v5968, %v6230
        %v6344 = vsel %vm1503, %v5969, %v6232
        %v6346 = vsel %vm1503, %v5970, %v6234
        %v6348 = vsel %vm1503, %v5971, %v6236
        %v6350 = vsel %vm1503, %v5972, %v6238
        %v6352 = vsel %vm1503, %v5973, %v6240
        %v6354 = vsel %vm1503, %v5974, %v6242
        %v6356 = vsel %vm1503, %v5975, %v6244
        %v6358 = vsel %vm1503, %v5976, %v6246
        %v6360 = vsel %vm1503, %v5977, %v6248
        %v6362 = vsel %vm1503, %v5978, %v6250
        %v6364 = vsel %vm4860, %v6332, %v6300
        %v6366 = vsel %vm4860, %v6334, %v6302
        %v6368 = vsel %vm4860, %v6336, %v6304
        %v6370 = vsel %vm4860, %v6338, %v6306
        %v6372 = vsel %vm4860, %v6340, %v6308
        %v6374 = vsel %vm4860, %v6342, %v6310
        %v6376 = vsel %vm4860, %v6344, %v6312
        %v6378 = vsel %vm4860, %v6346, %v6314
        %v6380 = vsel %vm4860, %v6348, %v6316
        %v6382 = vsel %vm4860, %v6350, %v6318
        %v6384 = vsel %vm4860, %v6352, %v6320
        %v6386 = vsel %vm4860, %v6354, %v6322
        %v6388 = vsel %vm4860, %v6356, %v6324
        %v6390 = vsel %vm4860, %v6358, %v6326
        %v6392 = vsel %vm4860, %v6360, %v6328
        %v6394 = vsel %vm4860, %v6362, %v6330
        %v6398 = vunpack.c.l.b16 %v980
        %v6399 = vunpack.c.l.b16 %v981
        %v6400 = vunpack.c.l.b16 %v982
        %v6401 = vpack.c.b16 %v6399, %v6398
        %v6402 = vpack.c.b16 %v6400, %v6400
        %v6404 = vsel %vm5447, %v6364, 0
        %v6406 = vsel %vm5447, %v6366, 0
        %v6408 = vsel %vm5447, %v6368, 0
        %v6410 = vsel %vm5447, %v6370, 0
        %v6412 = vsel %vm5447, %v6372, 0
        %v6414 = vsel %vm5447, %v6374, 0
        %v6416 = vsel %vm5447, %v6376, 0
        %v6418 = vsel %vm5447, %v6378, 0
        %v6420 = vsel %vm5447, %v6380, 0
        %v6422 = vsel %vm5447, %v6382, 0
        %v6424 = vsel %vm5447, %v6384, 0
        %v6426 = vsel %vm5447, %v6386, 0
        %v6428 = vsel %vm5447, %v6388, 0
        %v6430 = vsel %vm5447, %v6390, 0
        %v6432 = vsel %vm5447, %v6392, 0
        %v6434 = vsel %vm5447, %v6394, 0
        %v6437 = vsel %vm5480, %v6402, 0
        %6439 = vmatprep.subr.bf16.mxu0 0
        %6440 = vmatpush1.bf16.msra.mxu0 %v6401
        %6441 = vmatprep.subr.bf16.mxu0 0
        %6442 = vmatpush1.bf16.msra.mxu0 %v6437
        %6443 = vmatprep.subr.bf16.mxu0 0
        %6444 = vmatpush1.bf16.msra.mxu0 0
        %6445 = vmatprep.subr.bf16.mxu0 0
        %6446 = vmatpush1.bf16.msra.mxu0 0
        %6447 = vmatprep.subr.bf16.mxu0 0
        %6448 = vmatpush1.bf16.msra.mxu0 0
        %6449 = vmatprep.subr.bf16.mxu0 0
        %6450 = vmatpush1.bf16.msra.mxu0 0
        %6451 = vmatprep.subr.bf16.mxu0 0
        %6452 = vmatpush1.bf16.msra.mxu0 0
        %6453 = vmatprep.subr.bf16.mxu0 0
        %6454 = vmatpush1.bf16.msra.mxu0 0
        %6455 = vmatprep.subr.bf16.mxu0 0
        %6456 = vmatpush1.bf16.msra.mxu0 0
        %6457 = vmatprep.subr.bf16.mxu0 0
        %6458 = vmatpush1.bf16.msra.mxu0 0
        %6459 = vmatprep.subr.bf16.mxu0 0
        %6460 = vmatpush1.bf16.msra.mxu0 0
        %6461 = vmatprep.subr.bf16.mxu0 0
        %6462 = vmatpush1.bf16.msra.mxu0 0
        %6463 = vmatprep.subr.bf16.mxu0 0
        %6464 = vmatpush1.bf16.msra.mxu0 0
        %6465 = vmatprep.subr.bf16.mxu0 0
        %6466 = vmatpush1.bf16.msra.mxu0 0
        %6467 = vmatprep.subr.bf16.mxu0 0
        %6468 = vmatpush1.bf16.msra.mxu0 0
        %6469 = vmatprep.subr.bf16.mxu0 0
        %6470 = vmatpush1.bf16.msra.mxu0 0
        %6471 = vmatprep.mubr.bf16.mxu0 0
        %6472 = vmatmul.mubr.bf16.gmra.mrb[0].mxu0 %v6404
        %v6473 = vpop.f32.mrb[0].mxu0
        %v6474 = vadd.f32 0.0, %v6473
        %v6475 = vpop.f32.mrb[0].mxu0
        %v6476 = vpop.f32.mrb[0].mxu0
        %v6477 = vadd.f32 0.0, %v6476
        %v6478 = vpop.f32.mrb[0].mxu0
        %6479 = vmatprep.mubr.bf16.mxu0 0
        %6480 = vmatmul.mubr.bf16.gmra.mrb[0].mxu0 %v6406
        %v6481 = vpop.f32.mrb[0].mxu0
        %v6482 = vadd.f32 0.0, %v6481
        %v6483 = vpop.f32.mrb[0].mxu0
        %v6484 = vpop.f32.mrb[0].mxu0
        %v6485 = vadd.f32 0.0, %v6484
        %v6486 = vpop.f32.mrb[0].mxu0
        %6487 = vmatprep.mubr.bf16.mxu0 0
        %6488 = vmatmul.mubr.bf16.gmra.mrb[0].mxu0 %v6408
        %v6489 = vpop.f32.mrb[0].mxu0
        %v6490 = vadd.f32 0.0, %v6489
        %v6491 = vpop.f32.mrb[0].mxu0
        %v6492 = vpop.f32.mrb[0].mxu0
        %v6493 = vadd.f32 0.0, %v6492
        %v6494 = vpop.f32.mrb[0].mxu0
        %6495 = vmatprep.mubr.bf16.mxu0 0
        %6496 = vmatmul.mubr.bf16.gmra.mrb[0].mxu0 %v6410
        %v6497 = vpop.f32.mrb[0].mxu0
        %v6498 = vadd.f32 0.0, %v6497
        %v6499 = vpop.f32.mrb[0].mxu0
        %v6500 = vpop.f32.mrb[0].mxu0
        %v6501 = vadd.f32 0.0, %v6500
        %v6502 = vpop.f32.mrb[0].mxu0
        %6503 = vmatprep.mubr.bf16.mxu0 0
        %6504 = vmatmul.mubr.bf16.gmra.mrb[0].mxu0 %v6412
        %v6505 = vpop.f32.mrb[0].mxu0
        %v6506 = vadd.f32 0.0, %v6505
        %v6507 = vpop.f32.mrb[0].mxu0
        %v6508 = vpop.f32.mrb[0].mxu0
        %v6509 = vadd.f32 0.0, %v6508
        %v6510 = vpop.f32.mrb[0].mxu0
        %6511 = vmatprep.mubr.bf16.mxu0 0
        %6512 = vmatmul.mubr.bf16.gmra.mrb[0].mxu0 %v6414
        %v6513 = vpop.f32.mrb[0].mxu0
        %v6514 = vadd.f32 0.0, %v6513
        %v6515 = vpop.f32.mrb[0].mxu0
        %v6516 = vpop.f32.mrb[0].mxu0
        %v6517 = vadd.f32 0.0, %v6516
        %v6518 = vpop.f32.mrb[0].mxu0
        %6519 = vmatprep.mubr.bf16.mxu0 0
        %6520 = vmatmul.mubr.bf16.gmra.mrb[0].mxu0 %v6416
        %v6521 = vpop.f32.mrb[0].mxu0
        %v6522 = vadd.f32 0.0, %v6521
        %v6523 = vpop.f32.mrb[0].mxu0
        %v6524 = vpop.f32.mrb[0].mxu0
        %v6525 = vadd.f32 0.0, %v6524
        %v6526 = vpop.f32.mrb[0].mxu0
        %6527 = vmatprep.mubr.bf16.mxu0 0
        %6528 = vmatmul.mubr.bf16.gmra.mrb[0].mxu0 %v6418
        %v6529 = vpop.f32.mrb[0].mxu0
        %v6530 = vadd.f32 0.0, %v6529
        %v6531 = vpop.f32.mrb[0].mxu0
        %v6532 = vpop.f32.mrb[0].mxu0
        %v6533 = vadd.f32 0.0, %v6532
        %v6534 = vpop.f32.mrb[0].mxu0
        %6535 = vmatprep.mubr.bf16.mxu0 0
        %6536 = vmatmul.mubr.bf16.gmra.mrb[0].mxu0 %v6420
        %v6537 = vpop.f32.mrb[0].mxu0
        %v6538 = vadd.f32 0.0, %v6537
        %v6539 = vpop.f32.mrb[0].mxu0
        %v6540 = vpop.f32.mrb[0].mxu0
        %v6541 = vadd.f32 0.0, %v6540
        %v6542 = vpop.f32.mrb[0].mxu0
        %6543 = vmatprep.mubr.bf16.mxu0 0
        %6544 = vmatmul.mubr.bf16.gmra.mrb[0].mxu0 %v6422
        %v6545 = vpop.f32.mrb[0].mxu0
        %v6546 = vadd.f32 0.0, %v6545
        %v6547 = vpop.f32.mrb[0].mxu0
        %v6548 = vpop.f32.mrb[0].mxu0
        %v6549 = vadd.f32 0.0, %v6548
        %v6550 = vpop.f32.mrb[0].mxu0
        %6551 = vmatprep.mubr.bf16.mxu0 0
        %6552 = vmatmul.mubr.bf16.gmra.mrb[0].mxu0 %v6424
        %v6553 = vpop.f32.mrb[0].mxu0
        %v6554 = vadd.f32 0.0, %v6553
        %v6555 = vpop.f32.mrb[0].mxu0
        %v6556 = vpop.f32.mrb[0].mxu0
        %v6557 = vadd.f32 0.0, %v6556
        %v6558 = vpop.f32.mrb[0].mxu0
        %6559 = vmatprep.mubr.bf16.mxu0 0
        %6560 = vmatmul.mubr.bf16.gmra.mrb[0].mxu0 %v6426
        %v6561 = vpop.f32.mrb[0].mxu0
        %v6562 = vadd.f32 0.0, %v6561
        %v6563 = vpop.f32.mrb[0].mxu0
        %v6564 = vpop.f32.mrb[0].mxu0
        %v6565 = vadd.f32 0.0, %v6564
        %v6566 = vpop.f32.mrb[0].mxu0
        %6567 = vmatprep.mubr.bf16.mxu0 0
        %6568 = vmatmul.mubr.bf16.gmra.mrb[0].mxu0 %v6428
        %v6569 = vpop.f32.mrb[0].mxu0
        %v6570 = vadd.f32 0.0, %v6569
        %v6571 = vpop.f32.mrb[0].mxu0
        %v6572 = vpop.f32.mrb[0].mxu0
        %v6573 = vadd.f32 0.0, %v6572
        %v6574 = vpop.f32.mrb[0].mxu0
        %6575 = vmatprep.mubr.bf16.mxu0 0
        %6576 = vmatmul.mubr.bf16.gmra.mrb[0].mxu0 %v6430
        %v6577 = vpop.f32.mrb[0].mxu0
        %v6578 = vadd.f32 0.0, %v6577
        %v6579 = vpop.f32.mrb[0].mxu0
        %v6580 = vpop.f32.mrb[0].mxu0
        %v6581 = vadd.f32 0.0, %v6580
        %v6582 = vpop.f32.mrb[0].mxu0
        %6583 = vmatprep.mubr.bf16.mxu0 0
        %6584 = vmatmul.mubr.bf16.gmra.mrb[0].mxu0 %v6432
        %v6585 = vpop.f32.mrb[0].mxu0
        %v6586 = vadd.f32 0.0, %v6585
        %v6587 = vpop.f32.mrb[0].mxu0
        %v6588 = vpop.f32.mrb[0].mxu0
        %v6589 = vadd.f32 0.0, %v6588
        %v6590 = vpop.f32.mrb[0].mxu0
        %6591 = vmatprep.mubr.bf16.mxu0 0
        %6592 = vmatmul.mubr.bf16.gmra.mrb[0].mxu0 %v6434
        %v6593 = vpop.f32.mrb[0].mxu0
        %v6594 = vadd.f32 0.0, %v6593
        %v6595 = vpop.f32.mrb[0].mxu0
        %v6596 = vpop.f32.mrb[0].mxu0
        %v6597 = vadd.f32 0.0, %v6596
        %v6598 = vpop.f32.mrb[0].mxu0
        %6599 = vdwg.mxu0
        %v6600 = vadd.f32 %v5724, %v6474
        %v6601 = vadd.f32 %v5727, %v6477
        %v6602 = vadd.f32 %v5732, %v6482
        %v6603 = vadd.f32 %v5735, %v6485
        %v6604 = vadd.f32 %v5740, %v6490
        %v6605 = vadd.f32 %v5743, %v6493
        %v6606 = vadd.f32 %v5748, %v6498
        %v6607 = vadd.f32 %v5751, %v6501
        %v6608 = vadd.f32 %v5756, %v6506
        %v6609 = vadd.f32 %v5759, %v6509
        %v6610 = vadd.f32 %v5764, %v6514
        %v6611 = vadd.f32 %v5767, %v6517
        %v6612 = vadd.f32 %v5772, %v6522
        %v6613 = vadd.f32 %v5775, %v6525
        %v6614 = vadd.f32 %v5780, %v6530
        %v6615 = vadd.f32 %v5783, %v6533
        %v6616 = vadd.f32 %v5788, %v6538
        %v6617 = vadd.f32 %v5791, %v6541
        %v6618 = vadd.f32 %v5796, %v6546
        %v6619 = vadd.f32 %v5799, %v6549
        %v6620 = vadd.f32 %v5804, %v6554
        %v6621 = vadd.f32 %v5807, %v6557
        %v6622 = vadd.f32 %v5812, %v6562
        %v6623 = vadd.f32 %v5815, %v6565
        %v6624 = vadd.f32 %v5820, %v6570
        %v6625 = vadd.f32 %v5823, %v6573
        %v6626 = vadd.f32 %v5828, %v6578
        %v6627 = vadd.f32 %v5831, %v6581
        %v6628 = vadd.f32 %v5836, %v6586
        %v6629 = vadd.f32 %v5839, %v6589
        %v6630 = vadd.f32 %v5844, %v6594
        %v6631 = vadd.f32 %v5847, %v6597
        %v6633 = vlaneseq
        %v6634 = vshrl.u32 %v6633, 7
        %v6635 = vsub.s32 0, %v6634
        %v6636 = vrot.slane %v984, %v6635
        %v6638 = vadd.f32 %v6600, %v6636
        %v6639 = vadd.f32 %v6601, %v6636
        %v6640 = vadd.f32 %v6602, %v6636
        %v6641 = vadd.f32 %v6603, %v6636
        %v6642 = vadd.f32 %v6604, %v6636
        %v6643 = vadd.f32 %v6605, %v6636
        %v6644 = vadd.f32 %v6606, %v6636
        %v6645 = vadd.f32 %v6607, %v6636
        %v6646 = vadd.f32 %v6608, %v6636
        %v6647 = vadd.f32 %v6609, %v6636
        %v6648 = vadd.f32 %v6610, %v6636
        %v6649 = vadd.f32 %v6611, %v6636
        %v6650 = vadd.f32 %v6612, %v6636
        %v6651 = vadd.f32 %v6613, %v6636
        %v6652 = vadd.f32 %v6614, %v6636
        %v6653 = vadd.f32 %v6615, %v6636
        %v6654 = vadd.f32 %v6616, %v6636
        %v6655 = vadd.f32 %v6617, %v6636
        %v6656 = vadd.f32 %v6618, %v6636
        %v6657 = vadd.f32 %v6619, %v6636
        %v6658 = vadd.f32 %v6620, %v6636
        %v6659 = vadd.f32 %v6621, %v6636
        %v6660 = vadd.f32 %v6622, %v6636
        %v6661 = vadd.f32 %v6623, %v6636
        %v6662 = vadd.f32 %v6624, %v6636
        %v6663 = vadd.f32 %v6625, %v6636
        %v6664 = vadd.f32 %v6626, %v6636
        %v6665 = vadd.f32 %v6627, %v6636
        %v6666 = vadd.f32 %v6628, %v6636
        %v6667 = vadd.f32 %v6629, %v6636
        %v6668 = vadd.f32 %v6630, %v6636
        %v6669 = vadd.f32 %v6631, %v6636
        %v6670 = vmax.f32 %v6638, 0.0
        %v6671 = vmax.f32 %v6639, 0.0
        %v6672 = vmax.f32 %v6640, 0.0
        %v6673 = vmax.f32 %v6641, 0.0
        %v6674 = vmax.f32 %v6642, 0.0
        %v6675 = vmax.f32 %v6643, 0.0
        %v6676 = vmax.f32 %v6644, 0.0
        %v6677 = vmax.f32 %v6645, 0.0
        %v6678 = vmax.f32 %v6646, 0.0
        %v6679 = vmax.f32 %v6647, 0.0
        %v6680 = vmax.f32 %v6648, 0.0
        %v6681 = vmax.f32 %v6649, 0.0
        %v6682 = vmax.f32 %v6650, 0.0
        %v6683 = vmax.f32 %v6651, 0.0
        %v6684 = vmax.f32 %v6652, 0.0
        %v6685 = vmax.f32 %v6653, 0.0
        %v6686 = vmax.f32 %v6654, 0.0
        %v6687 = vmax.f32 %v6655, 0.0
        %v6688 = vmax.f32 %v6656, 0.0
        %v6689 = vmax.f32 %v6657, 0.0
        %v6690 = vmax.f32 %v6658, 0.0
        %v6691 = vmax.f32 %v6659, 0.0
        %v6692 = vmax.f32 %v6660, 0.0
        %v6693 = vmax.f32 %v6661, 0.0
        %v6694 = vmax.f32 %v6662, 0.0
        %v6695 = vmax.f32 %v6663, 0.0
        %v6696 = vmax.f32 %v6664, 0.0
        %v6697 = vmax.f32 %v6665, 0.0
        %v6698 = vmax.f32 %v6666, 0.0
        %v6699 = vmax.f32 %v6667, 0.0
        %v6700 = vmax.f32 %v6668, 0.0
        %v6701 = vmax.f32 %v6669, 0.0
        %6702 = vxpose.xlu0.b32.start [1/16] %v6670, 128
        %6703 = vxpose.xlu0.b32.cont [2/16] %v6671, 128
        %6704 = vxpose.xlu0.b32.cont [3/16] %v6672, 128
        %6705 = vxpose.xlu0.b32.cont [4/16] %v6673, 128
        %6706 = vxpose.xlu0.b32.cont [5/16] %v6674, 128
        %6707 = vxpose.xlu0.b32.cont [6/16] %v6675, 128
        %6708 = vxpose.xlu0.b32.cont [7/16] %v6676, 128
        %6709 = vxpose.xlu0.b32.cont [8/16] %v6677, 128
        %6710 = vxpose.xlu0.b32.cont [9/16] %v6678, 128
        %6711 = vxpose.xlu0.b32.cont [10/16] %v6679, 128
        %6712 = vxpose.xlu0.b32.cont [11/16] %v6680, 128
        %6713 = vxpose.xlu0.b32.cont [12/16] %v6681, 128
        %6714 = vxpose.xlu0.b32.cont [13/16] %v6682, 128
        %6715 = vxpose.xlu0.b32.cont [14/16] %v6683, 128
        %6716 = vxpose.xlu0.b32.cont [15/16] %v6684, 128
        %6717 = vxpose.xlu0.b32.end [16/16] %v6685, 128
        %v6718 = vpop.trf.xlu0
        %v6719 = vpop.trf.xlu0
        %v6720 = vpop.trf.xlu0
        %v6721 = vpop.trf.xlu0
        %v6722 = vpop.trf.xlu0
        %v6723 = vpop.trf.xlu0
        %v6724 = vpop.trf.xlu0
        %v6725 = vpop.trf.xlu0
        %v6726 = vpop.trf.xlu0
        %v6727 = vpop.trf.xlu0
        %v6728 = vpop.trf.xlu0
        %v6729 = vpop.trf.xlu0
        %v6730 = vpop.trf.xlu0
        %v6731 = vpop.trf.xlu0
        %v6732 = vpop.trf.xlu0
        %v6733 = vpop.trf.xlu0
        %6734 = vxpose.xlu0.b32.start [1/16] %v6686, 128
        %6735 = vxpose.xlu0.b32.cont [2/16] %v6687, 128
        %6736 = vxpose.xlu0.b32.cont [3/16] %v6688, 128
        %6737 = vxpose.xlu0.b32.cont [4/16] %v6689, 128
        %6738 = vxpose.xlu0.b32.cont [5/16] %v6690, 128
        %6739 = vxpose.xlu0.b32.cont [6/16] %v6691, 128
        %6740 = vxpose.xlu0.b32.cont [7/16] %v6692, 128
        %6741 = vxpose.xlu0.b32.cont [8/16] %v6693, 128
        %6742 = vxpose.xlu0.b32.cont [9/16] %v6694, 128
        %6743 = vxpose.xlu0.b32.cont [10/16] %v6695, 128
        %6744 = vxpose.xlu0.b32.cont [11/16] %v6696, 128
        %6745 = vxpose.xlu0.b32.cont [12/16] %v6697, 128
        %6746 = vxpose.xlu0.b32.cont [13/16] %v6698, 128
        %6747 = vxpose.xlu0.b32.cont [14/16] %v6699, 128
        %6748 = vxpose.xlu0.b32.cont [15/16] %v6700, 128
        %6749 = vxpose.xlu0.b32.end [16/16] %v6701, 128
        %v6750 = vpop.trf.xlu0
        %v6751 = vpop.trf.xlu0
        %v6752 = vpop.trf.xlu0
        %v6753 = vpop.trf.xlu0
        %v6754 = vpop.trf.xlu0
        %v6755 = vpop.trf.xlu0
        %v6756 = vpop.trf.xlu0
        %v6757 = vpop.trf.xlu0
        %v6758 = vpop.trf.xlu0
        %v6759 = vpop.trf.xlu0
        %v6760 = vpop.trf.xlu0
        %v6761 = vpop.trf.xlu0
        %v6762 = vpop.trf.xlu0
        %v6763 = vpop.trf.xlu0
        %v6764 = vpop.trf.xlu0
        %v6765 = vpop.trf.xlu0
        %v6766 = vpack.c.bf16 %v6718, %v6718
        %v6767 = vpack.c.bf16 %v6750, %v6750
        %v6770 = vunpack.c.l.b16 %v6766
        %v6771 = vunpack.c.l.b16 %v6767
        %v6772 = vpack.c.b16 %v6771, %v6770
        %6774 = vst [vmem:[%s231] sm:$0xff] %v6772
        %s6775 = sand.u32 %s151, 1
        %s6776 = scalar_lea.sflag [#allocation5], %s6775
        %s6777 = sand.u32 %s151, 1
        %s6778 = smul.addr %s6777, 8
        %s6779 = scalar_lea.vmem [#allocation4], %s6778
        // Predicated region
        $region49: #{tpu_custom_call.1} parent=39 // pred_check
          %p6780 = pneg %p161
        $region50: #{tpu_custom_call.1} parent=39 // pred_check_branch
          %6782 = sbr.rel (%p6780) target = $region52
        $region51: #{tpu_custom_call.1} parent=39 // pred_region
          %s6783 = smul.u32 2, %s24
          %s6785 = ssub.s32 128, 128
          %6786 = vsyncadd %s6776, %s6785
          %s6787 = smul.addr %s23, 2
          %s6788 = sadd.s32 %s6783, %s6787
          %s6789 = smul.addr %s6788, 64
          %s6790 = scalar_lea.hbm %s5, %s6789
          %s6792 = sshll.u32 %s6779, 4
          %s6793 = int_to_ptr.vmem [resolvable:$true] %s6792
          %6795 = dma.vmem_to_hbm [thread:$0]  %s6793, 128, %s6790, %s6776
        $region52: #{tpu_custom_call.1} parent=39 // pred_fallthru
          _
      $region40: #{tpu_custom_call.1} parent=5 // pred_fallthru
        _
      %p6796 = scmp.le.s32.totalorder 2, %s14
      // Predicated region
      $region53: #{tpu_custom_call.1} parent=5 // pred_check
        %p6797 = pneg %p6796
      $region54: #{tpu_custom_call.1} parent=5 // pred_check_branch
        %6799 = sbr.rel (%p6797) target = $region56
      $region55: #{tpu_custom_call.1} parent=5 // pred_region
        %s6800 = ssub.s32 %s14, 2
        // Predicated region
        $region57: #{tpu_custom_call.1} parent=55 // pred_check
          %p6801 = pneg %p167
        $region58: #{tpu_custom_call.1} parent=55 // pred_check_branch
          %6803 = sbr.rel (%p6801) target = $region60
        $region59: #{tpu_custom_call.1} parent=55 // pred_region
          %s6804 = sand.u32 %s152, 1
          %s6805 = scalar_lea.sflag [#allocation5], %s6804
          %s6806 = sand.u32 %s152, 1
          %s6807 = smul.addr %s6806, 8
          %s6808 = scalar_lea.vmem [#allocation4], %s6807
          %6809 = dma.done %s6805, 128
        $region60: #{tpu_custom_call.1} parent=55 // pred_fallthru
          _
      $region56: #{tpu_custom_call.1} parent=5 // pred_fallthru
        _
    $region6: #{tpu_custom_call.1} parent=1 // loop_footer
      %s18 = sadd.s32 1, %s14
    $region7: #{tpu_custom_call.1} parent=1 // loop_footer_branch
      %13 = sbr.rel target = $region3
    $region8: #{tpu_custom_call.1} parent=1 // loop_exit
      _
    %6810 = vsyncpa [#allocation5], 1
    %s6811 = scalar_lea.sflag [#allocation5], 1
    %6812 = vsyncpa %s6811, 1

</llo_original>
